<compile_context>
chip_gen: v7x
topology: tpu7x:2x2x1
jax: 0.10.0
libtpu: 0.0.40
codegen_flags: <defaults>
</compile_context>

<pallas_src>
import math

import numpy as np
import jax
import jax.numpy as jnp
from jax import lax
from jax.experimental import pallas as pl
from jax.experimental.pallas import tpu as pltpu

# ----------------------------- model hyper-params (small, synthetic) -----------------------------
B = 2            # batch
T_IN = 19        # chunk input frames: (chunk_size-1)*4 + right_context(6) + 1, chunk_size=4
IDIM = 16        # mel-dim
D_MODEL = 32     # hidden
N_HEAD = 4
D_K = D_MODEL // N_HEAD
D_FF = 64
N_LAYERS = 2
VOCAB = 50
VOCAB_PAD = 128          # CTC head padded to 128 lanes (lane-dense, unmasked stores)
BEAM = 5
REQUIRED_CACHE = 8       # == cache_t1
CACHE_T1 = 8
CNN_CACHE_T2 = 2         # unused (transformer=True), passed through for shape fidelity
SUBSAMPLING_RATE = 4
MAX_PE_LEN = 512

# conv subsampling output sizes (k3 s2 twice)
T1 = (T_IN - 3) // 2 + 1     # 9
F1 = (IDIM - 3) // 2 + 1     # 7
T2 = (T1 - 3) // 2 + 1       # 4  (== chunk_size)
F2 = (F1 - 3) // 2 + 1       # 3
TK = CACHE_T1 + T2           # 12 (attention key length)
NP2 = B * T2 * F2            # 24 conv2 output positions (both batches)

_VMEM = pl.BlockSpec(memory_space=pltpu.MemorySpace.VMEM)


# ----------------------------------------- Pallas kernel -----------------------------------------
def _ln(x, g, b, eps=1e-5):
    m = jnp.mean(x, axis=-1, keepdims=True)
    v = jnp.mean(jnp.square(x - m), axis=-1, keepdims=True)
    return (x - m) * lax.rsqrt(v + eps) * g + b


def _fused_kernel(p1_ref, m_ref, s_ref, w1_ref, b1_ref, Sg_ref, w2_ref, b2_ref,
                  we_ref, be_ref, pos_ref,
                  mask_ref, cache_ref,
                  n1g_ref, n1b_ref, qkvw_ref, qkvb_ref, wo_ref, bo_ref,
                  n2g_ref, n2b_ref, fw1_ref, fb1_ref, fw2_ref, fb2_ref,
                  ang_ref, anb_ref, cw_ref, cb_ref,
                  out_ref, cache_out_ref, logp_ref):
    """CMVN + Conv2dSubsampling4 + embed + pos-enc + all transformer layers + CTC, one kernel."""
    f32 = jnp.float32
    xscale = jnp.float32(math.sqrt(D_MODEL))
    scale = jnp.float32(1.0 / math.sqrt(D_K))
    neg = jnp.float32(-1e30)   # safe sentinel in f32 (would need -inf / dtype-aware in bf16)

    # ----------------------- front-end (both batches stacked on rows) -----------------------
    # CMVN folded into the im2col'd patches; conv1 (k3 s2) + ReLU as ONE matmul.
    p1 = (p1_ref[...] - m_ref[...]) * s_ref[...]                                   # (126, 9)
    y1 = jnp.maximum(jnp.dot(p1, w1_ref[...], preferred_element_type=f32)
                     + b1_ref[...], 0.0)                                           # (126, C)
    # conv2 (k3 s2): one gather matmul against the batch-block-diag 0/1 selection (tap-major
    # rows), lane repack (aligned 24-row slices -> taps onto lanes), one projection matmul.
    g = jnp.dot(Sg_ref[...], y1, preferred_element_type=f32)                       # (9*24, C)
    g2 = jnp.concatenate([g[k * NP2:(k + 1) * NP2, :] for k in range(9)], axis=1)  # (24, 9*C)
    y2 = jnp.maximum(jnp.dot(g2, w2_ref[...], preferred_element_type=f32)
                     + b2_ref[...], 0.0)                                           # (24, C), rows (fo, b, to)
    # embed Linear over the (C, F2) flatten: aligned 8-row slices -> ONE (8,96)@(96,D) matmul.
    y2f = jnp.concatenate([y2[fo * (B * T2):(fo + 1) * (B * T2), :] for fo in range(F2)],
                          axis=1)                                                  # (B*T2, F2*C)
    emb = jnp.dot(y2f, we_ref[...], preferred_element_type=f32) + be_ref[...]      # (B*T2, D)
    # PositionalEncoding: x * sqrt(d_model) + pe[offset : offset+T2]
    x2 = emb * xscale + pos_ref[...]                                               # residual stream

    # attention masks: built ONCE per batch, reused by every layer.
    valid = [(mask_ref[bi] > 0.0)[None] for bi in range(B)]                        # (1, 1, TK) bool

    # ------------------------------- transformer layers -------------------------------
    for li in range(N_LAYERS):
        # ---- self-attention block (pre-norm) ----
        xn = _ln(x2, n1g_ref[li], n1b_ref[li])
        qkv = jnp.dot(xn, qkvw_ref[li], preferred_element_type=f32) + qkvb_ref[li]  # (B*T2, 3D)
        q2 = qkv[:, :D_MODEL]
        kv_new = qkv[:, D_MODEL:]            # (B*T2, 2D): [K | V], heads merged on lanes

        att_rows = []
        for bi in range(B):
            r0 = bi * T2
            # single 8-aligned sublane concat per (batch, layer): [cache | new]
            kv_full = jnp.concatenate(
                [cache_ref[bi, li], kv_new[r0:r0 + T2, :]], axis=0)                # (TK, 2D)
            # new cache = last CACHE_T1 rows; lane-dense (8, 64) store.
            cache_out_ref[bi, li] = kv_full[T2:, :].astype(cache_out_ref.dtype)

            # heads to a leading batch dim for head-batched MXU dots.
            qh = jnp.stack([q2[r0:r0 + T2, h * D_K:(h + 1) * D_K]
                            for h in range(N_HEAD)], axis=0)                       # (h, T2, dk)
            kh = jnp.stack([kv_full[:, h * D_K:(h + 1) * D_K]
                            for h in range(N_HEAD)], axis=0)                       # (h, TK, dk)
            vh = jnp.stack([kv_full[:, D_MODEL + h * D_K:D_MODEL + (h + 1) * D_K]
                            for h in range(N_HEAD)], axis=0)                       # (h, TK, dk)

            sc = jnp.einsum('hqd,hkd->hqk', qh, kh,
                            preferred_element_type=f32) * scale                    # (h, T2, TK)
            sc = jnp.where(valid[bi], sc, neg)
            sc = sc - jnp.max(sc, axis=-1, keepdims=True)
            pr = jnp.exp(sc)
            denom = jnp.maximum(jnp.sum(pr, axis=-1, keepdims=True), jnp.float32(1e-30))
            # ~1e-4 rel-err approx reciprocal on the EUP; CTC log_softmax below stays exact.
            pr = pr * pl.reciprocal(denom, approx=True)
            # NOTE: masked probs are already exactly 0 (exp(-1e30 - max) underflows), so the
            # reference's post-softmax zero-fill is redundant and dropped.
            oh = jnp.einsum('hqk,hkd->hqd', pr, vh, preferred_element_type=f32)    # (h, T2, dk)
            att_rows.append(jnp.concatenate([oh[h] for h in range(N_HEAD)], axis=1))  # (T2, D)

        att = jnp.concatenate(att_rows, axis=0)                                    # (B*T2, D)
        x2 = x2 + jnp.dot(att, wo_ref[li], preferred_element_type=f32) + bo_ref[li]

        # ---- feed-forward block (pre-norm) ----
        xn2 = _ln(x2, n2g_ref[li], n2b_ref[li])
        h1 = jnp.maximum(jnp.dot(xn2, fw1_ref[li], preferred_element_type=f32)
                         + fb1_ref[li], 0.0)
        x2 = x2 + jnp.dot(h1, fw2_ref[li], preferred_element_type=f32) + fb2_ref[li]

    # ------------------------- after_norm + CTC linear + log_softmax -------------------------
    cn = _ln(x2, ang_ref[...], anb_ref[...])
    out_ref[...] = cn.astype(out_ref.dtype)
    z = jnp.dot(cn, cw_ref[...], preferred_element_type=f32) + cb_ref[...]         # (B*T2, 128) lane-dense
    z = z - jnp.max(z, axis=-1, keepdims=True)
    lse = jnp.log(jnp.sum(jnp.exp(z), axis=-1, keepdims=True))
    logp_ref[...] = (z - lse).astype(logp_ref.dtype)


def fused_forward_call(params, p1_raw, pos_flat, masks, kv_cache_in):
    L = params["stack"]
    return pl.pallas_call(
        _fused_kernel,
        out_shape=(
            jax.ShapeDtypeStruct((B * T2, D_MODEL), jnp.float32),                       # after_norm(xs)
            jax.ShapeDtypeStruct((B, N_LAYERS, CACHE_T1, 2 * D_MODEL), jnp.float32),    # new KV cache (lane-dense)
            jax.ShapeDtypeStruct((B * T2, VOCAB_PAD), jnp.float32),                     # ctc log-probs
        ),
        in_specs=[_VMEM] * 29,
        out_specs=(_VMEM, _VMEM, _VMEM),
    )(p1_raw, params["cmvn_m_im"], params["cmvn_s_im"],
      params["conv1_w"], params["conv1_b"],
      params["gather_S"], params["conv2_w_stk"], params["conv2_b"],
      params["embed_w"], params["embed_b"], pos_flat,
      masks, kv_cache_in,
      L["n1g"], L["n1b"], L["qkv_w"], L["qkv_b"], L["wo"], L["bo"],
      L["n2g"], L["n2b"], L["ff_w1"], L["ff_b1"], L["ff_w2"], L["ff_b2"],
      params["after_norm_g"], params["after_norm_b"],
      params["ctc_w_pad"], params["ctc_b_pad"])


# ------------------------------------------ plain-JAX glue ---------------------------------------
def im2col_k3s2_1ch(x):
    """x: (b, H, W), single channel -> (b, Ho*Wo, 9); tap order kh*3+kw, row order to*Wo+fo."""
    b, H, W = x.shape
    Ho = (H - 3) // 2 + 1
    Wo = (W - 3) // 2 + 1
    cols = [x[:, kh:kh + 2 * Ho:2, kw:kw + 2 * Wo:2] for kh in range(3) for kw in range(3)]
    p = jnp.stack(cols, axis=-1)                       # (b, Ho, Wo, 9)
    return p.reshape(b, Ho * Wo, 9)


def make_pe_table(max_len, d_model):
    pos = jnp.arange(max_len, dtype=jnp.float32)[:, None]
    div = jnp.exp(jnp.arange(0, d_model, 2, dtype=jnp.float32) *
                  (-math.log(10000.0) / d_model))
    pe = jnp.zeros((max_len, d_model), jnp.float32)
    pe = pe.at[:, 0::2].set(jnp.sin(pos * div))
    pe = pe.at[:, 1::2].set(jnp.cos(pos * div))
    return pe


def position_encoding(pe, offset, size):
    """offset: (b,) int -> (b, size, d_model); negatives clamp to 0 (wenet), upper clamp guards PE table."""
    index = offset[:, None] + jnp.arange(size)[None, :]
    index = index * (index > 0)
    index = jnp.clip(index, 0, MAX_PE_LEN - 1)
    return pe[index]


# ---------------------------------------- parameter init -----------------------------------------
def init_params(key):
    def dense(k, fan_in, shape):
        return jax.random.normal(k, shape, jnp.float32) / math.sqrt(fan_in)

    keys = jax.random.split(key, 8 + 8 * N_LAYERS)
    ki = iter(keys)

    cmvn_mean = jax.random.normal(next(ki), (IDIM,), jnp.float32) * 0.1
    cmvn_istd = 1.0 + 0.1 * jax.random.uniform(next(ki), (IDIM,), jnp.float32)

    # im2col'd CMVN tables at (B*T1*F1, 9); element [.., kh*3+kw] uses mel bin 2*fo+kw.
    mel_idx = 2 * np.arange(F1)[:, None] + np.arange(3)[None, :]          # (F1, 3)
    mel_idx = np.tile(mel_idx[:, None, :], (1, 3, 1)).reshape(F1, 9)      # expand kh (value indep.)
    mel_idx = np.tile(mel_idx, (B * T1, 1))                               # (B*T1*F1, 9)
    cmvn_m_im = cmvn_mean[mel_idx]
    cmvn_s_im = cmvn_istd[mel_idx]

    # conv2 gather matrix: batch-block-diagonal 0/1 selection, TAP-major rows so the lane
    # repack in-kernel is 9 aligned 24-row slices.  Output position index p2 = fo*(B*T2)+b*T2+to
    # (fo-major) so the embed repack is 3 aligned 8-row slices.
    S = np.zeros((9 * NP2, B * T1 * F1), np.float32)
    for b in range(B):
        for to in range(T2):
            for fo in range(F2):
                p2 = fo * (B * T2) + b * T2 + to
                for kh in range(3):
                    for kw in range(3):
                        S[(kh * 3 + kw) * NP2 + p2,
                          b * T1 * F1 + (2 * to + kh) * F1 + (2 * fo + kw)] = 1.0

    params = {
        "cmvn_m_im": cmvn_m_im, "cmvn_s_im": cmvn_s_im,
        # conv weights stored matmul-ready:
        #   conv1 (9, C): row kh*3+kw == torch W[c_out, 0, kh, kw]
        #   conv2 tap-stacked (9*C, C): row (kh*3+kw)*C + c_in == torch W[c_out, c_in, kh, kw]
        "conv1_w": dense(next(ki), 9, (9, D_MODEL)),
        "conv1_b": jnp.zeros((1, D_MODEL), jnp.float32),
        "conv2_w_stk": dense(next(ki), D_MODEL * 9, (9 * D_MODEL, D_MODEL)),
        "conv2_b": jnp.zeros((1, D_MODEL), jnp.float32),
        "gather_S": jnp.asarray(S),
        # embed linear stored as (F2*C, D): row fo*C + c == torch W_e[d, c*F2 + fo]
        "embed_w": dense(next(ki), D_MODEL * F2, (F2 * D_MODEL, D_MODEL)),
        "embed_b": jnp.zeros((1, D_MODEL), jnp.float32),
        "pe": make_pe_table(MAX_PE_LEN, D_MODEL),
        "after_norm_g": jnp.ones((1, D_MODEL), jnp.float32),
        "after_norm_b": jnp.zeros((1, D_MODEL), jnp.float32),
    }

    # CTC head padded to 128 lanes: zero weights / -1e30 bias on the pad -> padded classes never win top-k.
    ctc_w = dense(next(ki), D_MODEL, (D_MODEL, VOCAB))
    params["ctc_w_pad"] = jnp.concatenate(
        [ctc_w, jnp.zeros((D_MODEL, VOCAB_PAD - VOCAB), jnp.float32)], axis=1)
    params["ctc_b_pad"] = jnp.concatenate(
        [jnp.zeros((VOCAB,), jnp.float32),
         jnp.full((VOCAB_PAD - VOCAB,), -1e30, jnp.float32)], axis=0).reshape(1, VOCAB_PAD)

    # transformer layer stack, weights stacked on a leading layer axis; QKV fused to (D, 3D) with
    # K and V heads merged on lanes (column h*D_K + d).
    qkv_w, qkv_b, wo, bo = [], [], [], []
    n1g, n1b, n2g, n2b = [], [], [], []
    ff_w1, ff_b1, ff_w2, ff_b2 = [], [], [], []
    for _ in range(N_LAYERS):
        kq, kk, kv, ko, kf1, kf2 = jax.random.split(next(ki), 6)
        wq = dense(kq, D_MODEL, (D_MODEL, D_MODEL))
        wk = dense(kk, D_MODEL, (D_MODEL, D_MODEL))
        wv = dense(kv, D_MODEL, (D_MODEL, D_MODEL))
        qkv_w.append(jnp.concatenate([wq, wk, wv], axis=1))
        qkv_b.append(jnp.zeros((1, 3 * D_MODEL), jnp.float32))
        wo.append(dense(ko, D_MODEL, (D_MODEL, D_MODEL)))
        bo.append(jnp.zeros((1, D_MODEL), jnp.float32))
        n1g.append(jnp.ones((1, D_MODEL), jnp.float32))
        n1b.append(jnp.zeros((1, D_MODEL), jnp.float32))
        n2g.append(jnp.ones((1, D_MODEL), jnp.float32))
        n2b.append(jnp.zeros((1, D_MODEL), jnp.float32))
        ff_w1.append(dense(kf1, D_MODEL, (D_MODEL, D_FF)))
        ff_b1.append(jnp.zeros((1, D_FF), jnp.float32))
        ff_w2.append(dense(kf2, D_FF, (D_FF, D_MODEL)))
        ff_b2.append(jnp.zeros((1, D_MODEL), jnp.float32))
    params["stack"] = {
        "qkv_w": jnp.stack(qkv_w), "qkv_b": jnp.stack(qkv_b),
        "wo": jnp.stack(wo), "bo": jnp.stack(bo),
        "n1g": jnp.stack(n1g), "n1b": jnp.stack(n1b),
        "n2g": jnp.stack(n2g), "n2b": jnp.stack(n2b),
        "ff_w1": jnp.stack(ff_w1), "ff_b1": jnp.stack(ff_b1),
        "ff_w2": jnp.stack(ff_w2), "ff_b2": jnp.stack(ff_b2),
    }
    return params


# ------------------------------------------- forward ---------------------------------------------
def streaming_encoder_forward(params, chunk_xs, chunk_lens, offset,
                              att_cache, cnn_cache, cache_mask):
    b, T, idim = chunk_xs.shape
    offset = offset[:, 0]                # squeeze(1); downsampling factor of (num_blocks+1) == 1

    # chunk mask from lengths (b, 1, T); subsampled mask [:, :, 2::2][:, :, 2::2] -> (b, 1, T2)
    t_idx = jnp.arange(T)
    chunk_mask = (t_idx[None, :] < chunk_lens[:, None]).astype(chunk_xs.dtype)[:, None, :]
    chunk_mask = chunk_mask[:, :, 2::2][:, :, 2::2]
    masks = jnp.concatenate([cache_mask.astype(chunk_xs.dtype), chunk_mask], axis=2)  # (b, 1, TK)
    r_cache_mask = masks[:, :, -REQUIRED_CACHE:]

    # im2col of the raw input for conv1 (k3 s2), batch stacked on rows; pos-enc gather.
    p1_raw = im2col_k3s2_1ch(chunk_xs).reshape(b * T1 * F1, 9)
    pos_flat = position_encoding(params["pe"], offset, T2).reshape(b * T2, D_MODEL)

    # KV-cache -> head-merged-on-lanes layout (b, L, cache_t1, 2*D): [K_heads | V_heads]
    k_in = jnp.transpose(att_cache[..., :D_K], (0, 1, 3, 2, 4)).reshape(b, N_LAYERS, CACHE_T1, D_MODEL)
    v_in = jnp.transpose(att_cache[..., D_K:], (0, 1, 3, 2, 4)).reshape(b, N_LAYERS, CACHE_T1, D_MODEL)
    kv_cache_in = jnp.concatenate([k_in, v_in], axis=-1)

    # ---- ONE fused Pallas call: frontend + all layers + after_norm + CTC head ----
    chunk_out2, kv_cache_out, logp_pad = fused_forward_call(params, p1_raw, pos_flat, masks, kv_cache_in)
    chunk_out = chunk_out2.reshape(b, T2, D_MODEL)
    log_ctc_probs = logp_pad.reshape(b, T2, VOCAB_PAD)

    # lane-dense cache output back to the module's (b, elayers, head, cache_t1, 2*d_k) layout.
    k_o = kv_cache_out[..., :D_MODEL].reshape(b, N_LAYERS, CACHE_T1, N_HEAD, D_K)
    v_o = kv_cache_out[..., D_MODEL:].reshape(b, N_LAYERS, CACHE_T1, N_HEAD, D_K)
    r_att_cache = jnp.transpose(jnp.concatenate([k_o, v_o], axis=-1), (0, 1, 3, 2, 4))

    # beam top-k: padded CTC classes carry ~-1e30 log-probs so they are never selected.
    # TODO(synk): top-k (sorting/selection) has no clean Pallas TPU primitive; lax.top_k in wrapper.
    log_probs, log_probs_idx = jax.lax.top_k(log_ctc_probs, BEAM)
    log_probs = log_probs.astype(chunk_xs.dtype)

    r_offset = (offset + T2)[:, None]
    # chunk_lens // subsampling_rate // downsample_factor(==1), then += 1  (matches the reference)
    chunk_out_lens = chunk_lens // SUBSAMPLING_RATE + 1

    # transformer=True: no conformer CNN module -> empty (layer-dim 0) cnn cache.
    # TODO(synk): conformer CNN-module / stride-layer path not implemented (transformer variant).
    r_cnn_cache = jnp.zeros((b, 0) + cnn_cache.shape[2:], cnn_cache.dtype)

    return (log_probs, log_probs_idx, chunk_out, chunk_out_lens,
            r_offset, r_att_cache, r_cnn_cache, r_cache_mask)


# --------------------------------------------- main ----------------------------------------------
if __name__ == "__main__":
    root = jax.random.PRNGKey(0)
    k_in, k_param = jax.random.split(root)
    k1, k2 = jax.random.split(k_in)

    params = init_params(k_param)

    chunk_xs = jax.random.normal(k1, (B, T_IN, IDIM), jnp.float32)
    chunk_lens = jnp.array([19, 15], jnp.int32)
    offset = jnp.array([[16], [8]], jnp.int32)
    att_cache = 0.1 * jax.random.normal(k2, (B, N_LAYERS, N_HEAD, CACHE_T1, 2 * D_K), jnp.float32)
    cnn_cache = jnp.zeros((B, N_LAYERS, D_MODEL, CNN_CACHE_T2), jnp.float32)
    cache_mask = jnp.stack([
        jnp.ones((1, REQUIRED_CACHE), jnp.float32),
        jnp.concatenate([jnp.zeros((1, 3), jnp.float32), jnp.ones((1, 5), jnp.float32)], axis=1),
    ], axis=0)                                                   # (B, 1, REQUIRED_CACHE)

    fwd = jax.jit(streaming_encoder_forward)
    outs = fwd(params, chunk_xs, chunk_lens, offset, att_cache, cnn_cache, cache_mask)
    outs = jax.block_until_ready(outs)

    (log_probs, log_probs_idx, chunk_out, chunk_out_lens,
     r_offset, r_att_cache, r_cnn_cache, r_cache_mask) = outs

    assert log_probs.shape == (B, T2, BEAM)
    assert log_probs_idx.shape == (B, T2, BEAM)
    assert chunk_out.shape == (B, T2, D_MODEL)
    assert r_att_cache.shape == (B, N_LAYERS, N_HEAD, REQUIRED_CACHE, 2 * D_K)
    assert r_cache_mask.shape == (B, 1, REQUIRED_CACHE)
    assert r_offset.shape == (B, 1)
    assert bool(jnp.all(jnp.isfinite(log_probs)))
    assert bool(jnp.all(log_probs_idx < VOCAB))      # padded CTC classes never selected
    print("KERNEL_OK")
</pallas_src>

<mosaic_0001>
module attributes {stable_mosaic.version = 11 : i64} {
  func.func @_fused_kernel(%arg0: memref<126x9xf32, #tpu.memory_space<vmem>>, %arg1: memref<126x9xf32, #tpu.memory_space<vmem>>, %arg2: memref<126x9xf32, #tpu.memory_space<vmem>>, %arg3: memref<9x32xf32, #tpu.memory_space<vmem>>, %arg4: memref<1x32xf32, #tpu.memory_space<vmem>>, %arg5: memref<216x126xf32, #tpu.memory_space<vmem>>, %arg6: memref<288x32xf32, #tpu.memory_space<vmem>>, %arg7: memref<1x32xf32, #tpu.memory_space<vmem>>, %arg8: memref<96x32xf32, #tpu.memory_space<vmem>>, %arg9: memref<1x32xf32, #tpu.memory_space<vmem>>, %arg10: memref<8x32xf32, #tpu.memory_space<vmem>>, %arg11: memref<2x1x12xf32, #tpu.memory_space<vmem>>, %arg12: memref<2x2x8x64xf32, #tpu.memory_space<vmem>>, %arg13: memref<2x1x32xf32, #tpu.memory_space<vmem>>, %arg14: memref<2x1x32xf32, #tpu.memory_space<vmem>>, %arg15: memref<2x32x96xf32, #tpu.memory_space<vmem>>, %arg16: memref<2x1x96xf32, #tpu.memory_space<vmem>>, %arg17: memref<2x32x32xf32, #tpu.memory_space<vmem>>, %arg18: memref<2x1x32xf32, #tpu.memory_space<vmem>>, %arg19: memref<2x1x32xf32, #tpu.memory_space<vmem>>, %arg20: memref<2x1x32xf32, #tpu.memory_space<vmem>>, %arg21: memref<2x32x64xf32, #tpu.memory_space<vmem>>, %arg22: memref<2x1x64xf32, #tpu.memory_space<vmem>>, %arg23: memref<2x64x32xf32, #tpu.memory_space<vmem>>, %arg24: memref<2x1x32xf32, #tpu.memory_space<vmem>>, %arg25: memref<1x32xf32, #tpu.memory_space<vmem>>, %arg26: memref<1x32xf32, #tpu.memory_space<vmem>>, %arg27: memref<32x128xf32, #tpu.memory_space<vmem>>, %arg28: memref<1x128xf32, #tpu.memory_space<vmem>>, %arg29: memref<8x32xf32, #tpu.memory_space<vmem>>, %arg30: memref<2x2x8x64xf32, #tpu.memory_space<vmem>>, %arg31: memref<8x128xf32, #tpu.memory_space<vmem>>) attributes {dimension_semantics = [], scalar_prefetch = 0 : i64, scratch_operands = 0 : i64, tpu.core_type = #tpu.core_type<tc>} {
    %c0 = arith.constant 0 : index
    %c0_0 = arith.constant 0 : index
    %0 = vector.load %arg0[%c0, %c0_0] : memref<126x9xf32, #tpu.memory_space<vmem>>, vector<126x9xf32>
    %c0_1 = arith.constant 0 : index
    %c0_2 = arith.constant 0 : index
    %1 = vector.load %arg1[%c0_1, %c0_2] : memref<126x9xf32, #tpu.memory_space<vmem>>, vector<126x9xf32>
    %2 = arith.subf %0, %1 : vector<126x9xf32>
    %c0_3 = arith.constant 0 : index
    %c0_4 = arith.constant 0 : index
    %3 = vector.load %arg2[%c0_3, %c0_4] : memref<126x9xf32, #tpu.memory_space<vmem>>, vector<126x9xf32>
    %4 = arith.mulf %2, %3 : vector<126x9xf32>
    %c0_5 = arith.constant 0 : index
    %c0_6 = arith.constant 0 : index
    %5 = vector.load %arg3[%c0_5, %c0_6] : memref<9x32xf32, #tpu.memory_space<vmem>>, vector<9x32xf32>
    %cst = arith.constant dense<0.000000e+00> : vector<126x32xf32>
    %6 = tpu.matmul %4, %5, %cst {dimension_numbers = #tpu.dot_dimension_numbers<[1], [0], [0], [1], [0, 0, 1, 1], [], []>} : vector<126x9xf32>, vector<9x32xf32>, vector<126x32xf32> -> vector<126x32xf32>
    %c0_7 = arith.constant 0 : index
    %c0_8 = arith.constant 0 : index
    %7 = vector.load %arg4[%c0_7, %c0_8] : memref<1x32xf32, #tpu.memory_space<vmem>>, vector<1x32xf32>
    %8 = vector.broadcast %7 : vector<1x32xf32> to vector<126x32xf32>
    %9 = arith.addf %6, %8 : vector<126x32xf32>
    %cst_9 = arith.constant 0.000000e+00 : f32
    %10 = vector.broadcast %cst_9 : f32 to vector<126x32xf32>
    %11 = arith.maximumf %9, %10 : vector<126x32xf32>
    %c0_10 = arith.constant 0 : index
    %c0_11 = arith.constant 0 : index
    %12 = vector.load %arg5[%c0_10, %c0_11] : memref<216x126xf32, #tpu.memory_space<vmem>>, vector<216x126xf32>
    %cst_12 = arith.constant dense<0.000000e+00> : vector<216x32xf32>
    %13 = tpu.matmul %12, %11, %cst_12 {dimension_numbers = #tpu.dot_dimension_numbers<[1], [0], [0], [1], [0, 0, 1, 1], [], []>} : vector<216x126xf32>, vector<126x32xf32>, vector<216x32xf32> -> vector<216x32xf32>
    %14 = vector.extract_strided_slice %13 {offsets = [0, 0], sizes = [24, 32], strides = [1, 1]} : vector<216x32xf32> to vector<24x32xf32>
    %15 = vector.extract_strided_slice %13 {offsets = [24, 0], sizes = [24, 32], strides = [1, 1]} : vector<216x32xf32> to vector<24x32xf32>
    %16 = vector.extract_strided_slice %13 {offsets = [48, 0], sizes = [24, 32], strides = [1, 1]} : vector<216x32xf32> to vector<24x32xf32>
    %17 = vector.extract_strided_slice %13 {offsets = [72, 0], sizes = [24, 32], strides = [1, 1]} : vector<216x32xf32> to vector<24x32xf32>
    %18 = vector.extract_strided_slice %13 {offsets = [96, 0], sizes = [24, 32], strides = [1, 1]} : vector<216x32xf32> to vector<24x32xf32>
    %19 = vector.extract_strided_slice %13 {offsets = [120, 0], sizes = [24, 32], strides = [1, 1]} : vector<216x32xf32> to vector<24x32xf32>
    %20 = vector.extract_strided_slice %13 {offsets = [144, 0], sizes = [24, 32], strides = [1, 1]} : vector<216x32xf32> to vector<24x32xf32>
    %21 = vector.extract_strided_slice %13 {offsets = [168, 0], sizes = [24, 32], strides = [1, 1]} : vector<216x32xf32> to vector<24x32xf32>
    %22 = vector.extract_strided_slice %13 {offsets = [192, 0], sizes = [24, 32], strides = [1, 1]} : vector<216x32xf32> to vector<24x32xf32>
    %23 = tpu.concatenate %14, %15, %16, %17, %18, %19, %20, %21, %22 in 1 : vector<24x32xf32>, vector<24x32xf32>, vector<24x32xf32>, vector<24x32xf32>, vector<24x32xf32>, vector<24x32xf32>, vector<24x32xf32>, vector<24x32xf32>, vector<24x32xf32> -> vector<24x288xf32>
    %c0_13 = arith.constant 0 : index
    %c0_14 = arith.constant 0 : index
    %24 = vector.load %arg6[%c0_13, %c0_14] : memref<288x32xf32, #tpu.memory_space<vmem>>, vector<288x32xf32>
    %cst_15 = arith.constant dense<0.000000e+00> : vector<24x32xf32>
    %25 = tpu.matmul %23, %24, %cst_15 {dimension_numbers = #tpu.dot_dimension_numbers<[1], [0], [0], [1], [0, 0, 1, 1], [], []>} : vector<24x288xf32>, vector<288x32xf32>, vector<24x32xf32> -> vector<24x32xf32>
    %c0_16 = arith.constant 0 : index
    %c0_17 = arith.constant 0 : index
    %26 = vector.load %arg7[%c0_16, %c0_17] : memref<1x32xf32, #tpu.memory_space<vmem>>, vector<1x32xf32>
    %27 = vector.broadcast %26 : vector<1x32xf32> to vector<24x32xf32>
    %28 = arith.addf %25, %27 : vector<24x32xf32>
    %cst_18 = arith.constant 0.000000e+00 : f32
    %29 = vector.broadcast %cst_18 : f32 to vector<24x32xf32>
    %30 = arith.maximumf %28, %29 : vector<24x32xf32>
    %31 = vector.extract_strided_slice %30 {offsets = [0, 0], sizes = [8, 32], strides = [1, 1]} : vector<24x32xf32> to vector<8x32xf32>
    %32 = vector.extract_strided_slice %30 {offsets = [8, 0], sizes = [8, 32], strides = [1, 1]} : vector<24x32xf32> to vector<8x32xf32>
    %33 = vector.extract_strided_slice %30 {offsets = [16, 0], sizes = [8, 32], strides = [1, 1]} : vector<24x32xf32> to vector<8x32xf32>
    %34 = tpu.concatenate %31, %32, %33 in 1 : vector<8x32xf32>, vector<8x32xf32>, vector<8x32xf32> -> vector<8x96xf32>
    %c0_19 = arith.constant 0 : index
    %c0_20 = arith.constant 0 : index
    %35 = vector.load %arg8[%c0_19, %c0_20] : memref<96x32xf32, #tpu.memory_space<vmem>>, vector<96x32xf32>
    %cst_21 = arith.constant dense<0.000000e+00> : vector<8x32xf32>
    %36 = tpu.matmul %34, %35, %cst_21 {dimension_numbers = #tpu.dot_dimension_numbers<[1], [0], [0], [1], [0, 0, 1, 1], [], []>} : vector<8x96xf32>, vector<96x32xf32>, vector<8x32xf32> -> vector<8x32xf32>
    %c0_22 = arith.constant 0 : index
    %c0_23 = arith.constant 0 : index
    %37 = vector.load %arg9[%c0_22, %c0_23] : memref<1x32xf32, #tpu.memory_space<vmem>>, vector<1x32xf32>
    %38 = vector.broadcast %37 : vector<1x32xf32> to vector<8x32xf32>
    %39 = arith.addf %36, %38 : vector<8x32xf32>
    %cst_24 = arith.constant 5.65685415 : f32
    %40 = vector.broadcast %cst_24 : f32 to vector<8x32xf32>
    %41 = arith.mulf %39, %40 : vector<8x32xf32>
    %c0_25 = arith.constant 0 : index
    %c0_26 = arith.constant 0 : index
    %42 = vector.load %arg10[%c0_25, %c0_26] : memref<8x32xf32, #tpu.memory_space<vmem>>, vector<8x32xf32>
    %43 = arith.addf %41, %42 : vector<8x32xf32>
    %c0_27 = arith.constant 0 : index
    %c0_28 = arith.constant 0 : index
    %c0_29 = arith.constant 0 : index
    %44 = vector.load %arg11[%c0_27, %c0_28, %c0_29] : memref<2x1x12xf32, #tpu.memory_space<vmem>>, vector<1x1x12xf32>
    %45 = vector.shape_cast %44 : vector<1x1x12xf32> to vector<1x12xf32>
    %cst_30 = arith.constant 0.000000e+00 : f32
    %46 = vector.broadcast %cst_30 : f32 to vector<1x12xf32>
    %47 = arith.cmpf ogt, %45, %46 : vector<1x12xf32>
    %48 = vector.shape_cast %47 : vector<1x12xi1> to vector<1x1x12xi1>
    %c1 = arith.constant 1 : index
    %c0_31 = arith.constant 0 : index
    %c0_32 = arith.constant 0 : index
    %49 = vector.load %arg11[%c1, %c0_31, %c0_32] : memref<2x1x12xf32, #tpu.memory_space<vmem>>, vector<1x1x12xf32>
    %50 = vector.shape_cast %49 : vector<1x1x12xf32> to vector<1x12xf32>
    %cst_33 = arith.constant 0.000000e+00 : f32
    %51 = vector.broadcast %cst_33 : f32 to vector<1x12xf32>
    %52 = arith.cmpf ogt, %50, %51 : vector<1x12xf32>
    %53 = vector.shape_cast %52 : vector<1x12xi1> to vector<1x1x12xi1>
    %c0_34 = arith.constant 0 : index
    %c0_35 = arith.constant 0 : index
    %c0_36 = arith.constant 0 : index
    %54 = vector.load %arg13[%c0_34, %c0_35, %c0_36] : memref<2x1x32xf32, #tpu.memory_space<vmem>>, vector<1x1x32xf32>
    %55 = vector.shape_cast %54 : vector<1x1x32xf32> to vector<1x32xf32>
    %c0_37 = arith.constant 0 : index
    %c0_38 = arith.constant 0 : index
    %c0_39 = arith.constant 0 : index
    %56 = vector.load %arg14[%c0_37, %c0_38, %c0_39] : memref<2x1x32xf32, #tpu.memory_space<vmem>>, vector<1x1x32xf32>
    %57 = vector.shape_cast %56 : vector<1x1x32xf32> to vector<1x32xf32>
    %cst_40 = arith.constant dense<0.000000e+00> : vector<8xf32>
    %58 = vector.multi_reduction <add>, %43, %cst_40 [1] : vector<8x32xf32> to vector<8xf32>
    %59 = vector.shape_cast %58 : vector<8xf32> to vector<8x1xf32>
    %cst_41 = arith.constant 3.200000e+01 : f32
    %60 = vector.broadcast %cst_41 : f32 to vector<8x1xf32>
    %61 = arith.divf %59, %60 : vector<8x1xf32>
    %62 = vector.broadcast %61 : vector<8x1xf32> to vector<8x32xf32>
    %63 = arith.subf %43, %62 : vector<8x32xf32>
    %64 = arith.mulf %63, %63 : vector<8x32xf32>
    %cst_42 = arith.constant dense<0.000000e+00> : vector<8xf32>
    %65 = vector.multi_reduction <add>, %64, %cst_42 [1] : vector<8x32xf32> to vector<8xf32>
    %66 = vector.shape_cast %65 : vector<8xf32> to vector<8x1xf32>
    %cst_43 = arith.constant 3.200000e+01 : f32
    %67 = vector.broadcast %cst_43 : f32 to vector<8x1xf32>
    %68 = arith.divf %66, %67 : vector<8x1xf32>
    %69 = vector.broadcast %61 : vector<8x1xf32> to vector<8x32xf32>
    %70 = arith.subf %43, %69 : vector<8x32xf32>
    %cst_44 = arith.constant 9.99999974E-6 : f32
    %71 = vector.broadcast %cst_44 : f32 to vector<8x1xf32>
    %72 = arith.addf %68, %71 : vector<8x1xf32>
    %73 = math.rsqrt %72 : vector<8x1xf32>
    %74 = vector.broadcast %73 : vector<8x1xf32> to vector<8x32xf32>
    %75 = arith.mulf %70, %74 : vector<8x32xf32>
    %76 = vector.broadcast %55 : vector<1x32xf32> to vector<8x32xf32>
    %77 = arith.mulf %75, %76 : vector<8x32xf32>
    %78 = vector.broadcast %57 : vector<1x32xf32> to vector<8x32xf32>
    %79 = arith.addf %77, %78 : vector<8x32xf32>
    %c0_45 = arith.constant 0 : index
    %c0_46 = arith.constant 0 : index
    %c0_47 = arith.constant 0 : index
    %80 = vector.load %arg15[%c0_45, %c0_46, %c0_47] : memref<2x32x96xf32, #tpu.memory_space<vmem>>, vector<1x32x96xf32>
    %81 = vector.shape_cast %80 : vector<1x32x96xf32> to vector<32x96xf32>
    %cst_48 = arith.constant dense<0.000000e+00> : vector<8x96xf32>
    %82 = tpu.matmul %79, %81, %cst_48 {dimension_numbers = #tpu.dot_dimension_numbers<[1], [0], [0], [1], [0, 0, 1, 1], [], []>} : vector<8x32xf32>, vector<32x96xf32>, vector<8x96xf32> -> vector<8x96xf32>
    %c0_49 = arith.constant 0 : index
    %c0_50 = arith.constant 0 : index
    %c0_51 = arith.constant 0 : index
    %83 = vector.load %arg16[%c0_49, %c0_50, %c0_51] : memref<2x1x96xf32, #tpu.memory_space<vmem>>, vector<1x1x96xf32>
    %84 = vector.shape_cast %83 : vector<1x1x96xf32> to vector<1x96xf32>
    %85 = vector.broadcast %84 : vector<1x96xf32> to vector<8x96xf32>
    %86 = arith.addf %82, %85 : vector<8x96xf32>
    %87 = vector.extract_strided_slice %86 {offsets = [0, 0], sizes = [8, 32], strides = [1, 1]} : vector<8x96xf32> to vector<8x32xf32>
    %88 = vector.extract_strided_slice %86 {offsets = [0, 32], sizes = [8, 64], strides = [1, 1]} : vector<8x96xf32> to vector<8x64xf32>
    %c0_52 = arith.constant 0 : index
    %c0_53 = arith.constant 0 : index
    %c0_54 = arith.constant 0 : index
    %c0_55 = arith.constant 0 : index
    %89 = vector.load %arg12[%c0_52, %c0_53, %c0_54, %c0_55] : memref<2x2x8x64xf32, #tpu.memory_space<vmem>>, vector<1x1x8x64xf32>
    %90 = vector.shape_cast %89 : vector<1x1x8x64xf32> to vector<8x64xf32>
    %91 = vector.extract_strided_slice %88 {offsets = [0, 0], sizes = [4, 64], strides = [1, 1]} : vector<8x64xf32> to vector<4x64xf32>
    %92 = tpu.concatenate %90, %91 in 0 : vector<8x64xf32>, vector<4x64xf32> -> vector<12x64xf32>
    %93 = vector.extract_strided_slice %92 {offsets = [4, 0], sizes = [8, 64], strides = [1, 1]} : vector<12x64xf32> to vector<8x64xf32>
    %c0_56 = arith.constant 0 : index
    %c0_57 = arith.constant 0 : index
    %c0_58 = arith.constant 0 : index
    %c0_59 = arith.constant 0 : index
    %94 = vector.load %arg30[%c0_56, %c0_57, %c0_58, %c0_59] : memref<2x2x8x64xf32, #tpu.memory_space<vmem>>, vector<1x1x8x64xf32>
    %95 = vector.shape_cast %94 : vector<1x1x8x64xf32> to vector<8x64xf32>
    %96 = vector.shape_cast %93 : vector<8x64xf32> to vector<1x1x8x64xf32>
    tpu.vector_store %arg30[%c0_56, %c0_57, %c0_58, %c0_59], %96 {strides = array<i32>} : memref<2x2x8x64xf32, #tpu.memory_space<vmem>>, vector<1x1x8x64xf32>,
    %97 = vector.extract_strided_slice %87 {offsets = [0, 0], sizes = [4, 8], strides = [1, 1]} : vector<8x32xf32> to vector<4x8xf32>
    %98 = vector.extract_strided_slice %87 {offsets = [0, 8], sizes = [4, 8], strides = [1, 1]} : vector<8x32xf32> to vector<4x8xf32>
    %99 = vector.extract_strided_slice %87 {offsets = [0, 16], sizes = [4, 8], strides = [1, 1]} : vector<8x32xf32> to vector<4x8xf32>
    %100 = vector.extract_strided_slice %87 {offsets = [0, 24], sizes = [4, 8], strides = [1, 1]} : vector<8x32xf32> to vector<4x8xf32>
    %101 = vector.shape_cast %97 : vector<4x8xf32> to vector<1x4x8xf32>
    %102 = vector.shape_cast %98 : vector<4x8xf32> to vector<1x4x8xf32>
    %103 = vector.shape_cast %99 : vector<4x8xf32> to vector<1x4x8xf32>
    %104 = vector.shape_cast %100 : vector<4x8xf32> to vector<1x4x8xf32>
    %105 = tpu.concatenate %101, %102, %103, %104 in 0 : vector<1x4x8xf32>, vector<1x4x8xf32>, vector<1x4x8xf32>, vector<1x4x8xf32> -> vector<4x4x8xf32>
    %106 = vector.extract_strided_slice %92 {offsets = [0, 0], sizes = [12, 8], strides = [1, 1]} : vector<12x64xf32> to vector<12x8xf32>
    %107 = vector.extract_strided_slice %92 {offsets = [0, 8], sizes = [12, 8], strides = [1, 1]} : vector<12x64xf32> to vector<12x8xf32>
    %108 = vector.extract_strided_slice %92 {offsets = [0, 16], sizes = [12, 8], strides = [1, 1]} : vector<12x64xf32> to vector<12x8xf32>
    %109 = vector.extract_strided_slice %92 {offsets = [0, 24], sizes = [12, 8], strides = [1, 1]} : vector<12x64xf32> to vector<12x8xf32>
    %110 = vector.shape_cast %106 : vector<12x8xf32> to vector<1x12x8xf32>
    %111 = vector.shape_cast %107 : vector<12x8xf32> to vector<1x12x8xf32>
    %112 = vector.shape_cast %108 : vector<12x8xf32> to vector<1x12x8xf32>
    %113 = vector.shape_cast %109 : vector<12x8xf32> to vector<1x12x8xf32>
    %114 = tpu.concatenate %110, %111, %112, %113 in 0 : vector<1x12x8xf32>, vector<1x12x8xf32>, vector<1x12x8xf32>, vector<1x12x8xf32> -> vector<4x12x8xf32>
    %115 = vector.extract_strided_slice %92 {offsets = [0, 32], sizes = [12, 8], strides = [1, 1]} : vector<12x64xf32> to vector<12x8xf32>
    %116 = vector.extract_strided_slice %92 {offsets = [0, 40], sizes = [12, 8], strides = [1, 1]} : vector<12x64xf32> to vector<12x8xf32>
    %117 = vector.extract_strided_slice %92 {offsets = [0, 48], sizes = [12, 8], strides = [1, 1]} : vector<12x64xf32> to vector<12x8xf32>
    %118 = vector.extract_strided_slice %92 {offsets = [0, 56], sizes = [12, 8], strides = [1, 1]} : vector<12x64xf32> to vector<12x8xf32>
    %119 = vector.shape_cast %115 : vector<12x8xf32> to vector<1x12x8xf32>
    %120 = vector.shape_cast %116 : vector<12x8xf32> to vector<1x12x8xf32>
    %121 = vector.shape_cast %117 : vector<12x8xf32> to vector<1x12x8xf32>
    %122 = vector.shape_cast %118 : vector<12x8xf32> to vector<1x12x8xf32>
    %123 = tpu.concatenate %119, %120, %121, %122 in 0 : vector<1x12x8xf32>, vector<1x12x8xf32>, vector<1x12x8xf32>, vector<1x12x8xf32> -> vector<4x12x8xf32>
    "tpu.trace_start"() <{level = 10 : i32, message = "hqd,hkd->hqk"}> : () -> ()
    %cst_60 = arith.constant dense<0.000000e+00> : vector<4x4x12xf32>
    %124 = tpu.matmul %105, %114, %cst_60 {dimension_numbers = #tpu.dot_dimension_numbers<[2], [2], [1], [1], [0, 0, 0, 1, 1, 1], [0], [0]>} : vector<4x4x8xf32>, vector<4x12x8xf32>, vector<4x4x12xf32> -> vector<4x4x12xf32>
    "tpu.trace_stop"() : () -> ()
    %cst_61 = arith.constant 0.353553385 : f32
    %125 = vector.broadcast %cst_61 : f32 to vector<4x4x12xf32>
    %126 = arith.mulf %124, %125 : vector<4x4x12xf32>
    %cst_62 = arith.constant -1.000000e+30 : f32
    %127 = vector.shape_cast %48 : vector<1x1x12xi1> to vector<1x1x12xi1>
    %128 = vector.broadcast %127 : vector<1x1x12xi1> to vector<4x4x12xi1>
    %129 = vector.broadcast %cst_62 : f32 to vector<4x4x12xf32>
    %130 = arith.select %128, %126, %129 : vector<4x4x12xi1>, vector<4x4x12xf32>
    %cst_63 = arith.constant dense<0xFF800000> : vector<4x4xf32>
    %131 = vector.multi_reduction <maximumf>, %130, %cst_63 [2] : vector<4x4x12xf32> to vector<4x4xf32>
    %132 = vector.shape_cast %131 : vector<4x4xf32> to vector<4x4x1xf32>
    %133 = vector.broadcast %132 : vector<4x4x1xf32> to vector<4x4x12xf32>
    %134 = arith.subf %130, %133 : vector<4x4x12xf32>
    %135 = math.exp %134 : vector<4x4x12xf32>
    %cst_64 = arith.constant dense<0.000000e+00> : vector<4x4xf32>
    %136 = vector.multi_reduction <add>, %135, %cst_64 [2] : vector<4x4x12xf32> to vector<4x4xf32>
    %137 = vector.shape_cast %136 : vector<4x4xf32> to vector<4x4x1xf32>
    %cst_65 = arith.constant 1.000000e-30 : f32
    %138 = vector.broadcast %cst_65 : f32 to vector<4x4x1xf32>
    %139 = arith.maximumf %137, %138 : vector<4x4x1xf32>
    %140 = tpu.reciprocal %139 {approx = true} : vector<4x4x1xf32> -> vector<4x4x1xf32>
    %141 = vector.broadcast %140 : vector<4x4x1xf32> to vector<4x4x12xf32>
    %142 = arith.mulf %135, %141 : vector<4x4x12xf32>
    "tpu.trace_start"() <{level = 10 : i32, message = "hqk,hkd->hqd"}> : () -> ()
    %cst_66 = arith.constant dense<0.000000e+00> : vector<4x4x8xf32>
    %143 = tpu.matmul %142, %123, %cst_66 {dimension_numbers = #tpu.dot_dimension_numbers<[2], [1], [1], [2], [0, 0, 0, 1, 1, 2], [0], [0]>} : vector<4x4x12xf32>, vector<4x12x8xf32>, vector<4x4x8xf32> -> vector<4x4x8xf32>
    "tpu.trace_stop"() : () -> ()
    %144 = vector.extract_strided_slice %143 {offsets = [0, 0, 0], sizes = [1, 4, 8], strides = [1, 1, 1]} : vector<4x4x8xf32> to vector<1x4x8xf32>
    %145 = vector.shape_cast %144 : vector<1x4x8xf32> to vector<4x8xf32>
    %146 = vector.extract_strided_slice %143 {offsets = [1, 0, 0], sizes = [1, 4, 8], strides = [1, 1, 1]} : vector<4x4x8xf32> to vector<1x4x8xf32>
    %147 = vector.shape_cast %146 : vector<1x4x8xf32> to vector<4x8xf32>
    %148 = vector.extract_strided_slice %143 {offsets = [2, 0, 0], sizes = [1, 4, 8], strides = [1, 1, 1]} : vector<4x4x8xf32> to vector<1x4x8xf32>
    %149 = vector.shape_cast %148 : vector<1x4x8xf32> to vector<4x8xf32>
    %150 = vector.extract_strided_slice %143 {offsets = [3, 0, 0], sizes = [1, 4, 8], strides = [1, 1, 1]} : vector<4x4x8xf32> to vector<1x4x8xf32>
    %151 = vector.shape_cast %150 : vector<1x4x8xf32> to vector<4x8xf32>
    %152 = tpu.concatenate %145, %147, %149, %151 in 1 : vector<4x8xf32>, vector<4x8xf32>, vector<4x8xf32>, vector<4x8xf32> -> vector<4x32xf32>
    %c1_67 = arith.constant 1 : index
    %c0_68 = arith.constant 0 : index
    %c0_69 = arith.constant 0 : index
    %c0_70 = arith.constant 0 : index
    %153 = vector.load %arg12[%c1_67, %c0_68, %c0_69, %c0_70] : memref<2x2x8x64xf32, #tpu.memory_space<vmem>>, vector<1x1x8x64xf32>
    %154 = vector.shape_cast %153 : vector<1x1x8x64xf32> to vector<8x64xf32>
    %155 = vector.extract_strided_slice %88 {offsets = [4, 0], sizes = [4, 64], strides = [1, 1]} : vector<8x64xf32> to vector<4x64xf32>
    %156 = tpu.concatenate %154, %155 in 0 : vector<8x64xf32>, vector<4x64xf32> -> vector<12x64xf32>
    %157 = vector.extract_strided_slice %156 {offsets = [4, 0], sizes = [8, 64], strides = [1, 1]} : vector<12x64xf32> to vector<8x64xf32>
    %c1_71 = arith.constant 1 : index
    %c0_72 = arith.constant 0 : index
    %c0_73 = arith.constant 0 : index
    %c0_74 = arith.constant 0 : index
    %158 = vector.load %arg30[%c1_71, %c0_72, %c0_73, %c0_74] : memref<2x2x8x64xf32, #tpu.memory_space<vmem>>, vector<1x1x8x64xf32>
    %159 = vector.shape_cast %158 : vector<1x1x8x64xf32> to vector<8x64xf32>
    %160 = vector.shape_cast %157 : vector<8x64xf32> to vector<1x1x8x64xf32>
    tpu.vector_store %arg30[%c1_71, %c0_72, %c0_73, %c0_74], %160 {strides = array<i32>} : memref<2x2x8x64xf32, #tpu.memory_space<vmem>>, vector<1x1x8x64xf32>,
    %161 = vector.extract_strided_slice %87 {offsets = [4, 0], sizes = [4, 8], strides = [1, 1]} : vector<8x32xf32> to vector<4x8xf32>
    %162 = vector.extract_strided_slice %87 {offsets = [4, 8], sizes = [4, 8], strides = [1, 1]} : vector<8x32xf32> to vector<4x8xf32>
    %163 = vector.extract_strided_slice %87 {offsets = [4, 16], sizes = [4, 8], strides = [1, 1]} : vector<8x32xf32> to vector<4x8xf32>
    %164 = vector.extract_strided_slice %87 {offsets = [4, 24], sizes = [4, 8], strides = [1, 1]} : vector<8x32xf32> to vector<4x8xf32>
    %165 = vector.shape_cast %161 : vector<4x8xf32> to vector<1x4x8xf32>
    %166 = vector.shape_cast %162 : vector<4x8xf32> to vector<1x4x8xf32>
    %167 = vector.shape_cast %163 : vector<4x8xf32> to vector<1x4x8xf32>
    %168 = vector.shape_cast %164 : vector<4x8xf32> to vector<1x4x8xf32>
    %169 = tpu.concatenate %165, %166, %167, %168 in 0 : vector<1x4x8xf32>, vector<1x4x8xf32>, vector<1x4x8xf32>, vector<1x4x8xf32> -> vector<4x4x8xf32>
    %170 = vector.extract_strided_slice %156 {offsets = [0, 0], sizes = [12, 8], strides = [1, 1]} : vector<12x64xf32> to vector<12x8xf32>
    %171 = vector.extract_strided_slice %156 {offsets = [0, 8], sizes = [12, 8], strides = [1, 1]} : vector<12x64xf32> to vector<12x8xf32>
    %172 = vector.extract_strided_slice %156 {offsets = [0, 16], sizes = [12, 8], strides = [1, 1]} : vector<12x64xf32> to vector<12x8xf32>
    %173 = vector.extract_strided_slice %156 {offsets = [0, 24], sizes = [12, 8], strides = [1, 1]} : vector<12x64xf32> to vector<12x8xf32>
    %174 = vector.shape_cast %170 : vector<12x8xf32> to vector<1x12x8xf32>
    %175 = vector.shape_cast %171 : vector<12x8xf32> to vector<1x12x8xf32>
    %176 = vector.shape_cast %172 : vector<12x8xf32> to vector<1x12x8xf32>
    %177 = vector.shape_cast %173 : vector<12x8xf32> to vector<1x12x8xf32>
    %178 = tpu.concatenate %174, %175, %176, %177 in 0 : vector<1x12x8xf32>, vector<1x12x8xf32>, vector<1x12x8xf32>, vector<1x12x8xf32> -> vector<4x12x8xf32>
    %179 = vector.extract_strided_slice %156 {offsets = [0, 32], sizes = [12, 8], strides = [1, 1]} : vector<12x64xf32> to vector<12x8xf32>
    %180 = vector.extract_strided_slice %156 {offsets = [0, 40], sizes = [12, 8], strides = [1, 1]} : vector<12x64xf32> to vector<12x8xf32>
    %181 = vector.extract_strided_slice %156 {offsets = [0, 48], sizes = [12, 8], strides = [1, 1]} : vector<12x64xf32> to vector<12x8xf32>
    %182 = vector.extract_strided_slice %156 {offsets = [0, 56], sizes = [12, 8], strides = [1, 1]} : vector<12x64xf32> to vector<12x8xf32>
    %183 = vector.shape_cast %179 : vector<12x8xf32> to vector<1x12x8xf32>
    %184 = vector.shape_cast %180 : vector<12x8xf32> to vector<1x12x8xf32>
    %185 = vector.shape_cast %181 : vector<12x8xf32> to vector<1x12x8xf32>
    %186 = vector.shape_cast %182 : vector<12x8xf32> to vector<1x12x8xf32>
    %187 = tpu.concatenate %183, %184, %185, %186 in 0 : vector<1x12x8xf32>, vector<1x12x8xf32>, vector<1x12x8xf32>, vector<1x12x8xf32> -> vector<4x12x8xf32>
    "tpu.trace_start"() <{level = 10 : i32, message = "hqd,hkd->hqk"}> : () -> ()
    %cst_75 = arith.constant dense<0.000000e+00> : vector<4x4x12xf32>
    %188 = tpu.matmul %169, %178, %cst_75 {dimension_numbers = #tpu.dot_dimension_numbers<[2], [2], [1], [1], [0, 0, 0, 1, 1, 1], [0], [0]>} : vector<4x4x8xf32>, vector<4x12x8xf32>, vector<4x4x12xf32> -> vector<4x4x12xf32>
    "tpu.trace_stop"() : () -> ()
    %cst_76 = arith.constant 0.353553385 : f32
    %189 = vector.broadcast %cst_76 : f32 to vector<4x4x12xf32>
    %190 = arith.mulf %188, %189 : vector<4x4x12xf32>
    %cst_77 = arith.constant -1.000000e+30 : f32
    %191 = vector.shape_cast %53 : vector<1x1x12xi1> to vector<1x1x12xi1>
    %192 = vector.broadcast %191 : vector<1x1x12xi1> to vector<4x4x12xi1>
    %193 = vector.broadcast %cst_77 : f32 to vector<4x4x12xf32>
    %194 = arith.select %192, %190, %193 : vector<4x4x12xi1>, vector<4x4x12xf32>
    %cst_78 = arith.constant dense<0xFF800000> : vector<4x4xf32>
    %195 = vector.multi_reduction <maximumf>, %194, %cst_78 [2] : vector<4x4x12xf32> to vector<4x4xf32>
    %196 = vector.shape_cast %195 : vector<4x4xf32> to vector<4x4x1xf32>
    %197 = vector.broadcast %196 : vector<4x4x1xf32> to vector<4x4x12xf32>
    %198 = arith.subf %194, %197 : vector<4x4x12xf32>
    %199 = math.exp %198 : vector<4x4x12xf32>
    %cst_79 = arith.constant dense<0.000000e+00> : vector<4x4xf32>
    %200 = vector.multi_reduction <add>, %199, %cst_79 [2] : vector<4x4x12xf32> to vector<4x4xf32>
    %201 = vector.shape_cast %200 : vector<4x4xf32> to vector<4x4x1xf32>
    %cst_80 = arith.constant 1.000000e-30 : f32
    %202 = vector.broadcast %cst_80 : f32 to vector<4x4x1xf32>
    %203 = arith.maximumf %201, %202 : vector<4x4x1xf32>
    %204 = tpu.reciprocal %203 {approx = true} : vector<4x4x1xf32> -> vector<4x4x1xf32>
    %205 = vector.broadcast %204 : vector<4x4x1xf32> to vector<4x4x12xf32>
    %206 = arith.mulf %199, %205 : vector<4x4x12xf32>
    "tpu.trace_start"() <{level = 10 : i32, message = "hqk,hkd->hqd"}> : () -> ()
    %cst_81 = arith.constant dense<0.000000e+00> : vector<4x4x8xf32>
    %207 = tpu.matmul %206, %187, %cst_81 {dimension_numbers = #tpu.dot_dimension_numbers<[2], [1], [1], [2], [0, 0, 0, 1, 1, 2], [0], [0]>} : vector<4x4x12xf32>, vector<4x12x8xf32>, vector<4x4x8xf32> -> vector<4x4x8xf32>
    "tpu.trace_stop"() : () -> ()
    %208 = vector.extract_strided_slice %207 {offsets = [0, 0, 0], sizes = [1, 4, 8], strides = [1, 1, 1]} : vector<4x4x8xf32> to vector<1x4x8xf32>
    %209 = vector.shape_cast %208 : vector<1x4x8xf32> to vector<4x8xf32>
    %210 = vector.extract_strided_slice %207 {offsets = [1, 0, 0], sizes = [1, 4, 8], strides = [1, 1, 1]} : vector<4x4x8xf32> to vector<1x4x8xf32>
    %211 = vector.shape_cast %210 : vector<1x4x8xf32> to vector<4x8xf32>
    %212 = vector.extract_strided_slice %207 {offsets = [2, 0, 0], sizes = [1, 4, 8], strides = [1, 1, 1]} : vector<4x4x8xf32> to vector<1x4x8xf32>
    %213 = vector.shape_cast %212 : vector<1x4x8xf32> to vector<4x8xf32>
    %214 = vector.extract_strided_slice %207 {offsets = [3, 0, 0], sizes = [1, 4, 8], strides = [1, 1, 1]} : vector<4x4x8xf32> to vector<1x4x8xf32>
    %215 = vector.shape_cast %214 : vector<1x4x8xf32> to vector<4x8xf32>
    %216 = tpu.concatenate %209, %211, %213, %215 in 1 : vector<4x8xf32>, vector<4x8xf32>, vector<4x8xf32>, vector<4x8xf32> -> vector<4x32xf32>
    %217 = tpu.concatenate %152, %216 in 0 : vector<4x32xf32>, vector<4x32xf32> -> vector<8x32xf32>
    %c0_82 = arith.constant 0 : index
    %c0_83 = arith.constant 0 : index
    %c0_84 = arith.constant 0 : index
    %218 = vector.load %arg17[%c0_82, %c0_83, %c0_84] : memref<2x32x32xf32, #tpu.memory_space<vmem>>, vector<1x32x32xf32>
    %219 = vector.shape_cast %218 : vector<1x32x32xf32> to vector<32x32xf32>
    %cst_85 = arith.constant dense<0.000000e+00> : vector<8x32xf32>
    %220 = tpu.matmul %217, %219, %cst_85 {dimension_numbers = #tpu.dot_dimension_numbers<[1], [0], [0], [1], [0, 0, 1, 1], [], []>} : vector<8x32xf32>, vector<32x32xf32>, vector<8x32xf32> -> vector<8x32xf32>
    %221 = arith.addf %43, %220 : vector<8x32xf32>
    %c0_86 = arith.constant 0 : index
    %c0_87 = arith.constant 0 : index
    %c0_88 = arith.constant 0 : index
    %222 = vector.load %arg18[%c0_86, %c0_87, %c0_88] : memref<2x1x32xf32, #tpu.memory_space<vmem>>, vector<1x1x32xf32>
    %223 = vector.shape_cast %222 : vector<1x1x32xf32> to vector<1x32xf32>
    %224 = vector.broadcast %223 : vector<1x32xf32> to vector<8x32xf32>
    %225 = arith.addf %221, %224 : vector<8x32xf32>
    %c0_89 = arith.constant 0 : index
    %c0_90 = arith.constant 0 : index
    %c0_91 = arith.constant 0 : index
    %226 = vector.load %arg19[%c0_89, %c0_90, %c0_91] : memref<2x1x32xf32, #tpu.memory_space<vmem>>, vector<1x1x32xf32>
    %227 = vector.shape_cast %226 : vector<1x1x32xf32> to vector<1x32xf32>
    %c0_92 = arith.constant 0 : index
    %c0_93 = arith.constant 0 : index
    %c0_94 = arith.constant 0 : index
    %228 = vector.load %arg20[%c0_92, %c0_93, %c0_94] : memref<2x1x32xf32, #tpu.memory_space<vmem>>, vector<1x1x32xf32>
    %229 = vector.shape_cast %228 : vector<1x1x32xf32> to vector<1x32xf32>
    %cst_95 = arith.constant dense<0.000000e+00> : vector<8xf32>
    %230 = vector.multi_reduction <add>, %225, %cst_95 [1] : vector<8x32xf32> to vector<8xf32>
    %231 = vector.shape_cast %230 : vector<8xf32> to vector<8x1xf32>
    %cst_96 = arith.constant 3.200000e+01 : f32
    %232 = vector.broadcast %cst_96 : f32 to vector<8x1xf32>
    %233 = arith.divf %231, %232 : vector<8x1xf32>
    %234 = vector.broadcast %233 : vector<8x1xf32> to vector<8x32xf32>
    %235 = arith.subf %225, %234 : vector<8x32xf32>
    %236 = arith.mulf %235, %235 : vector<8x32xf32>
    %cst_97 = arith.constant dense<0.000000e+00> : vector<8xf32>
    %237 = vector.multi_reduction <add>, %236, %cst_97 [1] : vector<8x32xf32> to vector<8xf32>
    %238 = vector.shape_cast %237 : vector<8xf32> to vector<8x1xf32>
    %cst_98 = arith.constant 3.200000e+01 : f32
    %239 = vector.broadcast %cst_98 : f32 to vector<8x1xf32>
    %240 = arith.divf %238, %239 : vector<8x1xf32>
    %241 = vector.broadcast %233 : vector<8x1xf32> to vector<8x32xf32>
    %242 = arith.subf %225, %241 : vector<8x32xf32>
    %cst_99 = arith.constant 9.99999974E-6 : f32
    %243 = vector.broadcast %cst_99 : f32 to vector<8x1xf32>
    %244 = arith.addf %240, %243 : vector<8x1xf32>
    %245 = math.rsqrt %244 : vector<8x1xf32>
    %246 = vector.broadcast %245 : vector<8x1xf32> to vector<8x32xf32>
    %247 = arith.mulf %242, %246 : vector<8x32xf32>
    %248 = vector.broadcast %227 : vector<1x32xf32> to vector<8x32xf32>
    %249 = arith.mulf %247, %248 : vector<8x32xf32>
    %250 = vector.broadcast %229 : vector<1x32xf32> to vector<8x32xf32>
    %251 = arith.addf %249, %250 : vector<8x32xf32>
    %c0_100 = arith.constant 0 : index
    %c0_101 = arith.constant 0 : index
    %c0_102 = arith.constant 0 : index
    %252 = vector.load %arg21[%c0_100, %c0_101, %c0_102] : memref<2x32x64xf32, #tpu.memory_space<vmem>>, vector<1x32x64xf32>
    %253 = vector.shape_cast %252 : vector<1x32x64xf32> to vector<32x64xf32>
    %cst_103 = arith.constant dense<0.000000e+00> : vector<8x64xf32>
    %254 = tpu.matmul %251, %253, %cst_103 {dimension_numbers = #tpu.dot_dimension_numbers<[1], [0], [0], [1], [0, 0, 1, 1], [], []>} : vector<8x32xf32>, vector<32x64xf32>, vector<8x64xf32> -> vector<8x64xf32>
    %c0_104 = arith.constant 0 : index
    %c0_105 = arith.constant 0 : index
    %c0_106 = arith.constant 0 : index
    %255 = vector.load %arg22[%c0_104, %c0_105, %c0_106] : memref<2x1x64xf32, #tpu.memory_space<vmem>>, vector<1x1x64xf32>
    %256 = vector.shape_cast %255 : vector<1x1x64xf32> to vector<1x64xf32>
    %257 = vector.broadcast %256 : vector<1x64xf32> to vector<8x64xf32>
    %258 = arith.addf %254, %257 : vector<8x64xf32>
    %cst_107 = arith.constant 0.000000e+00 : f32
    %259 = vector.broadcast %cst_107 : f32 to vector<8x64xf32>
    %260 = arith.maximumf %258, %259 : vector<8x64xf32>
    %c0_108 = arith.constant 0 : index
    %c0_109 = arith.constant 0 : index
    %c0_110 = arith.constant 0 : index
    %261 = vector.load %arg23[%c0_108, %c0_109, %c0_110] : memref<2x64x32xf32, #tpu.memory_space<vmem>>, vector<1x64x32xf32>
    %262 = vector.shape_cast %261 : vector<1x64x32xf32> to vector<64x32xf32>
    %cst_111 = arith.constant dense<0.000000e+00> : vector<8x32xf32>
    %263 = tpu.matmul %260, %262, %cst_111 {dimension_numbers = #tpu.dot_dimension_numbers<[1], [0], [0], [1], [0, 0, 1, 1], [], []>} : vector<8x64xf32>, vector<64x32xf32>, vector<8x32xf32> -> vector<8x32xf32>
    %264 = arith.addf %225, %263 : vector<8x32xf32>
    %c0_112 = arith.constant 0 : index
    %c0_113 = arith.constant 0 : index
    %c0_114 = arith.constant 0 : index
    %265 = vector.load %arg24[%c0_112, %c0_113, %c0_114] : memref<2x1x32xf32, #tpu.memory_space<vmem>>, vector<1x1x32xf32>
    %266 = vector.shape_cast %265 : vector<1x1x32xf32> to vector<1x32xf32>
    %267 = vector.broadcast %266 : vector<1x32xf32> to vector<8x32xf32>
    %268 = arith.addf %264, %267 : vector<8x32xf32>
    %c1_115 = arith.constant 1 : index
    %c0_116 = arith.constant 0 : index
    %c0_117 = arith.constant 0 : index
    %269 = vector.load %arg13[%c1_115, %c0_116, %c0_117] : memref<2x1x32xf32, #tpu.memory_space<vmem>>, vector<1x1x32xf32>
    %270 = vector.shape_cast %269 : vector<1x1x32xf32> to vector<1x32xf32>
    %c1_118 = arith.constant 1 : index
    %c0_119 = arith.constant 0 : index
    %c0_120 = arith.constant 0 : index
    %271 = vector.load %arg14[%c1_118, %c0_119, %c0_120] : memref<2x1x32xf32, #tpu.memory_space<vmem>>, vector<1x1x32xf32>
    %272 = vector.shape_cast %271 : vector<1x1x32xf32> to vector<1x32xf32>
    %cst_121 = arith.constant dense<0.000000e+00> : vector<8xf32>
    %273 = vector.multi_reduction <add>, %268, %cst_121 [1] : vector<8x32xf32> to vector<8xf32>
    %274 = vector.shape_cast %273 : vector<8xf32> to vector<8x1xf32>
    %cst_122 = arith.constant 3.200000e+01 : f32
    %275 = vector.broadcast %cst_122 : f32 to vector<8x1xf32>
    %276 = arith.divf %274, %275 : vector<8x1xf32>
    %277 = vector.broadcast %276 : vector<8x1xf32> to vector<8x32xf32>
    %278 = arith.subf %268, %277 : vector<8x32xf32>
    %279 = arith.mulf %278, %278 : vector<8x32xf32>
    %cst_123 = arith.constant dense<0.000000e+00> : vector<8xf32>
    %280 = vector.multi_reduction <add>, %279, %cst_123 [1] : vector<8x32xf32> to vector<8xf32>
    %281 = vector.shape_cast %280 : vector<8xf32> to vector<8x1xf32>
    %cst_124 = arith.constant 3.200000e+01 : f32
    %282 = vector.broadcast %cst_124 : f32 to vector<8x1xf32>
    %283 = arith.divf %281, %282 : vector<8x1xf32>
    %284 = vector.broadcast %276 : vector<8x1xf32> to vector<8x32xf32>
    %285 = arith.subf %268, %284 : vector<8x32xf32>
    %cst_125 = arith.constant 9.99999974E-6 : f32
    %286 = vector.broadcast %cst_125 : f32 to vector<8x1xf32>
    %287 = arith.addf %283, %286 : vector<8x1xf32>
    %288 = math.rsqrt %287 : vector<8x1xf32>
    %289 = vector.broadcast %288 : vector<8x1xf32> to vector<8x32xf32>
    %290 = arith.mulf %285, %289 : vector<8x32xf32>
    %291 = vector.broadcast %270 : vector<1x32xf32> to vector<8x32xf32>
    %292 = arith.mulf %290, %291 : vector<8x32xf32>
    %293 = vector.broadcast %272 : vector<1x32xf32> to vector<8x32xf32>
    %294 = arith.addf %292, %293 : vector<8x32xf32>
    %c1_126 = arith.constant 1 : index
    %c0_127 = arith.constant 0 : index
    %c0_128 = arith.constant 0 : index
    %295 = vector.load %arg15[%c1_126, %c0_127, %c0_128] : memref<2x32x96xf32, #tpu.memory_space<vmem>>, vector<1x32x96xf32>
    %296 = vector.shape_cast %295 : vector<1x32x96xf32> to vector<32x96xf32>
    %cst_129 = arith.constant dense<0.000000e+00> : vector<8x96xf32>
    %297 = tpu.matmul %294, %296, %cst_129 {dimension_numbers = #tpu.dot_dimension_numbers<[1], [0], [0], [1], [0, 0, 1, 1], [], []>} : vector<8x32xf32>, vector<32x96xf32>, vector<8x96xf32> -> vector<8x96xf32>
    %c1_130 = arith.constant 1 : index
    %c0_131 = arith.constant 0 : index
    %c0_132 = arith.constant 0 : index
    %298 = vector.load %arg16[%c1_130, %c0_131, %c0_132] : memref<2x1x96xf32, #tpu.memory_space<vmem>>, vector<1x1x96xf32>
    %299 = vector.shape_cast %298 : vector<1x1x96xf32> to vector<1x96xf32>
    %300 = vector.broadcast %299 : vector<1x96xf32> to vector<8x96xf32>
    %301 = arith.addf %297, %300 : vector<8x96xf32>
    %302 = vector.extract_strided_slice %301 {offsets = [0, 0], sizes = [8, 32], strides = [1, 1]} : vector<8x96xf32> to vector<8x32xf32>
    %303 = vector.extract_strided_slice %301 {offsets = [0, 32], sizes = [8, 64], strides = [1, 1]} : vector<8x96xf32> to vector<8x64xf32>
    %c0_133 = arith.constant 0 : index
    %c1_134 = arith.constant 1 : index
    %c0_135 = arith.constant 0 : index
    %c0_136 = arith.constant 0 : index
    %304 = vector.load %arg12[%c0_133, %c1_134, %c0_135, %c0_136] : memref<2x2x8x64xf32, #tpu.memory_space<vmem>>, vector<1x1x8x64xf32>
    %305 = vector.shape_cast %304 : vector<1x1x8x64xf32> to vector<8x64xf32>
    %306 = vector.extract_strided_slice %303 {offsets = [0, 0], sizes = [4, 64], strides = [1, 1]} : vector<8x64xf32> to vector<4x64xf32>
    %307 = tpu.concatenate %305, %306 in 0 : vector<8x64xf32>, vector<4x64xf32> -> vector<12x64xf32>
    %308 = vector.extract_strided_slice %307 {offsets = [4, 0], sizes = [8, 64], strides = [1, 1]} : vector<12x64xf32> to vector<8x64xf32>
    %c0_137 = arith.constant 0 : index
    %c1_138 = arith.constant 1 : index
    %c0_139 = arith.constant 0 : index
    %c0_140 = arith.constant 0 : index
    %309 = vector.load %arg30[%c0_137, %c1_138, %c0_139, %c0_140] : memref<2x2x8x64xf32, #tpu.memory_space<vmem>>, vector<1x1x8x64xf32>
    %310 = vector.shape_cast %309 : vector<1x1x8x64xf32> to vector<8x64xf32>
    %311 = vector.shape_cast %308 : vector<8x64xf32> to vector<1x1x8x64xf32>
    tpu.vector_store %arg30[%c0_137, %c1_138, %c0_139, %c0_140], %311 {strides = array<i32>} : memref<2x2x8x64xf32, #tpu.memory_space<vmem>>, vector<1x1x8x64xf32>,
    %312 = vector.extract_strided_slice %302 {offsets = [0, 0], sizes = [4, 8], strides = [1, 1]} : vector<8x32xf32> to vector<4x8xf32>
    %313 = vector.extract_strided_slice %302 {offsets = [0, 8], sizes = [4, 8], strides = [1, 1]} : vector<8x32xf32> to vector<4x8xf32>
    %314 = vector.extract_strided_slice %302 {offsets = [0, 16], sizes = [4, 8], strides = [1, 1]} : vector<8x32xf32> to vector<4x8xf32>
    %315 = vector.extract_strided_slice %302 {offsets = [0, 24], sizes = [4, 8], strides = [1, 1]} : vector<8x32xf32> to vector<4x8xf32>
    %316 = vector.shape_cast %312 : vector<4x8xf32> to vector<1x4x8xf32>
    %317 = vector.shape_cast %313 : vector<4x8xf32> to vector<1x4x8xf32>
    %318 = vector.shape_cast %314 : vector<4x8xf32> to vector<1x4x8xf32>
    %319 = vector.shape_cast %315 : vector<4x8xf32> to vector<1x4x8xf32>
    %320 = tpu.concatenate %316, %317, %318, %319 in 0 : vector<1x4x8xf32>, vector<1x4x8xf32>, vector<1x4x8xf32>, vector<1x4x8xf32> -> vector<4x4x8xf32>
    %321 = vector.extract_strided_slice %307 {offsets = [0, 0], sizes = [12, 8], strides = [1, 1]} : vector<12x64xf32> to vector<12x8xf32>
    %322 = vector.extract_strided_slice %307 {offsets = [0, 8], sizes = [12, 8], strides = [1, 1]} : vector<12x64xf32> to vector<12x8xf32>
    %323 = vector.extract_strided_slice %307 {offsets = [0, 16], sizes = [12, 8], strides = [1, 1]} : vector<12x64xf32> to vector<12x8xf32>
    %324 = vector.extract_strided_slice %307 {offsets = [0, 24], sizes = [12, 8], strides = [1, 1]} : vector<12x64xf32> to vector<12x8xf32>
    %325 = vector.shape_cast %321 : vector<12x8xf32> to vector<1x12x8xf32>
    %326 = vector.shape_cast %322 : vector<12x8xf32> to vector<1x12x8xf32>
    %327 = vector.shape_cast %323 : vector<12x8xf32> to vector<1x12x8xf32>
    %328 = vector.shape_cast %324 : vector<12x8xf32> to vector<1x12x8xf32>
    %329 = tpu.concatenate %325, %326, %327, %328 in 0 : vector<1x12x8xf32>, vector<1x12x8xf32>, vector<1x12x8xf32>, vector<1x12x8xf32> -> vector<4x12x8xf32>
    %330 = vector.extract_strided_slice %307 {offsets = [0, 32], sizes = [12, 8], strides = [1, 1]} : vector<12x64xf32> to vector<12x8xf32>
    %331 = vector.extract_strided_slice %307 {offsets = [0, 40], sizes = [12, 8], strides = [1, 1]} : vector<12x64xf32> to vector<12x8xf32>
    %332 = vector.extract_strided_slice %307 {offsets = [0, 48], sizes = [12, 8], strides = [1, 1]} : vector<12x64xf32> to vector<12x8xf32>
    %333 = vector.extract_strided_slice %307 {offsets = [0, 56], sizes = [12, 8], strides = [1, 1]} : vector<12x64xf32> to vector<12x8xf32>
    %334 = vector.shape_cast %330 : vector<12x8xf32> to vector<1x12x8xf32>
    %335 = vector.shape_cast %331 : vector<12x8xf32> to vector<1x12x8xf32>
    %336 = vector.shape_cast %332 : vector<12x8xf32> to vector<1x12x8xf32>
    %337 = vector.shape_cast %333 : vector<12x8xf32> to vector<1x12x8xf32>
    %338 = tpu.concatenate %334, %335, %336, %337 in 0 : vector<1x12x8xf32>, vector<1x12x8xf32>, vector<1x12x8xf32>, vector<1x12x8xf32> -> vector<4x12x8xf32>
    "tpu.trace_start"() <{level = 10 : i32, message = "hqd,hkd->hqk"}> : () -> ()
    %cst_141 = arith.constant dense<0.000000e+00> : vector<4x4x12xf32>
    %339 = tpu.matmul %320, %329, %cst_141 {dimension_numbers = #tpu.dot_dimension_numbers<[2], [2], [1], [1], [0, 0, 0, 1, 1, 1], [0], [0]>} : vector<4x4x8xf32>, vector<4x12x8xf32>, vector<4x4x12xf32> -> vector<4x4x12xf32>
    "tpu.trace_stop"() : () -> ()
    %cst_142 = arith.constant 0.353553385 : f32
    %340 = vector.broadcast %cst_142 : f32 to vector<4x4x12xf32>
    %341 = arith.mulf %339, %340 : vector<4x4x12xf32>
    %cst_143 = arith.constant -1.000000e+30 : f32
    %342 = vector.shape_cast %48 : vector<1x1x12xi1> to vector<1x1x12xi1>
    %343 = vector.broadcast %342 : vector<1x1x12xi1> to vector<4x4x12xi1>
    %344 = vector.broadcast %cst_143 : f32 to vector<4x4x12xf32>
    %345 = arith.select %343, %341, %344 : vector<4x4x12xi1>, vector<4x4x12xf32>
    %cst_144 = arith.constant dense<0xFF800000> : vector<4x4xf32>
    %346 = vector.multi_reduction <maximumf>, %345, %cst_144 [2] : vector<4x4x12xf32> to vector<4x4xf32>
    %347 = vector.shape_cast %346 : vector<4x4xf32> to vector<4x4x1xf32>
    %348 = vector.broadcast %347 : vector<4x4x1xf32> to vector<4x4x12xf32>
    %349 = arith.subf %345, %348 : vector<4x4x12xf32>
    %350 = math.exp %349 : vector<4x4x12xf32>
    %cst_145 = arith.constant dense<0.000000e+00> : vector<4x4xf32>
    %351 = vector.multi_reduction <add>, %350, %cst_145 [2] : vector<4x4x12xf32> to vector<4x4xf32>
    %352 = vector.shape_cast %351 : vector<4x4xf32> to vector<4x4x1xf32>
    %cst_146 = arith.constant 1.000000e-30 : f32
    %353 = vector.broadcast %cst_146 : f32 to vector<4x4x1xf32>
    %354 = arith.maximumf %352, %353 : vector<4x4x1xf32>
    %355 = tpu.reciprocal %354 {approx = true} : vector<4x4x1xf32> -> vector<4x4x1xf32>
    %356 = vector.broadcast %355 : vector<4x4x1xf32> to vector<4x4x12xf32>
    %357 = arith.mulf %350, %356 : vector<4x4x12xf32>
    "tpu.trace_start"() <{level = 10 : i32, message = "hqk,hkd->hqd"}> : () -> ()
    %cst_147 = arith.constant dense<0.000000e+00> : vector<4x4x8xf32>
    %358 = tpu.matmul %357, %338, %cst_147 {dimension_numbers = #tpu.dot_dimension_numbers<[2], [1], [1], [2], [0, 0, 0, 1, 1, 2], [0], [0]>} : vector<4x4x12xf32>, vector<4x12x8xf32>, vector<4x4x8xf32> -> vector<4x4x8xf32>
    "tpu.trace_stop"() : () -> ()
    %359 = vector.extract_strided_slice %358 {offsets = [0, 0, 0], sizes = [1, 4, 8], strides = [1, 1, 1]} : vector<4x4x8xf32> to vector<1x4x8xf32>
    %360 = vector.shape_cast %359 : vector<1x4x8xf32> to vector<4x8xf32>
    %361 = vector.extract_strided_slice %358 {offsets = [1, 0, 0], sizes = [1, 4, 8], strides = [1, 1, 1]} : vector<4x4x8xf32> to vector<1x4x8xf32>
    %362 = vector.shape_cast %361 : vector<1x4x8xf32> to vector<4x8xf32>
    %363 = vector.extract_strided_slice %358 {offsets = [2, 0, 0], sizes = [1, 4, 8], strides = [1, 1, 1]} : vector<4x4x8xf32> to vector<1x4x8xf32>
    %364 = vector.shape_cast %363 : vector<1x4x8xf32> to vector<4x8xf32>
    %365 = vector.extract_strided_slice %358 {offsets = [3, 0, 0], sizes = [1, 4, 8], strides = [1, 1, 1]} : vector<4x4x8xf32> to vector<1x4x8xf32>
    %366 = vector.shape_cast %365 : vector<1x4x8xf32> to vector<4x8xf32>
    %367 = tpu.concatenate %360, %362, %364, %366 in 1 : vector<4x8xf32>, vector<4x8xf32>, vector<4x8xf32>, vector<4x8xf32> -> vector<4x32xf32>
    %c1_148 = arith.constant 1 : index
    %c1_149 = arith.constant 1 : index
    %c0_150 = arith.constant 0 : index
    %c0_151 = arith.constant 0 : index
    %368 = vector.load %arg12[%c1_148, %c1_149, %c0_150, %c0_151] : memref<2x2x8x64xf32, #tpu.memory_space<vmem>>, vector<1x1x8x64xf32>
    %369 = vector.shape_cast %368 : vector<1x1x8x64xf32> to vector<8x64xf32>
    %370 = vector.extract_strided_slice %303 {offsets = [4, 0], sizes = [4, 64], strides = [1, 1]} : vector<8x64xf32> to vector<4x64xf32>
    %371 = tpu.concatenate %369, %370 in 0 : vector<8x64xf32>, vector<4x64xf32> -> vector<12x64xf32>
    %372 = vector.extract_strided_slice %371 {offsets = [4, 0], sizes = [8, 64], strides = [1, 1]} : vector<12x64xf32> to vector<8x64xf32>
    %c1_152 = arith.constant 1 : index
    %c1_153 = arith.constant 1 : index
    %c0_154 = arith.constant 0 : index
    %c0_155 = arith.constant 0 : index
    %373 = vector.load %arg30[%c1_152, %c1_153, %c0_154, %c0_155] : memref<2x2x8x64xf32, #tpu.memory_space<vmem>>, vector<1x1x8x64xf32>
    %374 = vector.shape_cast %373 : vector<1x1x8x64xf32> to vector<8x64xf32>
    %375 = vector.shape_cast %372 : vector<8x64xf32> to vector<1x1x8x64xf32>
    tpu.vector_store %arg30[%c1_152, %c1_153, %c0_154, %c0_155], %375 {strides = array<i32>} : memref<2x2x8x64xf32, #tpu.memory_space<vmem>>, vector<1x1x8x64xf32>,
    %376 = vector.extract_strided_slice %302 {offsets = [4, 0], sizes = [4, 8], strides = [1, 1]} : vector<8x32xf32> to vector<4x8xf32>
    %377 = vector.extract_strided_slice %302 {offsets = [4, 8], sizes = [4, 8], strides = [1, 1]} : vector<8x32xf32> to vector<4x8xf32>
    %378 = vector.extract_strided_slice %302 {offsets = [4, 16], sizes = [4, 8], strides = [1, 1]} : vector<8x32xf32> to vector<4x8xf32>
    %379 = vector.extract_strided_slice %302 {offsets = [4, 24], sizes = [4, 8], strides = [1, 1]} : vector<8x32xf32> to vector<4x8xf32>
    %380 = vector.shape_cast %376 : vector<4x8xf32> to vector<1x4x8xf32>
    %381 = vector.shape_cast %377 : vector<4x8xf32> to vector<1x4x8xf32>
    %382 = vector.shape_cast %378 : vector<4x8xf32> to vector<1x4x8xf32>
    %383 = vector.shape_cast %379 : vector<4x8xf32> to vector<1x4x8xf32>
    %384 = tpu.concatenate %380, %381, %382, %383 in 0 : vector<1x4x8xf32>, vector<1x4x8xf32>, vector<1x4x8xf32>, vector<1x4x8xf32> -> vector<4x4x8xf32>
    %385 = vector.extract_strided_slice %371 {offsets = [0, 0], sizes = [12, 8], strides = [1, 1]} : vector<12x64xf32> to vector<12x8xf32>
    %386 = vector.extract_strided_slice %371 {offsets = [0, 8], sizes = [12, 8], strides = [1, 1]} : vector<12x64xf32> to vector<12x8xf32>
    %387 = vector.extract_strided_slice %371 {offsets = [0, 16], sizes = [12, 8], strides = [1, 1]} : vector<12x64xf32> to vector<12x8xf32>
    %388 = vector.extract_strided_slice %371 {offsets = [0, 24], sizes = [12, 8], strides = [1, 1]} : vector<12x64xf32> to vector<12x8xf32>
    %389 = vector.shape_cast %385 : vector<12x8xf32> to vector<1x12x8xf32>
    %390 = vector.shape_cast %386 : vector<12x8xf32> to vector<1x12x8xf32>
    %391 = vector.shape_cast %387 : vector<12x8xf32> to vector<1x12x8xf32>
    %392 = vector.shape_cast %388 : vector<12x8xf32> to vector<1x12x8xf32>
    %393 = tpu.concatenate %389, %390, %391, %392 in 0 : vector<1x12x8xf32>, vector<1x12x8xf32>, vector<1x12x8xf32>, vector<1x12x8xf32> -> vector<4x12x8xf32>
    %394 = vector.extract_strided_slice %371 {offsets = [0, 32], sizes = [12, 8], strides = [1, 1]} : vector<12x64xf32> to vector<12x8xf32>
    %395 = vector.extract_strided_slice %371 {offsets = [0, 40], sizes = [12, 8], strides = [1, 1]} : vector<12x64xf32> to vector<12x8xf32>
    %396 = vector.extract_strided_slice %371 {offsets = [0, 48], sizes = [12, 8], strides = [1, 1]} : vector<12x64xf32> to vector<12x8xf32>
    %397 = vector.extract_strided_slice %371 {offsets = [0, 56], sizes = [12, 8], strides = [1, 1]} : vector<12x64xf32> to vector<12x8xf32>
    %398 = vector.shape_cast %394 : vector<12x8xf32> to vector<1x12x8xf32>
    %399 = vector.shape_cast %395 : vector<12x8xf32> to vector<1x12x8xf32>
    %400 = vector.shape_cast %396 : vector<12x8xf32> to vector<1x12x8xf32>
    %401 = vector.shape_cast %397 : vector<12x8xf32> to vector<1x12x8xf32>
    %402 = tpu.concatenate %398, %399, %400, %401 in 0 : vector<1x12x8xf32>, vector<1x12x8xf32>, vector<1x12x8xf32>, vector<1x12x8xf32> -> vector<4x12x8xf32>
    "tpu.trace_start"() <{level = 10 : i32, message = "hqd,hkd->hqk"}> : () -> ()
    %cst_156 = arith.constant dense<0.000000e+00> : vector<4x4x12xf32>
    %403 = tpu.matmul %384, %393, %cst_156 {dimension_numbers = #tpu.dot_dimension_numbers<[2], [2], [1], [1], [0, 0, 0, 1, 1, 1], [0], [0]>} : vector<4x4x8xf32>, vector<4x12x8xf32>, vector<4x4x12xf32> -> vector<4x4x12xf32>
    "tpu.trace_stop"() : () -> ()
    %cst_157 = arith.constant 0.353553385 : f32
    %404 = vector.broadcast %cst_157 : f32 to vector<4x4x12xf32>
    %405 = arith.mulf %403, %404 : vector<4x4x12xf32>
    %cst_158 = arith.constant -1.000000e+30 : f32
    %406 = vector.shape_cast %53 : vector<1x1x12xi1> to vector<1x1x12xi1>
    %407 = vector.broadcast %406 : vector<1x1x12xi1> to vector<4x4x12xi1>
    %408 = vector.broadcast %cst_158 : f32 to vector<4x4x12xf32>
    %409 = arith.select %407, %405, %408 : vector<4x4x12xi1>, vector<4x4x12xf32>
    %cst_159 = arith.constant dense<0xFF800000> : vector<4x4xf32>
    %410 = vector.multi_reduction <maximumf>, %409, %cst_159 [2] : vector<4x4x12xf32> to vector<4x4xf32>
    %411 = vector.shape_cast %410 : vector<4x4xf32> to vector<4x4x1xf32>
    %412 = vector.broadcast %411 : vector<4x4x1xf32> to vector<4x4x12xf32>
    %413 = arith.subf %409, %412 : vector<4x4x12xf32>
    %414 = math.exp %413 : vector<4x4x12xf32>
    %cst_160 = arith.constant dense<0.000000e+00> : vector<4x4xf32>
    %415 = vector.multi_reduction <add>, %414, %cst_160 [2] : vector<4x4x12xf32> to vector<4x4xf32>
    %416 = vector.shape_cast %415 : vector<4x4xf32> to vector<4x4x1xf32>
    %cst_161 = arith.constant 1.000000e-30 : f32
    %417 = vector.broadcast %cst_161 : f32 to vector<4x4x1xf32>
    %418 = arith.maximumf %416, %417 : vector<4x4x1xf32>
    %419 = tpu.reciprocal %418 {approx = true} : vector<4x4x1xf32> -> vector<4x4x1xf32>
    %420 = vector.broadcast %419 : vector<4x4x1xf32> to vector<4x4x12xf32>
    %421 = arith.mulf %414, %420 : vector<4x4x12xf32>
    "tpu.trace_start"() <{level = 10 : i32, message = "hqk,hkd->hqd"}> : () -> ()
    %cst_162 = arith.constant dense<0.000000e+00> : vector<4x4x8xf32>
    %422 = tpu.matmul %421, %402, %cst_162 {dimension_numbers = #tpu.dot_dimension_numbers<[2], [1], [1], [2], [0, 0, 0, 1, 1, 2], [0], [0]>} : vector<4x4x12xf32>, vector<4x12x8xf32>, vector<4x4x8xf32> -> vector<4x4x8xf32>
    "tpu.trace_stop"() : () -> ()
    %423 = vector.extract_strided_slice %422 {offsets = [0, 0, 0], sizes = [1, 4, 8], strides = [1, 1, 1]} : vector<4x4x8xf32> to vector<1x4x8xf32>
    %424 = vector.shape_cast %423 : vector<1x4x8xf32> to vector<4x8xf32>
    %425 = vector.extract_strided_slice %422 {offsets = [1, 0, 0], sizes = [1, 4, 8], strides = [1, 1, 1]} : vector<4x4x8xf32> to vector<1x4x8xf32>
    %426 = vector.shape_cast %425 : vector<1x4x8xf32> to vector<4x8xf32>
    %427 = vector.extract_strided_slice %422 {offsets = [2, 0, 0], sizes = [1, 4, 8], strides = [1, 1, 1]} : vector<4x4x8xf32> to vector<1x4x8xf32>
    %428 = vector.shape_cast %427 : vector<1x4x8xf32> to vector<4x8xf32>
    %429 = vector.extract_strided_slice %422 {offsets = [3, 0, 0], sizes = [1, 4, 8], strides = [1, 1, 1]} : vector<4x4x8xf32> to vector<1x4x8xf32>
    %430 = vector.shape_cast %429 : vector<1x4x8xf32> to vector<4x8xf32>
    %431 = tpu.concatenate %424, %426, %428, %430 in 1 : vector<4x8xf32>, vector<4x8xf32>, vector<4x8xf32>, vector<4x8xf32> -> vector<4x32xf32>
    %432 = tpu.concatenate %367, %431 in 0 : vector<4x32xf32>, vector<4x32xf32> -> vector<8x32xf32>
    %c1_163 = arith.constant 1 : index
    %c0_164 = arith.constant 0 : index
    %c0_165 = arith.constant 0 : index
    %433 = vector.load %arg17[%c1_163, %c0_164, %c0_165] : memref<2x32x32xf32, #tpu.memory_space<vmem>>, vector<1x32x32xf32>
    %434 = vector.shape_cast %433 : vector<1x32x32xf32> to vector<32x32xf32>
    %cst_166 = arith.constant dense<0.000000e+00> : vector<8x32xf32>
    %435 = tpu.matmul %432, %434, %cst_166 {dimension_numbers = #tpu.dot_dimension_numbers<[1], [0], [0], [1], [0, 0, 1, 1], [], []>} : vector<8x32xf32>, vector<32x32xf32>, vector<8x32xf32> -> vector<8x32xf32>
    %436 = arith.addf %268, %435 : vector<8x32xf32>
    %c1_167 = arith.constant 1 : index
    %c0_168 = arith.constant 0 : index
    %c0_169 = arith.constant 0 : index
    %437 = vector.load %arg18[%c1_167, %c0_168, %c0_169] : memref<2x1x32xf32, #tpu.memory_space<vmem>>, vector<1x1x32xf32>
    %438 = vector.shape_cast %437 : vector<1x1x32xf32> to vector<1x32xf32>
    %439 = vector.broadcast %438 : vector<1x32xf32> to vector<8x32xf32>
    %440 = arith.addf %436, %439 : vector<8x32xf32>
    %c1_170 = arith.constant 1 : index
    %c0_171 = arith.constant 0 : index
    %c0_172 = arith.constant 0 : index
    %441 = vector.load %arg19[%c1_170, %c0_171, %c0_172] : memref<2x1x32xf32, #tpu.memory_space<vmem>>, vector<1x1x32xf32>
    %442 = vector.shape_cast %441 : vector<1x1x32xf32> to vector<1x32xf32>
    %c1_173 = arith.constant 1 : index
    %c0_174 = arith.constant 0 : index
    %c0_175 = arith.constant 0 : index
    %443 = vector.load %arg20[%c1_173, %c0_174, %c0_175] : memref<2x1x32xf32, #tpu.memory_space<vmem>>, vector<1x1x32xf32>
    %444 = vector.shape_cast %443 : vector<1x1x32xf32> to vector<1x32xf32>
    %cst_176 = arith.constant dense<0.000000e+00> : vector<8xf32>
    %445 = vector.multi_reduction <add>, %440, %cst_176 [1] : vector<8x32xf32> to vector<8xf32>
    %446 = vector.shape_cast %445 : vector<8xf32> to vector<8x1xf32>
    %cst_177 = arith.constant 3.200000e+01 : f32
    %447 = vector.broadcast %cst_177 : f32 to vector<8x1xf32>
    %448 = arith.divf %446, %447 : vector<8x1xf32>
    %449 = vector.broadcast %448 : vector<8x1xf32> to vector<8x32xf32>
    %450 = arith.subf %440, %449 : vector<8x32xf32>
    %451 = arith.mulf %450, %450 : vector<8x32xf32>
    %cst_178 = arith.constant dense<0.000000e+00> : vector<8xf32>
    %452 = vector.multi_reduction <add>, %451, %cst_178 [1] : vector<8x32xf32> to vector<8xf32>
    %453 = vector.shape_cast %452 : vector<8xf32> to vector<8x1xf32>
    %cst_179 = arith.constant 3.200000e+01 : f32
    %454 = vector.broadcast %cst_179 : f32 to vector<8x1xf32>
    %455 = arith.divf %453, %454 : vector<8x1xf32>
    %456 = vector.broadcast %448 : vector<8x1xf32> to vector<8x32xf32>
    %457 = arith.subf %440, %456 : vector<8x32xf32>
    %cst_180 = arith.constant 9.99999974E-6 : f32
    %458 = vector.broadcast %cst_180 : f32 to vector<8x1xf32>
    %459 = arith.addf %455, %458 : vector<8x1xf32>
    %460 = math.rsqrt %459 : vector<8x1xf32>
    %461 = vector.broadcast %460 : vector<8x1xf32> to vector<8x32xf32>
    %462 = arith.mulf %457, %461 : vector<8x32xf32>
    %463 = vector.broadcast %442 : vector<1x32xf32> to vector<8x32xf32>
    %464 = arith.mulf %462, %463 : vector<8x32xf32>
    %465 = vector.broadcast %444 : vector<1x32xf32> to vector<8x32xf32>
    %466 = arith.addf %464, %465 : vector<8x32xf32>
    %c1_181 = arith.constant 1 : index
    %c0_182 = arith.constant 0 : index
    %c0_183 = arith.constant 0 : index
    %467 = vector.load %arg21[%c1_181, %c0_182, %c0_183] : memref<2x32x64xf32, #tpu.memory_space<vmem>>, vector<1x32x64xf32>
    %468 = vector.shape_cast %467 : vector<1x32x64xf32> to vector<32x64xf32>
    %cst_184 = arith.constant dense<0.000000e+00> : vector<8x64xf32>
    %469 = tpu.matmul %466, %468, %cst_184 {dimension_numbers = #tpu.dot_dimension_numbers<[1], [0], [0], [1], [0, 0, 1, 1], [], []>} : vector<8x32xf32>, vector<32x64xf32>, vector<8x64xf32> -> vector<8x64xf32>
    %c1_185 = arith.constant 1 : index
    %c0_186 = arith.constant 0 : index
    %c0_187 = arith.constant 0 : index
    %470 = vector.load %arg22[%c1_185, %c0_186, %c0_187] : memref<2x1x64xf32, #tpu.memory_space<vmem>>, vector<1x1x64xf32>
    %471 = vector.shape_cast %470 : vector<1x1x64xf32> to vector<1x64xf32>
    %472 = vector.broadcast %471 : vector<1x64xf32> to vector<8x64xf32>
    %473 = arith.addf %469, %472 : vector<8x64xf32>
    %cst_188 = arith.constant 0.000000e+00 : f32
    %474 = vector.broadcast %cst_188 : f32 to vector<8x64xf32>
    %475 = arith.maximumf %473, %474 : vector<8x64xf32>
    %c1_189 = arith.constant 1 : index
    %c0_190 = arith.constant 0 : index
    %c0_191 = arith.constant 0 : index
    %476 = vector.load %arg23[%c1_189, %c0_190, %c0_191] : memref<2x64x32xf32, #tpu.memory_space<vmem>>, vector<1x64x32xf32>
    %477 = vector.shape_cast %476 : vector<1x64x32xf32> to vector<64x32xf32>
    %cst_192 = arith.constant dense<0.000000e+00> : vector<8x32xf32>
    %478 = tpu.matmul %475, %477, %cst_192 {dimension_numbers = #tpu.dot_dimension_numbers<[1], [0], [0], [1], [0, 0, 1, 1], [], []>} : vector<8x64xf32>, vector<64x32xf32>, vector<8x32xf32> -> vector<8x32xf32>
    %479 = arith.addf %440, %478 : vector<8x32xf32>
    %c1_193 = arith.constant 1 : index
    %c0_194 = arith.constant 0 : index
    %c0_195 = arith.constant 0 : index
    %480 = vector.load %arg24[%c1_193, %c0_194, %c0_195] : memref<2x1x32xf32, #tpu.memory_space<vmem>>, vector<1x1x32xf32>
    %481 = vector.shape_cast %480 : vector<1x1x32xf32> to vector<1x32xf32>
    %482 = vector.broadcast %481 : vector<1x32xf32> to vector<8x32xf32>
    %483 = arith.addf %479, %482 : vector<8x32xf32>
    %c0_196 = arith.constant 0 : index
    %c0_197 = arith.constant 0 : index
    %484 = vector.load %arg25[%c0_196, %c0_197] : memref<1x32xf32, #tpu.memory_space<vmem>>, vector<1x32xf32>
    %c0_198 = arith.constant 0 : index
    %c0_199 = arith.constant 0 : index
    %485 = vector.load %arg26[%c0_198, %c0_199] : memref<1x32xf32, #tpu.memory_space<vmem>>, vector<1x32xf32>
    %cst_200 = arith.constant dense<0.000000e+00> : vector<8xf32>
    %486 = vector.multi_reduction <add>, %483, %cst_200 [1] : vector<8x32xf32> to vector<8xf32>
    %487 = vector.shape_cast %486 : vector<8xf32> to vector<8x1xf32>
    %cst_201 = arith.constant 3.200000e+01 : f32
    %488 = vector.broadcast %cst_201 : f32 to vector<8x1xf32>
    %489 = arith.divf %487, %488 : vector<8x1xf32>
    %490 = vector.broadcast %489 : vector<8x1xf32> to vector<8x32xf32>
    %491 = arith.subf %483, %490 : vector<8x32xf32>
    %492 = arith.mulf %491, %491 : vector<8x32xf32>
    %cst_202 = arith.constant dense<0.000000e+00> : vector<8xf32>
    %493 = vector.multi_reduction <add>, %492, %cst_202 [1] : vector<8x32xf32> to vector<8xf32>
    %494 = vector.shape_cast %493 : vector<8xf32> to vector<8x1xf32>
    %cst_203 = arith.constant 3.200000e+01 : f32
    %495 = vector.broadcast %cst_203 : f32 to vector<8x1xf32>
    %496 = arith.divf %494, %495 : vector<8x1xf32>
    %497 = vector.broadcast %489 : vector<8x1xf32> to vector<8x32xf32>
    %498 = arith.subf %483, %497 : vector<8x32xf32>
    %cst_204 = arith.constant 9.99999974E-6 : f32
    %499 = vector.broadcast %cst_204 : f32 to vector<8x1xf32>
    %500 = arith.addf %496, %499 : vector<8x1xf32>
    %501 = math.rsqrt %500 : vector<8x1xf32>
    %502 = vector.broadcast %501 : vector<8x1xf32> to vector<8x32xf32>
    %503 = arith.mulf %498, %502 : vector<8x32xf32>
    %504 = vector.broadcast %484 : vector<1x32xf32> to vector<8x32xf32>
    %505 = arith.mulf %503, %504 : vector<8x32xf32>
    %506 = vector.broadcast %485 : vector<1x32xf32> to vector<8x32xf32>
    %507 = arith.addf %505, %506 : vector<8x32xf32>
    %c0_205 = arith.constant 0 : index
    %c0_206 = arith.constant 0 : index
    %508 = vector.load %arg29[%c0_205, %c0_206] : memref<8x32xf32, #tpu.memory_space<vmem>>, vector<8x32xf32>
    tpu.vector_store %arg29[%c0_205, %c0_206], %507 {strides = array<i32>} : memref<8x32xf32, #tpu.memory_space<vmem>>, vector<8x32xf32>,
    %c0_207 = arith.constant 0 : index
    %c0_208 = arith.constant 0 : index
    %509 = vector.load %arg27[%c0_207, %c0_208] : memref<32x128xf32, #tpu.memory_space<vmem>>, vector<32x128xf32>
    %cst_209 = arith.constant dense<0.000000e+00> : vector<8x128xf32>
    %510 = tpu.matmul %507, %509, %cst_209 {dimension_numbers = #tpu.dot_dimension_numbers<[1], [0], [0], [1], [0, 0, 1, 1], [], []>} : vector<8x32xf32>, vector<32x128xf32>, vector<8x128xf32> -> vector<8x128xf32>
    %c0_210 = arith.constant 0 : index
    %c0_211 = arith.constant 0 : index
    %511 = vector.load %arg28[%c0_210, %c0_211] : memref<1x128xf32, #tpu.memory_space<vmem>>, vector<1x128xf32>
    %512 = vector.broadcast %511 : vector<1x128xf32> to vector<8x128xf32>
    %513 = arith.addf %510, %512 : vector<8x128xf32>
    %cst_212 = arith.constant dense<0xFF800000> : vector<8xf32>
    %514 = vector.multi_reduction <maximumf>, %513, %cst_212 [1] : vector<8x128xf32> to vector<8xf32>
    %515 = vector.shape_cast %514 : vector<8xf32> to vector<8x1xf32>
    %516 = vector.broadcast %515 : vector<8x1xf32> to vector<8x128xf32>
    %517 = arith.subf %513, %516 : vector<8x128xf32>
    %518 = math.exp %517 : vector<8x128xf32>
    %cst_213 = arith.constant dense<0.000000e+00> : vector<8xf32>
    %519 = vector.multi_reduction <add>, %518, %cst_213 [1] : vector<8x128xf32> to vector<8xf32>
    %520 = vector.shape_cast %519 : vector<8xf32> to vector<8x1xf32>
    %521 = math.log %520 : vector<8x1xf32>
    %522 = vector.broadcast %521 : vector<8x1xf32> to vector<8x128xf32>
    %523 = arith.subf %517, %522 : vector<8x128xf32>
    %c0_214 = arith.constant 0 : index
    %c0_215 = arith.constant 0 : index
    %524 = vector.load %arg31[%c0_214, %c0_215] : memref<8x128xf32, #tpu.memory_space<vmem>>, vector<8x128xf32>
    tpu.vector_store %arg31[%c0_214, %c0_215], %523 {strides = array<i32>} : memref<8x128xf32, #tpu.memory_space<vmem>>, vector<8x128xf32>,
    return
  }
}

</mosaic_0001>

<llo_original>
// kernel: streaming_encoder_forward.1
$region0: #{streaming_encoder_forward.1}
  #allocation0 [shape = 'u32[]', space=smem, size = 0x4, offset = 0x4, fixed_abs, tag = 'smem constant byte address 0x4 - core index']
  #allocation1 [shape = 'u32[144,128]{1,0:T(1,128)}', space=vmem, size = 0x12000, scoped, tag = 'internal scratch']
  %s0 = inlined_call_operand.smem [shape: u32[32], index: -1, kind: input, shape index: {}]
  %s1 = sld [smem:[%s0]]
  %s2 = scalar_lea.smem %s0, 1
  %s3 = sld [smem:[%s2]]
  %s4 = scalar_lea.smem %s0, 2
  %s5 = sld [smem:[%s4]]
  %s6 = scalar_lea.smem %s0, 3
  %s7 = sld [smem:[%s6]]
  %s8 = scalar_lea.smem %s0, 4
  %s9 = sld [smem:[%s8]]
  %s10 = scalar_lea.smem %s0, 5
  %s11 = sld [smem:[%s10]]
  %s12 = scalar_lea.smem %s0, 6
  %s13 = sld [smem:[%s12]]
  %s14 = scalar_lea.smem %s0, 7
  %s15 = sld [smem:[%s14]]
  %s16 = scalar_lea.smem %s0, 8
  %s17 = sld [smem:[%s16]]
  %s18 = scalar_lea.smem %s0, 9
  %s19 = sld [smem:[%s18]]
  %s20 = scalar_lea.smem %s0, 10
  %s21 = sld [smem:[%s20]]
  %s22 = scalar_lea.smem %s0, 11
  %s23 = sld [smem:[%s22]]
  %s24 = scalar_lea.smem %s0, 12
  %s25 = sld [smem:[%s24]]
  %s26 = scalar_lea.smem %s0, 13
  %s27 = sld [smem:[%s26]]
  %s28 = scalar_lea.smem %s0, 14
  %s29 = sld [smem:[%s28]]
  %s30 = scalar_lea.smem %s0, 15
  %s31 = sld [smem:[%s30]]
  %s32 = scalar_lea.smem %s0, 16
  %s33 = sld [smem:[%s32]]
  %s34 = scalar_lea.smem %s0, 17
  %s35 = sld [smem:[%s34]]
  %s36 = scalar_lea.smem %s0, 18
  %s37 = sld [smem:[%s36]]
  %s38 = scalar_lea.smem %s0, 19
  %s39 = sld [smem:[%s38]]
  %s40 = scalar_lea.smem %s0, 20
  %s41 = sld [smem:[%s40]]
  %s42 = scalar_lea.smem %s0, 21
  %s43 = sld [smem:[%s42]]
  %s44 = scalar_lea.smem %s0, 22
  %s45 = sld [smem:[%s44]]
  %s46 = scalar_lea.smem %s0, 23
  %s47 = sld [smem:[%s46]]
  %s48 = scalar_lea.smem %s0, 24
  %s49 = sld [smem:[%s48]]
  %s50 = scalar_lea.smem %s0, 25
  %s51 = sld [smem:[%s50]]
  %s52 = scalar_lea.smem %s0, 26
  %s53 = sld [smem:[%s52]]
  %s54 = scalar_lea.smem %s0, 27
  %s55 = sld [smem:[%s54]]
  %s56 = scalar_lea.smem %s0, 28
  %s57 = sld [smem:[%s56]]
  %s58 = scalar_lea.smem %s0, 29
  %s59 = sld [smem:[%s58]]
  %s60 = scalar_lea.smem %s0, 30
  %s61 = sld [smem:[%s60]]
  %s62 = scalar_lea.smem %s0, 31
  %s63 = sld [smem:[%s62]]
  %64 = xla_tuple %s59, %s61, %s63
  %s65 = sld [smem:[#allocation0]]
  $region142: #{streaming_encoder_forward.1} parent=0
    _
  %s67 = ssub.s32 1, %s65
  %s68 = scalar_select 0, %s67, %s65
  $region1: #{streaming_encoder_forward.1} parent=0
    #allocation2 [shape = 'u8[4096]{0}', space=vmem, size = 0x1000, scoped, tag = 'output window, operand 0, single buffered']
    #allocation3 [shape = 's32[1]{0}', space=sflag, size = 0x4, scoped, tag = 'scoped memory for streaming_encoder_forward.1']
    %69 = vsyncpa [#allocation3], 0
    // Predicated region
    $region2: #{streaming_encoder_forward.1} parent=1 // pred_check
      _
    $region3: #{streaming_encoder_forward.1} parent=1 // pred_check_branch
      %71 = sbr.rel (0) target = $region5
    $region4: #{streaming_encoder_forward.1} parent=1 // pred_region
      _
    $region5: #{streaming_encoder_forward.1} parent=1 // pred_fallthru
      _
    // Predicated region
    $region6: #{streaming_encoder_forward.1} parent=1 // pred_check
      _
    $region7: #{streaming_encoder_forward.1} parent=1 // pred_check_branch
      %73 = sbr.rel (0) target = $region9
    $region8: #{streaming_encoder_forward.1} parent=1 // pred_region
      _
    $region9: #{streaming_encoder_forward.1} parent=1 // pred_fallthru
      _
    // Predicated region
    $region10: #{streaming_encoder_forward.1} parent=1 // pred_check
      _
    $region11: #{streaming_encoder_forward.1} parent=1 // pred_check_branch
      %75 = sbr.rel (0) target = $region13
    $region12: #{streaming_encoder_forward.1} parent=1 // pred_region
      _
    $region13: #{streaming_encoder_forward.1} parent=1 // pred_fallthru
      _
    // Predicated region
    $region14: #{streaming_encoder_forward.1} parent=1 // pred_check
      _
    $region15: #{streaming_encoder_forward.1} parent=1 // pred_check_branch
      %77 = sbr.rel (0) target = $region17
    $region16: #{streaming_encoder_forward.1} parent=1 // pred_region
      _
    $region17: #{streaming_encoder_forward.1} parent=1 // pred_fallthru
      _
    // Predicated region
    $region18: #{streaming_encoder_forward.1} parent=1 // pred_check
      _
    $region19: #{streaming_encoder_forward.1} parent=1 // pred_check_branch
      %79 = sbr.rel (0) target = $region21
    $region20: #{streaming_encoder_forward.1} parent=1 // pred_region
      _
    $region21: #{streaming_encoder_forward.1} parent=1 // pred_fallthru
      _
    // Predicated region
    $region22: #{streaming_encoder_forward.1} parent=1 // pred_check
      _
    $region23: #{streaming_encoder_forward.1} parent=1 // pred_check_branch
      %81 = sbr.rel (0) target = $region25
    $region24: #{streaming_encoder_forward.1} parent=1 // pred_region
      _
    $region25: #{streaming_encoder_forward.1} parent=1 // pred_fallthru
      _
    // Predicated region
    $region26: #{streaming_encoder_forward.1} parent=1 // pred_check
      _
    $region27: #{streaming_encoder_forward.1} parent=1 // pred_check_branch
      %83 = sbr.rel (0) target = $region29
    $region28: #{streaming_encoder_forward.1} parent=1 // pred_region
      _
    $region29: #{streaming_encoder_forward.1} parent=1 // pred_fallthru
      _
    // Predicated region
    $region30: #{streaming_encoder_forward.1} parent=1 // pred_check
      _
    $region31: #{streaming_encoder_forward.1} parent=1 // pred_check_branch
      %85 = sbr.rel (0) target = $region33
    $region32: #{streaming_encoder_forward.1} parent=1 // pred_region
      _
    $region33: #{streaming_encoder_forward.1} parent=1 // pred_fallthru
      _
    // Predicated region
    $region34: #{streaming_encoder_forward.1} parent=1 // pred_check
      _
    $region35: #{streaming_encoder_forward.1} parent=1 // pred_check_branch
      %87 = sbr.rel (0) target = $region37
    $region36: #{streaming_encoder_forward.1} parent=1 // pred_region
      _
    $region37: #{streaming_encoder_forward.1} parent=1 // pred_fallthru
      _
    // Predicated region
    $region38: #{streaming_encoder_forward.1} parent=1 // pred_check
      _
    $region39: #{streaming_encoder_forward.1} parent=1 // pred_check_branch
      %89 = sbr.rel (0) target = $region41
    $region40: #{streaming_encoder_forward.1} parent=1 // pred_region
      _
    $region41: #{streaming_encoder_forward.1} parent=1 // pred_fallthru
      _
    // Predicated region
    $region42: #{streaming_encoder_forward.1} parent=1 // pred_check
      _
    $region43: #{streaming_encoder_forward.1} parent=1 // pred_check_branch
      %91 = sbr.rel (0) target = $region45
    $region44: #{streaming_encoder_forward.1} parent=1 // pred_region
      _
    $region45: #{streaming_encoder_forward.1} parent=1 // pred_fallthru
      _
    // Predicated region
    $region46: #{streaming_encoder_forward.1} parent=1 // pred_check
      _
    $region47: #{streaming_encoder_forward.1} parent=1 // pred_check_branch
      %93 = sbr.rel (0) target = $region49
    $region48: #{streaming_encoder_forward.1} parent=1 // pred_region
      _
    $region49: #{streaming_encoder_forward.1} parent=1 // pred_fallthru
      _
    // Predicated region
    $region50: #{streaming_encoder_forward.1} parent=1 // pred_check
      _
    $region51: #{streaming_encoder_forward.1} parent=1 // pred_check_branch
      %95 = sbr.rel (0) target = $region53
    $region52: #{streaming_encoder_forward.1} parent=1 // pred_region
      _
    $region53: #{streaming_encoder_forward.1} parent=1 // pred_fallthru
      _
    // Predicated region
    $region54: #{streaming_encoder_forward.1} parent=1 // pred_check
      _
    $region55: #{streaming_encoder_forward.1} parent=1 // pred_check_branch
      %97 = sbr.rel (0) target = $region57
    $region56: #{streaming_encoder_forward.1} parent=1 // pred_region
      _
    $region57: #{streaming_encoder_forward.1} parent=1 // pred_fallthru
      _
    // Predicated region
    $region58: #{streaming_encoder_forward.1} parent=1 // pred_check
      _
    $region59: #{streaming_encoder_forward.1} parent=1 // pred_check_branch
      %99 = sbr.rel (0) target = $region61
    $region60: #{streaming_encoder_forward.1} parent=1 // pred_region
      _
    $region61: #{streaming_encoder_forward.1} parent=1 // pred_fallthru
      _
    // Predicated region
    $region62: #{streaming_encoder_forward.1} parent=1 // pred_check
      _
    $region63: #{streaming_encoder_forward.1} parent=1 // pred_check_branch
      %101 = sbr.rel (0) target = $region65
    $region64: #{streaming_encoder_forward.1} parent=1 // pred_region
      _
    $region65: #{streaming_encoder_forward.1} parent=1 // pred_fallthru
      _
    // Predicated region
    $region66: #{streaming_encoder_forward.1} parent=1 // pred_check
      _
    $region67: #{streaming_encoder_forward.1} parent=1 // pred_check_branch
      %103 = sbr.rel (0) target = $region69
    $region68: #{streaming_encoder_forward.1} parent=1 // pred_region
      _
    $region69: #{streaming_encoder_forward.1} parent=1 // pred_fallthru
      _
    // Predicated region
    $region70: #{streaming_encoder_forward.1} parent=1 // pred_check
      _
    $region71: #{streaming_encoder_forward.1} parent=1 // pred_check_branch
      %105 = sbr.rel (0) target = $region73
    $region72: #{streaming_encoder_forward.1} parent=1 // pred_region
      _
    $region73: #{streaming_encoder_forward.1} parent=1 // pred_fallthru
      _
    // Predicated region
    $region74: #{streaming_encoder_forward.1} parent=1 // pred_check
      _
    $region75: #{streaming_encoder_forward.1} parent=1 // pred_check_branch
      %107 = sbr.rel (0) target = $region77
    $region76: #{streaming_encoder_forward.1} parent=1 // pred_region
      _
    $region77: #{streaming_encoder_forward.1} parent=1 // pred_fallthru
      _
    // Predicated region
    $region78: #{streaming_encoder_forward.1} parent=1 // pred_check
      _
    $region79: #{streaming_encoder_forward.1} parent=1 // pred_check_branch
      %109 = sbr.rel (0) target = $region81
    $region80: #{streaming_encoder_forward.1} parent=1 // pred_region
      _
    $region81: #{streaming_encoder_forward.1} parent=1 // pred_fallthru
      _
    // Predicated region
    $region82: #{streaming_encoder_forward.1} parent=1 // pred_check
      _
    $region83: #{streaming_encoder_forward.1} parent=1 // pred_check_branch
      %111 = sbr.rel (0) target = $region85
    $region84: #{streaming_encoder_forward.1} parent=1 // pred_region
      _
    $region85: #{streaming_encoder_forward.1} parent=1 // pred_fallthru
      _
    // Predicated region
    $region86: #{streaming_encoder_forward.1} parent=1 // pred_check
      _
    $region87: #{streaming_encoder_forward.1} parent=1 // pred_check_branch
      %113 = sbr.rel (0) target = $region89
    $region88: #{streaming_encoder_forward.1} parent=1 // pred_region
      _
    $region89: #{streaming_encoder_forward.1} parent=1 // pred_fallthru
      _
    // Predicated region
    $region90: #{streaming_encoder_forward.1} parent=1 // pred_check
      _
    $region91: #{streaming_encoder_forward.1} parent=1 // pred_check_branch
      %115 = sbr.rel (0) target = $region93
    $region92: #{streaming_encoder_forward.1} parent=1 // pred_region
      _
    $region93: #{streaming_encoder_forward.1} parent=1 // pred_fallthru
      _
    // Predicated region
    $region94: #{streaming_encoder_forward.1} parent=1 // pred_check
      _
    $region95: #{streaming_encoder_forward.1} parent=1 // pred_check_branch
      %117 = sbr.rel (0) target = $region97
    $region96: #{streaming_encoder_forward.1} parent=1 // pred_region
      _
    $region97: #{streaming_encoder_forward.1} parent=1 // pred_fallthru
      _
    // Predicated region
    $region98: #{streaming_encoder_forward.1} parent=1 // pred_check
      _
    $region99: #{streaming_encoder_forward.1} parent=1 // pred_check_branch
      %119 = sbr.rel (0) target = $region101
    $region100: #{streaming_encoder_forward.1} parent=1 // pred_region
      _
    $region101: #{streaming_encoder_forward.1} parent=1 // pred_fallthru
      _
    // Predicated region
    $region102: #{streaming_encoder_forward.1} parent=1 // pred_check
      _
    $region103: #{streaming_encoder_forward.1} parent=1 // pred_check_branch
      %121 = sbr.rel (0) target = $region105
    $region104: #{streaming_encoder_forward.1} parent=1 // pred_region
      _
    $region105: #{streaming_encoder_forward.1} parent=1 // pred_fallthru
      _
    // Predicated region
    $region106: #{streaming_encoder_forward.1} parent=1 // pred_check
      _
    $region107: #{streaming_encoder_forward.1} parent=1 // pred_check_branch
      %123 = sbr.rel (0) target = $region109
    $region108: #{streaming_encoder_forward.1} parent=1 // pred_region
      _
    $region109: #{streaming_encoder_forward.1} parent=1 // pred_fallthru
      _
    // Predicated region
    $region110: #{streaming_encoder_forward.1} parent=1 // pred_check
      _
    $region111: #{streaming_encoder_forward.1} parent=1 // pred_check_branch
      %125 = sbr.rel (0) target = $region113
    $region112: #{streaming_encoder_forward.1} parent=1 // pred_region
      _
    $region113: #{streaming_encoder_forward.1} parent=1 // pred_fallthru
      _
    // Predicated region
    $region114: #{streaming_encoder_forward.1} parent=1 // pred_check
      _
    $region115: #{streaming_encoder_forward.1} parent=1 // pred_check_branch
      %127 = sbr.rel (0) target = $region117
    $region116: #{streaming_encoder_forward.1} parent=1 // pred_region
      _
    $region117: #{streaming_encoder_forward.1} parent=1 // pred_fallthru
      _
    %v128 = vld [vmem:[%s1] sm:$0xff]
    %v129 = vld [vmem:[%s1 + $0x8] sm:$0xff]
    %v130 = vld [vmem:[%s1 + $0x10] sm:$0xff]
    %v131 = vld [vmem:[%s1 + $0x18] sm:$0xff]
    %v132 = vld [vmem:[%s1 + $0x20] sm:$0xff]
    %v133 = vld [vmem:[%s1 + $0x28] sm:$0xff]
    %v134 = vld [vmem:[%s1 + $0x30] sm:$0xff]
    %v135 = vld [vmem:[%s1 + $0x38] sm:$0xff]
    %v136 = vld [vmem:[%s1 + $0x40] sm:$0xff]
    %v137 = vld [vmem:[%s1 + $0x48] sm:$0xff]
    %v138 = vld [vmem:[%s1 + $0x50] sm:$0xff]
    %v139 = vld [vmem:[%s1 + $0x58] sm:$0xff]
    %v140 = vld [vmem:[%s1 + $0x60] sm:$0xff]
    %v141 = vld [vmem:[%s1 + $0x68] sm:$0xff]
    %v142 = vld [vmem:[%s1 + $0x70] sm:$0xff]
    %v143 = vld [vmem:[%s1 + $0x78] sm:$0x3f]
    %v144 = vld [vmem:[%s3] sm:$0xff]
    %v145 = vld [vmem:[%s3 + $0x8] sm:$0xff]
    %v146 = vld [vmem:[%s3 + $0x10] sm:$0xff]
    %v147 = vld [vmem:[%s3 + $0x18] sm:$0xff]
    %v148 = vld [vmem:[%s3 + $0x20] sm:$0xff]
    %v149 = vld [vmem:[%s3 + $0x28] sm:$0xff]
    %v150 = vld [vmem:[%s3 + $0x30] sm:$0xff]
    %v151 = vld [vmem:[%s3 + $0x38] sm:$0xff]
    %v152 = vld [vmem:[%s3 + $0x40] sm:$0xff]
    %v153 = vld [vmem:[%s3 + $0x48] sm:$0xff]
    %v154 = vld [vmem:[%s3 + $0x50] sm:$0xff]
    %v155 = vld [vmem:[%s3 + $0x58] sm:$0xff]
    %v156 = vld [vmem:[%s3 + $0x60] sm:$0xff]
    %v157 = vld [vmem:[%s3 + $0x68] sm:$0xff]
    %v158 = vld [vmem:[%s3 + $0x70] sm:$0xff]
    %v159 = vld [vmem:[%s3 + $0x78] sm:$0x3f]
    %v160 = vsub.f32 %v128, %v144
    %v161 = vsub.f32 %v129, %v145
    %v162 = vsub.f32 %v130, %v146
    %v163 = vsub.f32 %v131, %v147
    %v164 = vsub.f32 %v132, %v148
    %v165 = vsub.f32 %v133, %v149
    %v166 = vsub.f32 %v134, %v150
    %v167 = vsub.f32 %v135, %v151
    %v168 = vsub.f32 %v136, %v152
    %v169 = vsub.f32 %v137, %v153
    %v170 = vsub.f32 %v138, %v154
    %v171 = vsub.f32 %v139, %v155
    %v172 = vsub.f32 %v140, %v156
    %v173 = vsub.f32 %v141, %v157
    %v174 = vsub.f32 %v142, %v158
    %v175 = vsub.f32 %v143, %v159
    %v176 = vld [vmem:[%s5] sm:$0xff]
    %v177 = vld [vmem:[%s5 + $0x8] sm:$0xff]
    %v178 = vld [vmem:[%s5 + $0x10] sm:$0xff]
    %v179 = vld [vmem:[%s5 + $0x18] sm:$0xff]
    %v180 = vld [vmem:[%s5 + $0x20] sm:$0xff]
    %v181 = vld [vmem:[%s5 + $0x28] sm:$0xff]
    %v182 = vld [vmem:[%s5 + $0x30] sm:$0xff]
    %v183 = vld [vmem:[%s5 + $0x38] sm:$0xff]
    %v184 = vld [vmem:[%s5 + $0x40] sm:$0xff]
    %v185 = vld [vmem:[%s5 + $0x48] sm:$0xff]
    %v186 = vld [vmem:[%s5 + $0x50] sm:$0xff]
    %v187 = vld [vmem:[%s5 + $0x58] sm:$0xff]
    %v188 = vld [vmem:[%s5 + $0x60] sm:$0xff]
    %v189 = vld [vmem:[%s5 + $0x68] sm:$0xff]
    %v190 = vld [vmem:[%s5 + $0x70] sm:$0xff]
    %v191 = vld [vmem:[%s5 + $0x78] sm:$0x3f]
    %v192 = vmul.f32 %v160, %v176
    %v193 = vmul.f32 %v161, %v177
    %v194 = vmul.f32 %v162, %v178
    %v195 = vmul.f32 %v163, %v179
    %v196 = vmul.f32 %v164, %v180
    %v197 = vmul.f32 %v165, %v181
    %v198 = vmul.f32 %v166, %v182
    %v199 = vmul.f32 %v167, %v183
    %v200 = vmul.f32 %v168, %v184
    %v201 = vmul.f32 %v169, %v185
    %v202 = vmul.f32 %v170, %v186
    %v203 = vmul.f32 %v171, %v187
    %v204 = vmul.f32 %v172, %v188
    %v205 = vmul.f32 %v173, %v189
    %v206 = vmul.f32 %v174, %v190
    %v207 = vmul.f32 %v175, %v191
    %v208 = vld [vmem:[%s7] sm:$0xff]
    %v209 = vld [vmem:[%s7 + $0x8] sm:$0x1]
    %v210 = vld [vmem:[%s9] sm:$0x1]
    %v212 = vlaneseq
    %v213 = vshrl.u32 %v212, 7
    %v214 = vsub.s32 0, %v213
    %v215 = vrot.slane %v210, %v214
    %vm217 = vcmask 72704
    %v219 = vsel %vm217, %v192, 0
    %v222 = vsel %vm217, %v193, 0
    %v225 = vsel %vm217, %v194, 0
    %v228 = vsel %vm217, %v195, 0
    %v231 = vsel %vm217, %v196, 0
    %v234 = vsel %vm217, %v197, 0
    %v237 = vsel %vm217, %v198, 0
    %v240 = vsel %vm217, %v199, 0
    %v243 = vsel %vm217, %v200, 0
    %v246 = vsel %vm217, %v201, 0
    %v249 = vsel %vm217, %v202, 0
    %v252 = vsel %vm217, %v203, 0
    %v255 = vsel %vm217, %v204, 0
    %v258 = vsel %vm217, %v205, 0
    %v261 = vsel %vm217, %v206, 0
    %v264 = vsel %vm217, %v207, 0
    %vm266 = vcmask 1040384
    %v268 = vsel %vm266, %v209, 0
    %270 = vmatprep.subr.mxu0 0.0
    %271 = vmatpush1.msra.mxu0 %v208
    %272 = vmatprep.subr.mxu0 0.0
    %273 = vmatpush1.msra.mxu0 %v268
    %274 = vmatprep.subr.mxu0 0.0
    %275 = vmatpush1.msra.mxu0 0.0
    %276 = vmatprep.subr.mxu0 0.0
    %277 = vmatpush1.msra.mxu0 0.0
    %278 = vmatprep.subr.mxu0 0.0
    %279 = vmatpush1.msra.mxu0 0.0
    %280 = vmatprep.subr.mxu0 0.0
    %281 = vmatpush1.msra.mxu0 0.0
    %282 = vmatprep.subr.mxu0 0.0
    %283 = vmatpush1.msra.mxu0 0.0
    %284 = vmatprep.subr.mxu0 0.0
    %285 = vmatpush1.msra.mxu0 0.0
    %286 = vmatprep.subr.mxu0 0.0
    %287 = vmatpush1.msra.mxu0 0.0
    %288 = vmatprep.subr.mxu0 0.0
    %289 = vmatpush1.msra.mxu0 0.0
    %290 = vmatprep.subr.mxu0 0.0
    %291 = vmatpush1.msra.mxu0 0.0
    %292 = vmatprep.subr.mxu0 0.0
    %293 = vmatpush1.msra.mxu0 0.0
    %294 = vmatprep.subr.mxu0 0.0
    %295 = vmatpush1.msra.mxu0 0.0
    %296 = vmatprep.subr.mxu0 0.0
    %297 = vmatpush1.msra.mxu0 0.0
    %298 = vmatprep.subr.mxu0 0.0
    %299 = vmatpush1.msra.mxu0 0.0
    %300 = vmatprep.subr.mxu0 0.0
    %301 = vmatpush1.msra.mxu0 0.0
    %302 = vmatprep.subr.mxu0 0.0
    %303 = vmatpush1.msra.mxu0 0.0
    %304 = vmatprep.subr.mxu0 0.0
    %305 = vmatpush1.msra.mxu0 0.0
    %306 = vmatprep.subr.mxu0 0.0
    %307 = vmatpush1.msra.mxu0 0.0
    %308 = vmatprep.subr.mxu0 0.0
    %309 = vmatpush1.msra.mxu0 0.0
    %310 = vmatprep.subr.mxu0 0.0
    %311 = vmatpush1.msra.mxu0 0.0
    %312 = vmatprep.subr.mxu0 0.0
    %313 = vmatpush1.msra.mxu0 0.0
    %314 = vmatprep.subr.mxu0 0.0
    %315 = vmatpush1.msra.mxu0 0.0
    %316 = vmatprep.subr.mxu0 0.0
    %317 = vmatpush1.msra.mxu0 0.0
    %318 = vmatprep.subr.mxu0 0.0
    %319 = vmatpush1.msra.mxu0 0.0
    %320 = vmatprep.subr.mxu0 0.0
    %321 = vmatpush1.msra.mxu0 0.0
    %322 = vmatprep.subr.mxu0 0.0
    %323 = vmatpush1.msra.mxu0 0.0
    %324 = vmatprep.subr.mxu0 0.0
    %325 = vmatpush1.msra.mxu0 0.0
    %326 = vmatprep.subr.mxu0 0.0
    %327 = vmatpush1.msra.mxu0 0.0
    %328 = vmatprep.subr.mxu0 0.0
    %329 = vmatpush1.msra.mxu0 0.0
    %330 = vmatprep.subr.mxu0 0.0
    %331 = vmatpush1.msra.mxu0 0.0
    %332 = vmatprep.subr.mxu0 0.0
    %333 = vmatpush1.msra.mxu0 0.0
    %334 = vmatprep.mubr.f32.mxu0 0.0
    %335 = vmatmul.mubr.f32.gmra.mrb[0].mxu0 %v219
    %v336 = vpop.f32.mrb[0].mxu0
    %v337 = vadd.f32 %v215, %v336
    %v338 = vpop.f32.mrb[0].mxu0
    %339 = vmatprep.mubr.f32.mxu0 0.0
    %340 = vmatmul.mubr.f32.gmra.mrb[0].mxu0 %v222
    %v341 = vpop.f32.mrb[0].mxu0
    %v342 = vadd.f32 %v215, %v341
    %v343 = vpop.f32.mrb[0].mxu0
    %344 = vmatprep.mubr.f32.mxu0 0.0
    %345 = vmatmul.mubr.f32.gmra.mrb[0].mxu0 %v225
    %v346 = vpop.f32.mrb[0].mxu0
    %v347 = vadd.f32 %v215, %v346
    %v348 = vpop.f32.mrb[0].mxu0
    %349 = vmatprep.mubr.f32.mxu0 0.0
    %350 = vmatmul.mubr.f32.gmra.mrb[0].mxu0 %v228
    %v351 = vpop.f32.mrb[0].mxu0
    %v352 = vadd.f32 %v215, %v351
    %v353 = vpop.f32.mrb[0].mxu0
    %354 = vmatprep.mubr.f32.mxu0 0.0
    %355 = vmatmul.mubr.f32.gmra.mrb[0].mxu0 %v231
    %v356 = vpop.f32.mrb[0].mxu0
    %v357 = vadd.f32 %v215, %v356
    %v358 = vpop.f32.mrb[0].mxu0
    %359 = vmatprep.mubr.f32.mxu0 0.0
    %360 = vmatmul.mubr.f32.gmra.mrb[0].mxu0 %v234
    %v361 = vpop.f32.mrb[0].mxu0
    %v362 = vadd.f32 %v215, %v361
    %v363 = vpop.f32.mrb[0].mxu0
    %364 = vmatprep.mubr.f32.mxu0 0.0
    %365 = vmatmul.mubr.f32.gmra.mrb[0].mxu0 %v237
    %v366 = vpop.f32.mrb[0].mxu0
    %v367 = vadd.f32 %v215, %v366
    %v368 = vpop.f32.mrb[0].mxu0
    %369 = vmatprep.mubr.f32.mxu0 0.0
    %370 = vmatmul.mubr.f32.gmra.mrb[0].mxu0 %v240
    %v371 = vpop.f32.mrb[0].mxu0
    %v372 = vadd.f32 %v215, %v371
    %v373 = vpop.f32.mrb[0].mxu0
    %374 = vmatprep.mubr.f32.mxu0 0.0
    %375 = vmatmul.mubr.f32.gmra.mrb[0].mxu0 %v243
    %v376 = vpop.f32.mrb[0].mxu0
    %v377 = vadd.f32 %v215, %v376
    %v378 = vpop.f32.mrb[0].mxu0
    %379 = vmatprep.mubr.f32.mxu0 0.0
    %380 = vmatmul.mubr.f32.gmra.mrb[0].mxu0 %v246
    %v381 = vpop.f32.mrb[0].mxu0
    %v382 = vadd.f32 %v215, %v381
    %v383 = vpop.f32.mrb[0].mxu0
    %384 = vmatprep.mubr.f32.mxu0 0.0
    %385 = vmatmul.mubr.f32.gmra.mrb[0].mxu0 %v249
    %v386 = vpop.f32.mrb[0].mxu0
    %v387 = vadd.f32 %v215, %v386
    %v388 = vpop.f32.mrb[0].mxu0
    %389 = vmatprep.mubr.f32.mxu0 0.0
    %390 = vmatmul.mubr.f32.gmra.mrb[0].mxu0 %v252
    %v391 = vpop.f32.mrb[0].mxu0
    %v392 = vadd.f32 %v215, %v391
    %v393 = vpop.f32.mrb[0].mxu0
    %394 = vmatprep.mubr.f32.mxu0 0.0
    %395 = vmatmul.mubr.f32.gmra.mrb[0].mxu0 %v255
    %v396 = vpop.f32.mrb[0].mxu0
    %v397 = vadd.f32 %v215, %v396
    %v398 = vpop.f32.mrb[0].mxu0
    %399 = vmatprep.mubr.f32.mxu0 0.0
    %400 = vmatmul.mubr.f32.gmra.mrb[0].mxu0 %v258
    %v401 = vpop.f32.mrb[0].mxu0
    %v402 = vadd.f32 %v215, %v401
    %v403 = vpop.f32.mrb[0].mxu0
    %404 = vmatprep.mubr.f32.mxu0 0.0
    %405 = vmatmul.mubr.f32.gmra.mrb[0].mxu0 %v261
    %v406 = vpop.f32.mrb[0].mxu0
    %v407 = vadd.f32 %v215, %v406
    %v408 = vpop.f32.mrb[0].mxu0
    %409 = vmatprep.mubr.f32.mxu0 0.0
    %410 = vmatmul.mubr.f32.gmra.mrb[0].mxu0 %v264
    %v411 = vpop.f32.mrb[0].mxu0
    %v412 = vadd.f32 %v215, %v411
    %v413 = vpop.f32.mrb[0].mxu0
    %414 = vdwg.mxu0
    %v415 = vmax.f32 %v337, 0.0
    %v416 = vmax.f32 %v342, 0.0
    %v417 = vmax.f32 %v347, 0.0
    %v418 = vmax.f32 %v352, 0.0
    %v419 = vmax.f32 %v357, 0.0
    %v420 = vmax.f32 %v362, 0.0
    %v421 = vmax.f32 %v367, 0.0
    %v422 = vmax.f32 %v372, 0.0
    %v423 = vmax.f32 %v377, 0.0
    %v424 = vmax.f32 %v382, 0.0
    %v425 = vmax.f32 %v387, 0.0
    %v426 = vmax.f32 %v392, 0.0
    %v427 = vmax.f32 %v397, 0.0
    %v428 = vmax.f32 %v402, 0.0
    %v429 = vmax.f32 %v407, 0.0
    %v430 = vmax.f32 %v412, 0.0
    %v431 = vld [vmem:[%s11] sm:$0xff]
    %v432 = vld [vmem:[%s11 + $0x8] sm:$0xff]
    %v433 = vld [vmem:[%s11 + $0x10] sm:$0xff]
    %v434 = vld [vmem:[%s11 + $0x18] sm:$0xff]
    %v435 = vld [vmem:[%s11 + $0x20] sm:$0xff]
    %v436 = vld [vmem:[%s11 + $0x28] sm:$0xff]
    %v437 = vld [vmem:[%s11 + $0x30] sm:$0xff]
    %v438 = vld [vmem:[%s11 + $0x38] sm:$0xff]
    %v439 = vld [vmem:[%s11 + $0x40] sm:$0xff]
    %v440 = vld [vmem:[%s11 + $0x48] sm:$0xff]
    %v441 = vld [vmem:[%s11 + $0x50] sm:$0xff]
    %v442 = vld [vmem:[%s11 + $0x58] sm:$0xff]
    %v443 = vld [vmem:[%s11 + $0x60] sm:$0xff]
    %v444 = vld [vmem:[%s11 + $0x68] sm:$0xff]
    %v445 = vld [vmem:[%s11 + $0x70] sm:$0xff]
    %v446 = vld [vmem:[%s11 + $0x78] sm:$0xff]
    %v447 = vld [vmem:[%s11 + $0x80] sm:$0xff]
    %v448 = vld [vmem:[%s11 + $0x88] sm:$0xff]
    %v449 = vld [vmem:[%s11 + $0x90] sm:$0xff]
    %v450 = vld [vmem:[%s11 + $0x98] sm:$0xff]
    %v451 = vld [vmem:[%s11 + $0xa0] sm:$0xff]
    %v452 = vld [vmem:[%s11 + $0xa8] sm:$0xff]
    %v453 = vld [vmem:[%s11 + $0xb0] sm:$0xff]
    %v454 = vld [vmem:[%s11 + $0xb8] sm:$0xff]
    %v455 = vld [vmem:[%s11 + $0xc0] sm:$0xff]
    %v456 = vld [vmem:[%s11 + $0xc8] sm:$0xff]
    %v457 = vld [vmem:[%s11 + $0xd0] sm:$0xff]
    %vm458 = vcmask 1031168
    %v460 = vsel %vm458, %v431, 0
    %v463 = vsel %vm458, %v432, 0
    %v466 = vsel %vm458, %v433, 0
    %v469 = vsel %vm458, %v434, 0
    %v472 = vsel %vm458, %v435, 0
    %v475 = vsel %vm458, %v436, 0
    %v478 = vsel %vm458, %v437, 0
    %v481 = vsel %vm458, %v438, 0
    %v484 = vsel %vm458, %v439, 0
    %v487 = vsel %vm458, %v440, 0
    %v490 = vsel %vm458, %v441, 0
    %v493 = vsel %vm458, %v442, 0
    %v496 = vsel %vm458, %v443, 0
    %v499 = vsel %vm458, %v444, 0
    %v502 = vsel %vm458, %v445, 0
    %v505 = vsel %vm458, %v446, 0
    %v508 = vsel %vm458, %v447, 0
    %v511 = vsel %vm458, %v448, 0
    %v514 = vsel %vm458, %v449, 0
    %v517 = vsel %vm458, %v450, 0
    %v520 = vsel %vm458, %v451, 0
    %v523 = vsel %vm458, %v452, 0
    %v526 = vsel %vm458, %v453, 0
    %v529 = vsel %vm458, %v454, 0
    %v532 = vsel %vm458, %v455, 0
    %v535 = vsel %vm458, %v456, 0
    %v538 = vsel %vm458, %v457, 0
    %vm540 = vcmask 1045504
    %v542 = vsel %vm540, %v430, 0
    %544 = vmatprep.subr.mxu0 0.0
    %545 = vmatpush1.msra.mxu0 %v415
    %546 = vmatprep.subr.mxu0 0.0
    %547 = vmatpush1.msra.mxu0 %v416
    %548 = vmatprep.subr.mxu0 0.0
    %549 = vmatpush1.msra.mxu0 %v417
    %550 = vmatprep.subr.mxu0 0.0
    %551 = vmatpush1.msra.mxu0 %v418
    %552 = vmatprep.subr.mxu0 0.0
    %553 = vmatpush1.msra.mxu0 %v419
    %554 = vmatprep.subr.mxu0 0.0
    %555 = vmatpush1.msra.mxu0 %v420
    %556 = vmatprep.subr.mxu0 0.0
    %557 = vmatpush1.msra.mxu0 %v421
    %558 = vmatprep.subr.mxu0 0.0
    %559 = vmatpush1.msra.mxu0 %v422
    %560 = vmatprep.subr.mxu0 0.0
    %561 = vmatpush1.msra.mxu0 %v423
    %562 = vmatprep.subr.mxu0 0.0
    %563 = vmatpush1.msra.mxu0 %v424
    %564 = vmatprep.subr.mxu0 0.0
    %565 = vmatpush1.msra.mxu0 %v425
    %566 = vmatprep.subr.mxu0 0.0
    %567 = vmatpush1.msra.mxu0 %v426
    %568 = vmatprep.subr.mxu0 0.0
    %569 = vmatpush1.msra.mxu0 %v427
    %570 = vmatprep.subr.mxu0 0.0
    %571 = vmatpush1.msra.mxu0 %v428
    %572 = vmatprep.subr.mxu0 0.0
    %573 = vmatpush1.msra.mxu0 %v429
    %574 = vmatprep.subr.mxu0 0.0
    %575 = vmatpush1.msra.mxu0 %v542
    %576 = vmatprep.subr.mxu0 0.0
    %577 = vmatpush1.msra.mxu0 0.0
    %578 = vmatprep.subr.mxu0 0.0
    %579 = vmatpush1.msra.mxu0 0.0
    %580 = vmatprep.subr.mxu0 0.0
    %581 = vmatpush1.msra.mxu0 0.0
    %582 = vmatprep.subr.mxu0 0.0
    %583 = vmatpush1.msra.mxu0 0.0
    %584 = vmatprep.subr.mxu0 0.0
    %585 = vmatpush1.msra.mxu0 0.0
    %586 = vmatprep.subr.mxu0 0.0
    %587 = vmatpush1.msra.mxu0 0.0
    %588 = vmatprep.subr.mxu0 0.0
    %589 = vmatpush1.msra.mxu0 0.0
    %590 = vmatprep.subr.mxu0 0.0
    %591 = vmatpush1.msra.mxu0 0.0
    %592 = vmatprep.subr.mxu0 0.0
    %593 = vmatpush1.msra.mxu0 0.0
    %594 = vmatprep.subr.mxu0 0.0
    %595 = vmatpush1.msra.mxu0 0.0
    %596 = vmatprep.subr.mxu0 0.0
    %597 = vmatpush1.msra.mxu0 0.0
    %598 = vmatprep.subr.mxu0 0.0
    %599 = vmatpush1.msra.mxu0 0.0
    %600 = vmatprep.subr.mxu0 0.0
    %601 = vmatpush1.msra.mxu0 0.0
    %602 = vmatprep.subr.mxu0 0.0
    %603 = vmatpush1.msra.mxu0 0.0
    %604 = vmatprep.subr.mxu0 0.0
    %605 = vmatpush1.msra.mxu0 0.0
    %606 = vmatprep.subr.mxu0 0.0
    %607 = vmatpush1.msra.mxu0 0.0
    %608 = vmatprep.mubr.f32.mxu0 0.0
    %609 = vmatmul.mubr.f32.gmra.mrb[0].mxu0 %v460
    %v610 = vpop.f32.mrb[0].mxu0
    %v611 = vadd.f32 0.0, %v610
    %v612 = vpop.f32.mrb[0].mxu0
    %613 = vmatprep.mubr.f32.mxu0 0.0
    %614 = vmatmul.mubr.f32.gmra.mrb[0].mxu0 %v463
    %v615 = vpop.f32.mrb[0].mxu0
    %v616 = vadd.f32 0.0, %v615
    %v617 = vpop.f32.mrb[0].mxu0
    %618 = vmatprep.mubr.f32.mxu0 0.0
    %619 = vmatmul.mubr.f32.gmra.mrb[0].mxu0 %v466
    %v620 = vpop.f32.mrb[0].mxu0
    %v621 = vadd.f32 0.0, %v620
    %v622 = vpop.f32.mrb[0].mxu0
    %623 = vmatprep.mubr.f32.mxu0 0.0
    %624 = vmatmul.mubr.f32.gmra.mrb[0].mxu0 %v469
    %v625 = vpop.f32.mrb[0].mxu0
    %v626 = vadd.f32 0.0, %v625
    %v627 = vpop.f32.mrb[0].mxu0
    %628 = vmatprep.mubr.f32.mxu0 0.0
    %629 = vmatmul.mubr.f32.gmra.mrb[0].mxu0 %v472
    %v630 = vpop.f32.mrb[0].mxu0
    %v631 = vadd.f32 0.0, %v630
    %v632 = vpop.f32.mrb[0].mxu0
    %633 = vmatprep.mubr.f32.mxu0 0.0
    %634 = vmatmul.mubr.f32.gmra.mrb[0].mxu0 %v475
    %v635 = vpop.f32.mrb[0].mxu0
    %v636 = vadd.f32 0.0, %v635
    %v637 = vpop.f32.mrb[0].mxu0
    %638 = vmatprep.mubr.f32.mxu0 0.0
    %639 = vmatmul.mubr.f32.gmra.mrb[0].mxu0 %v478
    %v640 = vpop.f32.mrb[0].mxu0
    %v641 = vadd.f32 0.0, %v640
    %v642 = vpop.f32.mrb[0].mxu0
    %643 = vmatprep.mubr.f32.mxu0 0.0
    %644 = vmatmul.mubr.f32.gmra.mrb[0].mxu0 %v481
    %v645 = vpop.f32.mrb[0].mxu0
    %v646 = vadd.f32 0.0, %v645
    %v647 = vpop.f32.mrb[0].mxu0
    %648 = vmatprep.mubr.f32.mxu0 0.0
    %649 = vmatmul.mubr.f32.gmra.mrb[0].mxu0 %v484
    %v650 = vpop.f32.mrb[0].mxu0
    %v651 = vadd.f32 0.0, %v650
    %v652 = vpop.f32.mrb[0].mxu0
    %653 = vmatprep.mubr.f32.mxu0 0.0
    %654 = vmatmul.mubr.f32.gmra.mrb[0].mxu0 %v487
    %v655 = vpop.f32.mrb[0].mxu0
    %v656 = vadd.f32 0.0, %v655
    %v657 = vpop.f32.mrb[0].mxu0
    %658 = vmatprep.mubr.f32.mxu0 0.0
    %659 = vmatmul.mubr.f32.gmra.mrb[0].mxu0 %v490
    %v660 = vpop.f32.mrb[0].mxu0
    %v661 = vadd.f32 0.0, %v660
    %v662 = vpop.f32.mrb[0].mxu0
    %663 = vmatprep.mubr.f32.mxu0 0.0
    %664 = vmatmul.mubr.f32.gmra.mrb[0].mxu0 %v493
    %v665 = vpop.f32.mrb[0].mxu0
    %v666 = vadd.f32 0.0, %v665
    %v667 = vpop.f32.mrb[0].mxu0
    %668 = vmatprep.mubr.f32.mxu0 0.0
    %669 = vmatmul.mubr.f32.gmra.mrb[0].mxu0 %v496
    %v670 = vpop.f32.mrb[0].mxu0
    %v671 = vadd.f32 0.0, %v670
    %v672 = vpop.f32.mrb[0].mxu0
    %673 = vmatprep.mubr.f32.mxu0 0.0
    %674 = vmatmul.mubr.f32.gmra.mrb[0].mxu0 %v499
    %v675 = vpop.f32.mrb[0].mxu0
    %v676 = vadd.f32 0.0, %v675
    %v677 = vpop.f32.mrb[0].mxu0
    %678 = vmatprep.mubr.f32.mxu0 0.0
    %679 = vmatmul.mubr.f32.gmra.mrb[0].mxu0 %v502
    %v680 = vpop.f32.mrb[0].mxu0
    %v681 = vadd.f32 0.0, %v680
    %v682 = vpop.f32.mrb[0].mxu0
    %683 = vmatprep.mubr.f32.mxu0 0.0
    %684 = vmatmul.mubr.f32.gmra.mrb[0].mxu0 %v505
    %v685 = vpop.f32.mrb[0].mxu0
    %v686 = vadd.f32 0.0, %v685
    %v687 = vpop.f32.mrb[0].mxu0
    %688 = vmatprep.mubr.f32.mxu0 0.0
    %689 = vmatmul.mubr.f32.gmra.mrb[0].mxu0 %v508
    %v690 = vpop.f32.mrb[0].mxu0
    %v691 = vadd.f32 0.0, %v690
    %v692 = vpop.f32.mrb[0].mxu0
    %693 = vmatprep.mubr.f32.mxu0 0.0
    %694 = vmatmul.mubr.f32.gmra.mrb[0].mxu0 %v511
    %v695 = vpop.f32.mrb[0].mxu0
    %v696 = vadd.f32 0.0, %v695
    %v697 = vpop.f32.mrb[0].mxu0
    %698 = vmatprep.mubr.f32.mxu0 0.0
    %699 = vmatmul.mubr.f32.gmra.mrb[0].mxu0 %v514
    %v700 = vpop.f32.mrb[0].mxu0
    %v701 = vadd.f32 0.0, %v700
    %v702 = vpop.f32.mrb[0].mxu0
    %703 = vmatprep.mubr.f32.mxu0 0.0
    %704 = vmatmul.mubr.f32.gmra.mrb[0].mxu0 %v517
    %v705 = vpop.f32.mrb[0].mxu0
    %v706 = vadd.f32 0.0, %v705
    %v707 = vpop.f32.mrb[0].mxu0
    %708 = vmatprep.mubr.f32.mxu0 0.0
    %709 = vmatmul.mubr.f32.gmra.mrb[0].mxu0 %v520
    %v710 = vpop.f32.mrb[0].mxu0
    %v711 = vadd.f32 0.0, %v710
    %v712 = vpop.f32.mrb[0].mxu0
    %713 = vmatprep.mubr.f32.mxu0 0.0
    %714 = vmatmul.mubr.f32.gmra.mrb[0].mxu0 %v523
    %v715 = vpop.f32.mrb[0].mxu0
    %v716 = vadd.f32 0.0, %v715
    %v717 = vpop.f32.mrb[0].mxu0
    %718 = vmatprep.mubr.f32.mxu0 0.0
    %719 = vmatmul.mubr.f32.gmra.mrb[0].mxu0 %v526
    %v720 = vpop.f32.mrb[0].mxu0
    %v721 = vadd.f32 0.0, %v720
    %v722 = vpop.f32.mrb[0].mxu0
    %723 = vmatprep.mubr.f32.mxu0 0.0
    %724 = vmatmul.mubr.f32.gmra.mrb[0].mxu0 %v529
    %v725 = vpop.f32.mrb[0].mxu0
    %v726 = vadd.f32 0.0, %v725
    %v727 = vpop.f32.mrb[0].mxu0
    %728 = vmatprep.mubr.f32.mxu0 0.0
    %729 = vmatmul.mubr.f32.gmra.mrb[0].mxu0 %v532
    %v730 = vpop.f32.mrb[0].mxu0
    %v731 = vadd.f32 0.0, %v730
    %v732 = vpop.f32.mrb[0].mxu0
    %733 = vmatprep.mubr.f32.mxu0 0.0
    %734 = vmatmul.mubr.f32.gmra.mrb[0].mxu0 %v535
    %v735 = vpop.f32.mrb[0].mxu0
    %v736 = vadd.f32 0.0, %v735
    %v737 = vpop.f32.mrb[0].mxu0
    %738 = vmatprep.mubr.f32.mxu0 0.0
    %739 = vmatmul.mubr.f32.gmra.mrb[0].mxu0 %v538
    %v740 = vpop.f32.mrb[0].mxu0
    %v741 = vadd.f32 0.0, %v740
    %v742 = vpop.f32.mrb[0].mxu0
    %743 = vdwg.mxu0
    %747 = vrot.lane.b32.xlu0 %v626, 32
    %v748 = vpop.permute.xlu0 %747
    %749 = vrot.lane.b32.xlu0 %v631, 32
    %v750 = vpop.permute.xlu0 %749
    %751 = vrot.lane.b32.xlu0 %v636, 32
    %v752 = vpop.permute.xlu0 %751
    %759 = vrot.lane.b32.xlu0 %v641, 64
    %v760 = vpop.permute.xlu0 %759
    %761 = vrot.lane.b32.xlu0 %v646, 64
    %v762 = vpop.permute.xlu0 %761
    %763 = vrot.lane.b32.xlu0 %v651, 64
    %v764 = vpop.permute.xlu0 %763
    %771 = vrot.lane.b32.xlu0 %v656, 96
    %v772 = vpop.permute.xlu0 %771
    %773 = vrot.lane.b32.xlu0 %v661, 96
    %v774 = vpop.permute.xlu0 %773
    %775 = vrot.lane.b32.xlu0 %v666, 96
    %v776 = vpop.permute.xlu0 %775
    %783 = vrot.lane.b32.xlu0 %v686, 32
    %v784 = vpop.permute.xlu0 %783
    %785 = vrot.lane.b32.xlu0 %v691, 32
    %v786 = vpop.permute.xlu0 %785
    %787 = vrot.lane.b32.xlu0 %v696, 32
    %v788 = vpop.permute.xlu0 %787
    %795 = vrot.lane.b32.xlu0 %v701, 64
    %v796 = vpop.permute.xlu0 %795
    %797 = vrot.lane.b32.xlu0 %v706, 64
    %v798 = vpop.permute.xlu0 %797
    %799 = vrot.lane.b32.xlu0 %v711, 64
    %v800 = vpop.permute.xlu0 %799
    %807 = vrot.lane.b32.xlu0 %v716, 96
    %v808 = vpop.permute.xlu0 %807
    %809 = vrot.lane.b32.xlu0 %v721, 96
    %v810 = vpop.permute.xlu0 %809
    %811 = vrot.lane.b32.xlu0 %v726, 96
    %v812 = vpop.permute.xlu0 %811
    %vm816 = vcmask 261120
    %v817 = vsel %vm816, %v611, %v748
    %v818 = vsel %vm816, %v616, %v750
    %v819 = vsel %vm816, %v621, %v752
    %vm820 = vcmask 523264
    %v821 = vsel %vm820, %v817, %v760
    %v822 = vsel %vm820, %v818, %v762
    %v823 = vsel %vm820, %v819, %v764
    %vm824 = vcmask 785408
    %v825 = vsel %vm824, %v821, %v772
    %v826 = vsel %vm824, %v822, %v774
    %v827 = vsel %vm824, %v823, %v776
    %v828 = vsel %vm816, %v671, %v784
    %v829 = vsel %vm816, %v676, %v786
    %v830 = vsel %vm816, %v681, %v788
    %v831 = vsel %vm820, %v828, %v796
    %v832 = vsel %vm820, %v829, %v798
    %v833 = vsel %vm820, %v830, %v800
    %v834 = vsel %vm824, %v831, %v808
    %v835 = vsel %vm824, %v832, %v810
    %v836 = vsel %vm824, %v833, %v812
    %v837 = vld [vmem:[%s13] sm:$0xff]
    %v838 = vld [vmem:[%s13 + $0x8] sm:$0xff]
    %v839 = vld [vmem:[%s13 + $0x10] sm:$0xff]
    %v840 = vld [vmem:[%s13 + $0x18] sm:$0xff]
    %v841 = vld [vmem:[%s13 + $0x20] sm:$0xff]
    %v842 = vld [vmem:[%s13 + $0x28] sm:$0xff]
    %v843 = vld [vmem:[%s13 + $0x30] sm:$0xff]
    %v844 = vld [vmem:[%s13 + $0x38] sm:$0xff]
    %v845 = vld [vmem:[%s13 + $0x40] sm:$0xff]
    %v846 = vld [vmem:[%s13 + $0x48] sm:$0xff]
    %v847 = vld [vmem:[%s13 + $0x50] sm:$0xff]
    %v848 = vld [vmem:[%s13 + $0x58] sm:$0xff]
    %v849 = vld [vmem:[%s13 + $0x60] sm:$0xff]
    %v850 = vld [vmem:[%s13 + $0x68] sm:$0xff]
    %v851 = vld [vmem:[%s13 + $0x70] sm:$0xff]
    %v852 = vld [vmem:[%s13 + $0x78] sm:$0xff]
    %v853 = vld [vmem:[%s13 + $0x80] sm:$0xff]
    %v854 = vld [vmem:[%s13 + $0x88] sm:$0xff]
    %v855 = vld [vmem:[%s13 + $0x90] sm:$0xff]
    %v856 = vld [vmem:[%s13 + $0x98] sm:$0xff]
    %v857 = vld [vmem:[%s13 + $0xa0] sm:$0xff]
    %v858 = vld [vmem:[%s13 + $0xa8] sm:$0xff]
    %v859 = vld [vmem:[%s13 + $0xb0] sm:$0xff]
    %v860 = vld [vmem:[%s13 + $0xb8] sm:$0xff]
    %v861 = vld [vmem:[%s13 + $0xc0] sm:$0xff]
    %v862 = vld [vmem:[%s13 + $0xc8] sm:$0xff]
    %v863 = vld [vmem:[%s13 + $0xd0] sm:$0xff]
    %v864 = vld [vmem:[%s13 + $0xd8] sm:$0xff]
    %v865 = vld [vmem:[%s13 + $0xe0] sm:$0xff]
    %v866 = vld [vmem:[%s13 + $0xe8] sm:$0xff]
    %v867 = vld [vmem:[%s13 + $0xf0] sm:$0xff]
    %v868 = vld [vmem:[%s13 + $0xf8] sm:$0xff]
    %v869 = vld [vmem:[%s13 + $0x100] sm:$0xff]
    %v870 = vld [vmem:[%s13 + $0x108] sm:$0xff]
    %v871 = vld [vmem:[%s13 + $0x110] sm:$0xff]
    %v872 = vld [vmem:[%s13 + $0x118] sm:$0xff]
    %v873 = vld [vmem:[%s15] sm:$0x1]
    %v875 = vlaneseq
    %v876 = vshrl.u32 %v875, 7
    %v877 = vsub.s32 0, %v876
    %v878 = vrot.slane %v873, %v877
    %v881 = vsel %vm816, %v731, 0
    %v884 = vsel %vm816, %v736, 0
    %v887 = vsel %vm816, %v741, 0
    %889 = vmatprep.subr.mxu0 0.0
    %890 = vmatpush1.msra.mxu0 %v837
    %891 = vmatprep.subr.mxu0 0.0
    %892 = vmatpush1.msra.mxu0 %v838
    %893 = vmatprep.subr.mxu0 0.0
    %894 = vmatpush1.msra.mxu0 %v839
    %895 = vmatprep.subr.mxu0 0.0
    %896 = vmatpush1.msra.mxu0 %v840
    %897 = vmatprep.subr.mxu0 0.0
    %898 = vmatpush1.msra.mxu0 %v841
    %899 = vmatprep.subr.mxu0 0.0
    %900 = vmatpush1.msra.mxu0 %v842
    %901 = vmatprep.subr.mxu0 0.0
    %902 = vmatpush1.msra.mxu0 %v843
    %903 = vmatprep.subr.mxu0 0.0
    %904 = vmatpush1.msra.mxu0 %v844
    %905 = vmatprep.subr.mxu0 0.0
    %906 = vmatpush1.msra.mxu0 %v845
    %907 = vmatprep.subr.mxu0 0.0
    %908 = vmatpush1.msra.mxu0 %v846
    %909 = vmatprep.subr.mxu0 0.0
    %910 = vmatpush1.msra.mxu0 %v847
    %911 = vmatprep.subr.mxu0 0.0
    %912 = vmatpush1.msra.mxu0 %v848
    %913 = vmatprep.subr.mxu0 0.0
    %914 = vmatpush1.msra.mxu0 %v849
    %915 = vmatprep.subr.mxu0 0.0
    %916 = vmatpush1.msra.mxu0 %v850
    %917 = vmatprep.subr.mxu0 0.0
    %918 = vmatpush1.msra.mxu0 %v851
    %919 = vmatprep.subr.mxu0 0.0
    %920 = vmatpush1.msra.mxu0 %v852
    %921 = vmatprep.subr.mxu0 0.0
    %922 = vmatpush1.msra.mxu0 %v853
    %923 = vmatprep.subr.mxu0 0.0
    %924 = vmatpush1.msra.mxu0 %v854
    %925 = vmatprep.subr.mxu0 0.0
    %926 = vmatpush1.msra.mxu0 %v855
    %927 = vmatprep.subr.mxu0 0.0
    %928 = vmatpush1.msra.mxu0 %v856
    %929 = vmatprep.subr.mxu0 0.0
    %930 = vmatpush1.msra.mxu0 %v857
    %931 = vmatprep.subr.mxu0 0.0
    %932 = vmatpush1.msra.mxu0 %v858
    %933 = vmatprep.subr.mxu0 0.0
    %934 = vmatpush1.msra.mxu0 %v859
    %935 = vmatprep.subr.mxu0 0.0
    %936 = vmatpush1.msra.mxu0 %v860
    %937 = vmatprep.subr.mxu0 0.0
    %938 = vmatpush1.msra.mxu0 %v861
    %939 = vmatprep.subr.mxu0 0.0
    %940 = vmatpush1.msra.mxu0 %v862
    %941 = vmatprep.subr.mxu0 0.0
    %942 = vmatpush1.msra.mxu0 %v863
    %943 = vmatprep.subr.mxu0 0.0
    %944 = vmatpush1.msra.mxu0 %v864
    %945 = vmatprep.subr.mxu0 0.0
    %946 = vmatpush1.msra.mxu0 %v865
    %947 = vmatprep.subr.mxu0 0.0
    %948 = vmatpush1.msra.mxu0 %v866
    %949 = vmatprep.subr.mxu0 0.0
    %950 = vmatpush1.msra.mxu0 %v867
    %951 = vmatprep.subr.mxu0 0.0
    %952 = vmatpush1.msra.mxu0 %v868
    %953 = vmatprep.mubr.f32.mxu0 %v834
    %954 = vmatmul.mubr.f32.gmra.mrb[0].mxu0 %v825
    %v955 = vpop.f32.mrb[0].mxu0
    %v956 = vadd.f32 %v878, %v955
    %v957 = vpop.f32.mrb[0].mxu0
    %958 = vmatprep.mubr.f32.mxu0 %v835
    %959 = vmatmul.mubr.f32.gmra.mrb[0].mxu0 %v826
    %v960 = vpop.f32.mrb[0].mxu0
    %v961 = vadd.f32 %v878, %v960
    %v962 = vpop.f32.mrb[0].mxu0
    %963 = vmatprep.mubr.f32.mxu0 %v836
    %964 = vmatmul.mubr.f32.gmra.mrb[0].mxu0 %v827
    %v965 = vpop.f32.mrb[0].mxu0
    %v966 = vadd.f32 %v878, %v965
    %v967 = vpop.f32.mrb[0].mxu0
    %968 = vdwg.mxu0
    %969 = vmatprep.subr.mxu0 0.0
    %970 = vmatpush1.msra.mxu0 %v869
    %971 = vmatprep.subr.mxu0 0.0
    %972 = vmatpush1.msra.mxu0 %v870
    %973 = vmatprep.subr.mxu0 0.0
    %974 = vmatpush1.msra.mxu0 %v871
    %975 = vmatprep.subr.mxu0 0.0
    %976 = vmatpush1.msra.mxu0 %v872
    %977 = vmatprep.subr.mxu0 0.0
    %978 = vmatpush1.msra.mxu0 0.0
    %979 = vmatprep.subr.mxu0 0.0
    %980 = vmatpush1.msra.mxu0 0.0
    %981 = vmatprep.subr.mxu0 0.0
    %982 = vmatpush1.msra.mxu0 0.0
    %983 = vmatprep.subr.mxu0 0.0
    %984 = vmatpush1.msra.mxu0 0.0
    %985 = vmatprep.subr.mxu0 0.0
    %986 = vmatpush1.msra.mxu0 0.0
    %987 = vmatprep.subr.mxu0 0.0
    %988 = vmatpush1.msra.mxu0 0.0
    %989 = vmatprep.subr.mxu0 0.0
    %990 = vmatpush1.msra.mxu0 0.0
    %991 = vmatprep.subr.mxu0 0.0
    %992 = vmatpush1.msra.mxu0 0.0
    %993 = vmatprep.subr.mxu0 0.0
    %994 = vmatpush1.msra.mxu0 0.0
    %995 = vmatprep.subr.mxu0 0.0
    %996 = vmatpush1.msra.mxu0 0.0
    %997 = vmatprep.subr.mxu0 0.0
    %998 = vmatpush1.msra.mxu0 0.0
    %999 = vmatprep.subr.mxu0 0.0
    %1000 = vmatpush1.msra.mxu0 0.0
    %1001 = vmatprep.subr.mxu0 0.0
    %1002 = vmatpush1.msra.mxu0 0.0
    %1003 = vmatprep.subr.mxu0 0.0
    %1004 = vmatpush1.msra.mxu0 0.0
    %1005 = vmatprep.subr.mxu0 0.0
    %1006 = vmatpush1.msra.mxu0 0.0
    %1007 = vmatprep.subr.mxu0 0.0
    %1008 = vmatpush1.msra.mxu0 0.0
    %1009 = vmatprep.subr.mxu0 0.0
    %1010 = vmatpush1.msra.mxu0 0.0
    %1011 = vmatprep.subr.mxu0 0.0
    %1012 = vmatpush1.msra.mxu0 0.0
    %1013 = vmatprep.subr.mxu0 0.0
    %1014 = vmatpush1.msra.mxu0 0.0
    %1015 = vmatprep.subr.mxu0 0.0
    %1016 = vmatpush1.msra.mxu0 0.0
    %1017 = vmatprep.subr.mxu0 0.0
    %1018 = vmatpush1.msra.mxu0 0.0
    %1019 = vmatprep.subr.mxu0 0.0
    %1020 = vmatpush1.msra.mxu0 0.0
    %1021 = vmatprep.subr.mxu0 0.0
    %1022 = vmatpush1.msra.mxu0 0.0
    %1023 = vmatprep.subr.mxu0 0.0
    %1024 = vmatpush1.msra.mxu0 0.0
    %1025 = vmatprep.subr.mxu0 0.0
    %1026 = vmatpush1.msra.mxu0 0.0
    %1027 = vmatprep.subr.mxu0 0.0
    %1028 = vmatpush1.msra.mxu0 0.0
    %1029 = vmatprep.subr.mxu0 0.0
    %1030 = vmatpush1.msra.mxu0 0.0
    %1031 = vmatprep.subr.mxu0 0.0
    %1032 = vmatpush1.msra.mxu0 0.0
    %1033 = vmatprep.mubr.f32.mxu0 0.0
    %1034 = vmatmul.mubr.f32.gmra.mrb[0].mxu0 %v881
    %v1035 = vpop.f32.mrb[0].mxu0
    %v1036 = vadd.f32 %v956, %v1035
    %v1037 = vpop.f32.mrb[0].mxu0
    %1038 = vmatprep.mubr.f32.mxu0 0.0
    %1039 = vmatmul.mubr.f32.gmra.mrb[0].mxu0 %v884
    %v1040 = vpop.f32.mrb[0].mxu0
    %v1041 = vadd.f32 %v961, %v1040
    %v1042 = vpop.f32.mrb[0].mxu0
    %1043 = vmatprep.mubr.f32.mxu0 0.0
    %1044 = vmatmul.mubr.f32.gmra.mrb[0].mxu0 %v887
    %v1045 = vpop.f32.mrb[0].mxu0
    %v1046 = vadd.f32 %v966, %v1045
    %v1047 = vpop.f32.mrb[0].mxu0
    %1048 = vdwg.mxu0
    %v1049 = vmax.f32 %v1036, 0.0
    %v1050 = vmax.f32 %v1041, 0.0
    %v1051 = vmax.f32 %v1046, 0.0
    %1053 = vrot.lane.b32.xlu0 %v1050, 32
    %v1054 = vpop.permute.xlu0 %1053
    %1057 = vrot.lane.b32.xlu0 %v1051, 64
    %v1058 = vpop.permute.xlu0 %1057
    %v1060 = vsel %vm816, %v1049, %v1054
    %v1061 = vsel %vm820, %v1060, %v1058
    %v1062 = vld [vmem:[%s17] sm:$0xff]
    %v1063 = vld [vmem:[%s17 + $0x8] sm:$0xff]
    %v1064 = vld [vmem:[%s17 + $0x10] sm:$0xff]
    %v1065 = vld [vmem:[%s17 + $0x18] sm:$0xff]
    %v1066 = vld [vmem:[%s17 + $0x20] sm:$0xff]
    %v1067 = vld [vmem:[%s17 + $0x28] sm:$0xff]
    %v1068 = vld [vmem:[%s17 + $0x30] sm:$0xff]
    %v1069 = vld [vmem:[%s17 + $0x38] sm:$0xff]
    %v1070 = vld [vmem:[%s17 + $0x40] sm:$0xff]
    %v1071 = vld [vmem:[%s17 + $0x48] sm:$0xff]
    %v1072 = vld [vmem:[%s17 + $0x50] sm:$0xff]
    %v1073 = vld [vmem:[%s17 + $0x58] sm:$0xff]
    %v1074 = vld [vmem:[%s19] sm:$0x1]
    %v1076 = vlaneseq
    %v1077 = vshrl.u32 %v1076, 7
    %v1078 = vsub.s32 0, %v1077
    %v1079 = vrot.slane %v1074, %v1078
    %v1082 = vsel %vm824, %v1061, 0
    %1084 = vmatprep.subr.mxu0 0.0
    %1085 = vmatpush1.msra.mxu0 %v1062
    %1086 = vmatprep.subr.mxu0 0.0
    %1087 = vmatpush1.msra.mxu0 %v1063
    %1088 = vmatprep.subr.mxu0 0.0
    %1089 = vmatpush1.msra.mxu0 %v1064
    %1090 = vmatprep.subr.mxu0 0.0
    %1091 = vmatpush1.msra.mxu0 %v1065
    %1092 = vmatprep.subr.mxu0 0.0
    %1093 = vmatpush1.msra.mxu0 %v1066
    %1094 = vmatprep.subr.mxu0 0.0
    %1095 = vmatpush1.msra.mxu0 %v1067
    %1096 = vmatprep.subr.mxu0 0.0
    %1097 = vmatpush1.msra.mxu0 %v1068
    %1098 = vmatprep.subr.mxu0 0.0
    %1099 = vmatpush1.msra.mxu0 %v1069
    %1100 = vmatprep.subr.mxu0 0.0
    %1101 = vmatpush1.msra.mxu0 %v1070
    %1102 = vmatprep.subr.mxu0 0.0
    %1103 = vmatpush1.msra.mxu0 %v1071
    %1104 = vmatprep.subr.mxu0 0.0
    %1105 = vmatpush1.msra.mxu0 %v1072
    %1106 = vmatprep.subr.mxu0 0.0
    %1107 = vmatpush1.msra.mxu0 %v1073
    %1108 = vmatprep.subr.mxu0 0.0
    %1109 = vmatpush1.msra.mxu0 0.0
    %1110 = vmatprep.subr.mxu0 0.0
    %1111 = vmatpush1.msra.mxu0 0.0
    %1112 = vmatprep.subr.mxu0 0.0
    %1113 = vmatpush1.msra.mxu0 0.0
    %1114 = vmatprep.subr.mxu0 0.0
    %1115 = vmatpush1.msra.mxu0 0.0
    %1116 = vmatprep.subr.mxu0 0.0
    %1117 = vmatpush1.msra.mxu0 0.0
    %1118 = vmatprep.subr.mxu0 0.0
    %1119 = vmatpush1.msra.mxu0 0.0
    %1120 = vmatprep.subr.mxu0 0.0
    %1121 = vmatpush1.msra.mxu0 0.0
    %1122 = vmatprep.subr.mxu0 0.0
    %1123 = vmatpush1.msra.mxu0 0.0
    %1124 = vmatprep.subr.mxu0 0.0
    %1125 = vmatpush1.msra.mxu0 0.0
    %1126 = vmatprep.subr.mxu0 0.0
    %1127 = vmatpush1.msra.mxu0 0.0
    %1128 = vmatprep.subr.mxu0 0.0
    %1129 = vmatpush1.msra.mxu0 0.0
    %1130 = vmatprep.subr.mxu0 0.0
    %1131 = vmatpush1.msra.mxu0 0.0
    %1132 = vmatprep.subr.mxu0 0.0
    %1133 = vmatpush1.msra.mxu0 0.0
    %1134 = vmatprep.subr.mxu0 0.0
    %1135 = vmatpush1.msra.mxu0 0.0
    %1136 = vmatprep.subr.mxu0 0.0
    %1137 = vmatpush1.msra.mxu0 0.0
    %1138 = vmatprep.subr.mxu0 0.0
    %1139 = vmatpush1.msra.mxu0 0.0
    %1140 = vmatprep.subr.mxu0 0.0
    %1141 = vmatpush1.msra.mxu0 0.0
    %1142 = vmatprep.subr.mxu0 0.0
    %1143 = vmatpush1.msra.mxu0 0.0
    %1144 = vmatprep.subr.mxu0 0.0
    %1145 = vmatpush1.msra.mxu0 0.0
    %1146 = vmatprep.subr.mxu0 0.0
    %1147 = vmatpush1.msra.mxu0 0.0
    %1148 = vmatprep.mubr.f32.mxu0 0.0
    %1149 = vmatmul.mubr.f32.gmra.mrb[0].mxu0 %v1082
    %v1150 = vpop.f32.mrb[0].mxu0
    %v1151 = vadd.f32 %v1079, %v1150
    %v1152 = vpop.f32.mrb[0].mxu0
    %1153 = vdwg.mxu0
    %v1154 = vmul.f32 %v1151, 5.656854
    %v1155 = vld [vmem:[%s21] sm:$0xff]
    %v1156 = vadd.f32 %v1154, %v1155
    %v1157 = vld [vmem:[%s23] sm:$0x1]
    %vm1158 = vcmp.gt.f32.partialorder %v1157, 0.0
    %s1159 = scalar_lea.vmem %s23, 1
    %v1160 = vld [vmem:[%s1159] sm:$0x1]
    %vm1161 = vcmp.gt.f32.partialorder %v1160, 0.0
    %v1162 = vld [vmem:[%s27] sm:$0x1]
    %v1163 = vld [vmem:[%s29] sm:$0x1]
    %v1164 = vsel %vm816, %v1156, 0.0
    %1165 = vadd.xlane.f32.xlu0 %v1164
    %v1166 = vpop.xlane.xlu0 %1165
    %v1167 = vrcp.pop 32.0
    %v1168 = vmul.f32 %v1166, %v1167
    %v1169 = vsub.f32 %v1156, %v1168
    %v1170 = vmul.f32 %v1169, %v1169
    %v1171 = vsel %vm816, %v1170, 0.0
    %1172 = vadd.xlane.f32.xlu0 %v1171
    %v1173 = vpop.xlane.xlu0 %1172
    %v1174 = vmul.f32 %v1173, %v1167
    %v1175 = vadd.f32 %v1174, 1e-05
    %v1176 = vrsqrt.pop %v1175
    %v1177 = vmul.f32 %v1169, %v1176
    %v1179 = vlaneseq
    %v1180 = vshrl.u32 %v1179, 7
    %v1181 = vsub.s32 0, %v1180
    %v1182 = vrot.slane %v1162, %v1181
    %v1184 = vmul.f32 %v1177, %v1182
    %v1186 = vlaneseq
    %v1187 = vshrl.u32 %v1186, 7
    %v1188 = vsub.s32 0, %v1187
    %v1189 = vrot.slane %v1163, %v1188
    %v1191 = vadd.f32 %v1184, %v1189
    %v1192 = vld [vmem:[%s31] sm:$0xff]
    %v1193 = vld [vmem:[%s31 + $0x8] sm:$0xff]
    %v1194 = vld [vmem:[%s31 + $0x10] sm:$0xff]
    %v1195 = vld [vmem:[%s31 + $0x18] sm:$0xff]
    %v1196 = vld [vmem:[%s33] sm:$0x1]
    %v1198 = vlaneseq
    %v1199 = vshrl.u32 %v1198, 7
    %v1200 = vsub.s32 0, %v1199
    %v1201 = vrot.slane %v1196, %v1200
    %v1204 = vsel %vm816, %v1191, 0
    %1206 = vmatprep.subr.mxu0 0.0
    %1207 = vmatpush1.msra.mxu0 %v1192
    %1208 = vmatprep.subr.mxu0 0.0
    %1209 = vmatpush1.msra.mxu0 %v1193
    %1210 = vmatprep.subr.mxu0 0.0
    %1211 = vmatpush1.msra.mxu0 %v1194
    %1212 = vmatprep.subr.mxu0 0.0
    %1213 = vmatpush1.msra.mxu0 %v1195
    %1214 = vmatprep.subr.mxu0 0.0
    %1215 = vmatpush1.msra.mxu0 0.0
    %1216 = vmatprep.subr.mxu0 0.0
    %1217 = vmatpush1.msra.mxu0 0.0
    %1218 = vmatprep.subr.mxu0 0.0
    %1219 = vmatpush1.msra.mxu0 0.0
    %1220 = vmatprep.subr.mxu0 0.0
    %1221 = vmatpush1.msra.mxu0 0.0
    %1222 = vmatprep.subr.mxu0 0.0
    %1223 = vmatpush1.msra.mxu0 0.0
    %1224 = vmatprep.subr.mxu0 0.0
    %1225 = vmatpush1.msra.mxu0 0.0
    %1226 = vmatprep.subr.mxu0 0.0
    %1227 = vmatpush1.msra.mxu0 0.0
    %1228 = vmatprep.subr.mxu0 0.0
    %1229 = vmatpush1.msra.mxu0 0.0
    %1230 = vmatprep.subr.mxu0 0.0
    %1231 = vmatpush1.msra.mxu0 0.0
    %1232 = vmatprep.subr.mxu0 0.0
    %1233 = vmatpush1.msra.mxu0 0.0
    %1234 = vmatprep.subr.mxu0 0.0
    %1235 = vmatpush1.msra.mxu0 0.0
    %1236 = vmatprep.subr.mxu0 0.0
    %1237 = vmatpush1.msra.mxu0 0.0
    %1238 = vmatprep.subr.mxu0 0.0
    %1239 = vmatpush1.msra.mxu0 0.0
    %1240 = vmatprep.subr.mxu0 0.0
    %1241 = vmatpush1.msra.mxu0 0.0
    %1242 = vmatprep.subr.mxu0 0.0
    %1243 = vmatpush1.msra.mxu0 0.0
    %1244 = vmatprep.subr.mxu0 0.0
    %1245 = vmatpush1.msra.mxu0 0.0
    %1246 = vmatprep.subr.mxu0 0.0
    %1247 = vmatpush1.msra.mxu0 0.0
    %1248 = vmatprep.subr.mxu0 0.0
    %1249 = vmatpush1.msra.mxu0 0.0
    %1250 = vmatprep.subr.mxu0 0.0
    %1251 = vmatpush1.msra.mxu0 0.0
    %1252 = vmatprep.subr.mxu0 0.0
    %1253 = vmatpush1.msra.mxu0 0.0
    %1254 = vmatprep.subr.mxu0 0.0
    %1255 = vmatpush1.msra.mxu0 0.0
    %1256 = vmatprep.subr.mxu0 0.0
    %1257 = vmatpush1.msra.mxu0 0.0
    %1258 = vmatprep.subr.mxu0 0.0
    %1259 = vmatpush1.msra.mxu0 0.0
    %1260 = vmatprep.subr.mxu0 0.0
    %1261 = vmatpush1.msra.mxu0 0.0
    %1262 = vmatprep.subr.mxu0 0.0
    %1263 = vmatpush1.msra.mxu0 0.0
    %1264 = vmatprep.subr.mxu0 0.0
    %1265 = vmatpush1.msra.mxu0 0.0
    %1266 = vmatprep.subr.mxu0 0.0
    %1267 = vmatpush1.msra.mxu0 0.0
    %1268 = vmatprep.subr.mxu0 0.0
    %1269 = vmatpush1.msra.mxu0 0.0
    %1270 = vmatprep.mubr.f32.mxu0 0.0
    %1271 = vmatmul.mubr.f32.gmra.mrb[0].mxu0 %v1204
    %v1272 = vpop.f32.mrb[0].mxu0
    %v1273 = vadd.f32 %v1201, %v1272
    %v1274 = vpop.f32.mrb[0].mxu0
    %1275 = vdwg.mxu0
    %v1276 = vld [vmem:[%s25] sm:$0xff]
    %1278 = vrot.lane.b32.xlu0 %v1273, 96
    %v1279 = vpop.permute.xlu0 %1278
    %vm1281 = vcmask 523268
    %1282 = vst.msk [vmem:[%s61 - $0x4] sm:$0xf0] %vm1281, %v1276
    %vm1283 = vcmask 519168
    %1284 = vst.msk [vmem:[%s61 + $0x4] sm:$0xf] %vm1283, %v1279
    %1285 = vrot.lane.b32.xlu0 %v1273, 120
    %v1286 = vpop.permute.xlu0 %1285
    %1287 = vrot.lane.b32.xlu0 %v1273, 112
    %v1288 = vpop.permute.xlu0 %1287
    %1289 = vrot.lane.b32.xlu0 %v1273, 104
    %v1290 = vpop.permute.xlu0 %1289
    %1292 = vrot.lane.b32.xlu0 %v1276, 120
    %v1293 = vpop.permute.xlu0 %1292
    %1294 = vrot.lane.b32.xlu0 %v1279, 120
    %v1295 = vpop.permute.xlu0 %1294
    %1296 = vrot.lane.b32.xlu0 %v1276, 112
    %v1297 = vpop.permute.xlu0 %1296
    %1298 = vrot.lane.b32.xlu0 %v1279, 112
    %v1299 = vpop.permute.xlu0 %1298
    %1300 = vrot.lane.b32.xlu0 %v1276, 104
    %v1301 = vpop.permute.xlu0 %1300
    %1302 = vrot.lane.b32.xlu0 %v1279, 104
    %v1303 = vpop.permute.xlu0 %1302
    %vm1304 = vcmask 64512
    %v1305 = vsel %vm1304, %v1273, 0
    %v1307 = vsel %vm1304, %v1276, 0
    %v1309 = vsel %vm1304, %v1279, 0
    %1311 = vmatprep.subr.mxu0 0.0
    %1312 = vmatpush1.xpose.msra.mxu0 %v1307
    %1313 = vmatprep.subr.mxu0 0.0
    %1314 = vmatpush1.xpose.msra.mxu0 %v1309
    %1315 = vmatprep.subr.mxu0 0.0
    %1316 = vmatpush1.xpose.msra.mxu0 0.0
    %1317 = vmatprep.subr.mxu0 0.0
    %1318 = vmatpush1.xpose.msra.mxu0 0.0
    %1319 = vmatprep.subr.mxu0 0.0
    %1320 = vmatpush1.xpose.msra.mxu0 0.0
    %1321 = vmatprep.subr.mxu0 0.0
    %1322 = vmatpush1.xpose.msra.mxu0 0.0
    %1323 = vmatprep.subr.mxu0 0.0
    %1324 = vmatpush1.xpose.msra.mxu0 0.0
    %1325 = vmatprep.subr.mxu0 0.0
    %1326 = vmatpush1.xpose.msra.mxu0 0.0
    %1327 = vmatprep.subr.mxu0 0.0
    %1328 = vmatpush1.xpose.msra.mxu0 0.0
    %1329 = vmatprep.subr.mxu0 0.0
    %1330 = vmatpush1.xpose.msra.mxu0 0.0
    %1331 = vmatprep.subr.mxu0 0.0
    %1332 = vmatpush1.xpose.msra.mxu0 0.0
    %1333 = vmatprep.subr.mxu0 0.0
    %1334 = vmatpush1.xpose.msra.mxu0 0.0
    %1335 = vmatprep.subr.mxu0 0.0
    %1336 = vmatpush1.xpose.msra.mxu0 0.0
    %1337 = vmatprep.subr.mxu0 0.0
    %1338 = vmatpush1.xpose.msra.mxu0 0.0
    %1339 = vmatprep.subr.mxu0 0.0
    %1340 = vmatpush1.xpose.msra.mxu0 0.0
    %1341 = vmatprep.subr.mxu0 0.0
    %1342 = vmatpush1.xpose.msra.mxu0 0.0
    %1343 = vmatprep.subr.mxu0 0.0
    %1344 = vmatpush1.xpose.msra.mxu0 0.0
    %1345 = vmatprep.subr.mxu0 0.0
    %1346 = vmatpush1.xpose.msra.mxu0 0.0
    %1347 = vmatprep.subr.mxu0 0.0
    %1348 = vmatpush1.xpose.msra.mxu0 0.0
    %1349 = vmatprep.subr.mxu0 0.0
    %1350 = vmatpush1.xpose.msra.mxu0 0.0
    %1351 = vmatprep.subr.mxu0 0.0
    %1352 = vmatpush1.xpose.msra.mxu0 0.0
    %1353 = vmatprep.subr.mxu0 0.0
    %1354 = vmatpush1.xpose.msra.mxu0 0.0
    %1355 = vmatprep.subr.mxu0 0.0
    %1356 = vmatpush1.xpose.msra.mxu0 0.0
    %1357 = vmatprep.subr.mxu0 0.0
    %1358 = vmatpush1.xpose.msra.mxu0 0.0
    %1359 = vmatprep.subr.mxu0 0.0
    %1360 = vmatpush1.xpose.msra.mxu0 0.0
    %1361 = vmatprep.subr.mxu0 0.0
    %1362 = vmatpush1.xpose.msra.mxu0 0.0
    %1363 = vmatprep.subr.mxu0 0.0
    %1364 = vmatpush1.xpose.msra.mxu0 0.0
    %1365 = vmatprep.subr.mxu0 0.0
    %1366 = vmatpush1.xpose.msra.mxu0 0.0
    %1367 = vmatprep.subr.mxu0 0.0
    %1368 = vmatpush1.xpose.msra.mxu0 0.0
    %1369 = vmatprep.subr.mxu0 0.0
    %1370 = vmatpush1.xpose.msra.mxu0 0.0
    %1371 = vmatprep.subr.mxu0 0.0
    %1372 = vmatpush1.xpose.msra.mxu0 0.0
    %1373 = vmatprep.subr.mxu0 0.0
    %1374 = vmatpush1.xpose.msra.mxu0 0.0
    %1375 = vmatprep.mubr.f32.mxu0 0.0
    %1376 = vmatmul.mubr.f32.gmra.mrb[0].mxu0 %v1305
    %v1377 = vpop.f32.mrb[0].mxu0
    %v1378 = vadd.f32 0.0, %v1377
    %v1379 = vpop.f32.mrb[0].mxu0
    %1380 = vdwg.mxu0
    %v1381 = vsel %vm1304, %v1286, 0
    %v1383 = vsel %vm1304, %v1293, 0
    %v1385 = vsel %vm1304, %v1295, 0
    %1387 = vmatprep.subr.mxu0 0.0
    %1388 = vmatpush1.xpose.msra.mxu0 %v1383
    %1389 = vmatprep.subr.mxu0 0.0
    %1390 = vmatpush1.xpose.msra.mxu0 %v1385
    %1391 = vmatprep.subr.mxu0 0.0
    %1392 = vmatpush1.xpose.msra.mxu0 0.0
    %1393 = vmatprep.subr.mxu0 0.0
    %1394 = vmatpush1.xpose.msra.mxu0 0.0
    %1395 = vmatprep.subr.mxu0 0.0
    %1396 = vmatpush1.xpose.msra.mxu0 0.0
    %1397 = vmatprep.subr.mxu0 0.0
    %1398 = vmatpush1.xpose.msra.mxu0 0.0
    %1399 = vmatprep.subr.mxu0 0.0
    %1400 = vmatpush1.xpose.msra.mxu0 0.0
    %1401 = vmatprep.subr.mxu0 0.0
    %1402 = vmatpush1.xpose.msra.mxu0 0.0
    %1403 = vmatprep.subr.mxu0 0.0
    %1404 = vmatpush1.xpose.msra.mxu0 0.0
    %1405 = vmatprep.subr.mxu0 0.0
    %1406 = vmatpush1.xpose.msra.mxu0 0.0
    %1407 = vmatprep.subr.mxu0 0.0
    %1408 = vmatpush1.xpose.msra.mxu0 0.0
    %1409 = vmatprep.subr.mxu0 0.0
    %1410 = vmatpush1.xpose.msra.mxu0 0.0
    %1411 = vmatprep.subr.mxu0 0.0
    %1412 = vmatpush1.xpose.msra.mxu0 0.0
    %1413 = vmatprep.subr.mxu0 0.0
    %1414 = vmatpush1.xpose.msra.mxu0 0.0
    %1415 = vmatprep.subr.mxu0 0.0
    %1416 = vmatpush1.xpose.msra.mxu0 0.0
    %1417 = vmatprep.subr.mxu0 0.0
    %1418 = vmatpush1.xpose.msra.mxu0 0.0
    %1419 = vmatprep.subr.mxu0 0.0
    %1420 = vmatpush1.xpose.msra.mxu0 0.0
    %1421 = vmatprep.subr.mxu0 0.0
    %1422 = vmatpush1.xpose.msra.mxu0 0.0
    %1423 = vmatprep.subr.mxu0 0.0
    %1424 = vmatpush1.xpose.msra.mxu0 0.0
    %1425 = vmatprep.subr.mxu0 0.0
    %1426 = vmatpush1.xpose.msra.mxu0 0.0
    %1427 = vmatprep.subr.mxu0 0.0
    %1428 = vmatpush1.xpose.msra.mxu0 0.0
    %1429 = vmatprep.subr.mxu0 0.0
    %1430 = vmatpush1.xpose.msra.mxu0 0.0
    %1431 = vmatprep.subr.mxu0 0.0
    %1432 = vmatpush1.xpose.msra.mxu0 0.0
    %1433 = vmatprep.subr.mxu0 0.0
    %1434 = vmatpush1.xpose.msra.mxu0 0.0
    %1435 = vmatprep.subr.mxu0 0.0
    %1436 = vmatpush1.xpose.msra.mxu0 0.0
    %1437 = vmatprep.subr.mxu0 0.0
    %1438 = vmatpush1.xpose.msra.mxu0 0.0
    %1439 = vmatprep.subr.mxu0 0.0
    %1440 = vmatpush1.xpose.msra.mxu0 0.0
    %1441 = vmatprep.subr.mxu0 0.0
    %1442 = vmatpush1.xpose.msra.mxu0 0.0
    %1443 = vmatprep.subr.mxu0 0.0
    %1444 = vmatpush1.xpose.msra.mxu0 0.0
    %1445 = vmatprep.subr.mxu0 0.0
    %1446 = vmatpush1.xpose.msra.mxu0 0.0
    %1447 = vmatprep.subr.mxu0 0.0
    %1448 = vmatpush1.xpose.msra.mxu0 0.0
    %1449 = vmatprep.subr.mxu0 0.0
    %1450 = vmatpush1.xpose.msra.mxu0 0.0
    %1451 = vmatprep.mubr.f32.mxu0 0.0
    %1452 = vmatmul.mubr.f32.gmra.mrb[0].mxu0 %v1381
    %v1453 = vpop.f32.mrb[0].mxu0
    %v1454 = vadd.f32 0.0, %v1453
    %v1455 = vpop.f32.mrb[0].mxu0
    %1456 = vdwg.mxu0
    %v1457 = vsel %vm1304, %v1288, 0
    %v1459 = vsel %vm1304, %v1297, 0
    %v1461 = vsel %vm1304, %v1299, 0
    %1463 = vmatprep.subr.mxu0 0.0
    %1464 = vmatpush1.xpose.msra.mxu0 %v1459
    %1465 = vmatprep.subr.mxu0 0.0
    %1466 = vmatpush1.xpose.msra.mxu0 %v1461
    %1467 = vmatprep.subr.mxu0 0.0
    %1468 = vmatpush1.xpose.msra.mxu0 0.0
    %1469 = vmatprep.subr.mxu0 0.0
    %1470 = vmatpush1.xpose.msra.mxu0 0.0
    %1471 = vmatprep.subr.mxu0 0.0
    %1472 = vmatpush1.xpose.msra.mxu0 0.0
    %1473 = vmatprep.subr.mxu0 0.0
    %1474 = vmatpush1.xpose.msra.mxu0 0.0
    %1475 = vmatprep.subr.mxu0 0.0
    %1476 = vmatpush1.xpose.msra.mxu0 0.0
    %1477 = vmatprep.subr.mxu0 0.0
    %1478 = vmatpush1.xpose.msra.mxu0 0.0
    %1479 = vmatprep.subr.mxu0 0.0
    %1480 = vmatpush1.xpose.msra.mxu0 0.0
    %1481 = vmatprep.subr.mxu0 0.0
    %1482 = vmatpush1.xpose.msra.mxu0 0.0
    %1483 = vmatprep.subr.mxu0 0.0
    %1484 = vmatpush1.xpose.msra.mxu0 0.0
    %1485 = vmatprep.subr.mxu0 0.0
    %1486 = vmatpush1.xpose.msra.mxu0 0.0
    %1487 = vmatprep.subr.mxu0 0.0
    %1488 = vmatpush1.xpose.msra.mxu0 0.0
    %1489 = vmatprep.subr.mxu0 0.0
    %1490 = vmatpush1.xpose.msra.mxu0 0.0
    %1491 = vmatprep.subr.mxu0 0.0
    %1492 = vmatpush1.xpose.msra.mxu0 0.0
    %1493 = vmatprep.subr.mxu0 0.0
    %1494 = vmatpush1.xpose.msra.mxu0 0.0
    %1495 = vmatprep.subr.mxu0 0.0
    %1496 = vmatpush1.xpose.msra.mxu0 0.0
    %1497 = vmatprep.subr.mxu0 0.0
    %1498 = vmatpush1.xpose.msra.mxu0 0.0
    %1499 = vmatprep.subr.mxu0 0.0
    %1500 = vmatpush1.xpose.msra.mxu0 0.0
    %1501 = vmatprep.subr.mxu0 0.0
    %1502 = vmatpush1.xpose.msra.mxu0 0.0
    %1503 = vmatprep.subr.mxu0 0.0
    %1504 = vmatpush1.xpose.msra.mxu0 0.0
    %1505 = vmatprep.subr.mxu0 0.0
    %1506 = vmatpush1.xpose.msra.mxu0 0.0
    %1507 = vmatprep.subr.mxu0 0.0
    %1508 = vmatpush1.xpose.msra.mxu0 0.0
    %1509 = vmatprep.subr.mxu0 0.0
    %1510 = vmatpush1.xpose.msra.mxu0 0.0
    %1511 = vmatprep.subr.mxu0 0.0
    %1512 = vmatpush1.xpose.msra.mxu0 0.0
    %1513 = vmatprep.subr.mxu0 0.0
    %1514 = vmatpush1.xpose.msra.mxu0 0.0
    %1515 = vmatprep.subr.mxu0 0.0
    %1516 = vmatpush1.xpose.msra.mxu0 0.0
    %1517 = vmatprep.subr.mxu0 0.0
    %1518 = vmatpush1.xpose.msra.mxu0 0.0
    %1519 = vmatprep.subr.mxu0 0.0
    %1520 = vmatpush1.xpose.msra.mxu0 0.0
    %1521 = vmatprep.subr.mxu0 0.0
    %1522 = vmatpush1.xpose.msra.mxu0 0.0
    %1523 = vmatprep.subr.mxu0 0.0
    %1524 = vmatpush1.xpose.msra.mxu0 0.0
    %1525 = vmatprep.subr.mxu0 0.0
    %1526 = vmatpush1.xpose.msra.mxu0 0.0
    %1527 = vmatprep.mubr.f32.mxu0 0.0
    %1528 = vmatmul.mubr.f32.gmra.mrb[0].mxu0 %v1457
    %v1529 = vpop.f32.mrb[0].mxu0
    %v1530 = vadd.f32 0.0, %v1529
    %v1531 = vpop.f32.mrb[0].mxu0
    %1532 = vdwg.mxu0
    %v1533 = vsel %vm1304, %v1290, 0
    %v1535 = vsel %vm1304, %v1301, 0
    %v1537 = vsel %vm1304, %v1303, 0
    %1539 = vmatprep.subr.mxu0 0.0
    %1540 = vmatpush1.xpose.msra.mxu0 %v1535
    %1541 = vmatprep.subr.mxu0 0.0
    %1542 = vmatpush1.xpose.msra.mxu0 %v1537
    %1543 = vmatprep.subr.mxu0 0.0
    %1544 = vmatpush1.xpose.msra.mxu0 0.0
    %1545 = vmatprep.subr.mxu0 0.0
    %1546 = vmatpush1.xpose.msra.mxu0 0.0
    %1547 = vmatprep.subr.mxu0 0.0
    %1548 = vmatpush1.xpose.msra.mxu0 0.0
    %1549 = vmatprep.subr.mxu0 0.0
    %1550 = vmatpush1.xpose.msra.mxu0 0.0
    %1551 = vmatprep.subr.mxu0 0.0
    %1552 = vmatpush1.xpose.msra.mxu0 0.0
    %1553 = vmatprep.subr.mxu0 0.0
    %1554 = vmatpush1.xpose.msra.mxu0 0.0
    %1555 = vmatprep.subr.mxu0 0.0
    %1556 = vmatpush1.xpose.msra.mxu0 0.0
    %1557 = vmatprep.subr.mxu0 0.0
    %1558 = vmatpush1.xpose.msra.mxu0 0.0
    %1559 = vmatprep.subr.mxu0 0.0
    %1560 = vmatpush1.xpose.msra.mxu0 0.0
    %1561 = vmatprep.subr.mxu0 0.0
    %1562 = vmatpush1.xpose.msra.mxu0 0.0
    %1563 = vmatprep.subr.mxu0 0.0
    %1564 = vmatpush1.xpose.msra.mxu0 0.0
    %1565 = vmatprep.subr.mxu0 0.0
    %1566 = vmatpush1.xpose.msra.mxu0 0.0
    %1567 = vmatprep.subr.mxu0 0.0
    %1568 = vmatpush1.xpose.msra.mxu0 0.0
    %1569 = vmatprep.subr.mxu0 0.0
    %1570 = vmatpush1.xpose.msra.mxu0 0.0
    %1571 = vmatprep.subr.mxu0 0.0
    %1572 = vmatpush1.xpose.msra.mxu0 0.0
    %1573 = vmatprep.subr.mxu0 0.0
    %1574 = vmatpush1.xpose.msra.mxu0 0.0
    %1575 = vmatprep.subr.mxu0 0.0
    %1576 = vmatpush1.xpose.msra.mxu0 0.0
    %1577 = vmatprep.subr.mxu0 0.0
    %1578 = vmatpush1.xpose.msra.mxu0 0.0
    %1579 = vmatprep.subr.mxu0 0.0
    %1580 = vmatpush1.xpose.msra.mxu0 0.0
    %1581 = vmatprep.subr.mxu0 0.0
    %1582 = vmatpush1.xpose.msra.mxu0 0.0
    %1583 = vmatprep.subr.mxu0 0.0
    %1584 = vmatpush1.xpose.msra.mxu0 0.0
    %1585 = vmatprep.subr.mxu0 0.0
    %1586 = vmatpush1.xpose.msra.mxu0 0.0
    %1587 = vmatprep.subr.mxu0 0.0
    %1588 = vmatpush1.xpose.msra.mxu0 0.0
    %1589 = vmatprep.subr.mxu0 0.0
    %1590 = vmatpush1.xpose.msra.mxu0 0.0
    %1591 = vmatprep.subr.mxu0 0.0
    %1592 = vmatpush1.xpose.msra.mxu0 0.0
    %1593 = vmatprep.subr.mxu0 0.0
    %1594 = vmatpush1.xpose.msra.mxu0 0.0
    %1595 = vmatprep.subr.mxu0 0.0
    %1596 = vmatpush1.xpose.msra.mxu0 0.0
    %1597 = vmatprep.subr.mxu0 0.0
    %1598 = vmatpush1.xpose.msra.mxu0 0.0
    %1599 = vmatprep.subr.mxu0 0.0
    %1600 = vmatpush1.xpose.msra.mxu0 0.0
    %1601 = vmatprep.subr.mxu0 0.0
    %1602 = vmatpush1.xpose.msra.mxu0 0.0
    %1603 = vmatprep.mubr.f32.mxu0 0.0
    %1604 = vmatmul.mubr.f32.gmra.mrb[0].mxu0 %v1533
    %v1605 = vpop.f32.mrb[0].mxu0
    %v1606 = vadd.f32 0.0, %v1605
    %v1607 = vpop.f32.mrb[0].mxu0
    %1608 = vdwg.mxu0
    %v1609 = vmul.f32 %v1378, 0.35355338
    %v1610 = vmul.f32 %v1454, 0.35355338
    %v1611 = vmul.f32 %v1530, 0.35355338
    %v1612 = vmul.f32 %v1606, 0.35355338
    %v1613 = vsel %vm1158, 1, 0
    %v1614 = vlaneseq
    %v1615 = vshrl.u32 %v1614, 7
    %v1616 = vsub.s32 0, %v1615
    %v1617 = vrot.slane %v1613, %v1616
    %vm1618 = vcmp.eq.s32.totalorder %v1617, 1
    %v1619 = vsel %vm1618, %v1609, -1e+30
    %v1620 = vsel %vm1618, %v1610, -1e+30
    %v1621 = vsel %vm1618, %v1611, -1e+30
    %v1622 = vsel %vm1618, %v1612, -1e+30
    %vm1623 = vcmask 93184
    %v1624 = vsel %vm1623, %v1619, -inf
    %1625 = vmax.xlane.f32.xlu0 %v1624
    %v1626 = vpop.xlane.xlu0 %1625
    %v1627 = vsel %vm1623, %v1620, -inf
    %1628 = vmax.xlane.f32.xlu0 %v1627
    %v1629 = vpop.xlane.xlu0 %1628
    %v1630 = vsel %vm1623, %v1621, -inf
    %1631 = vmax.xlane.f32.xlu0 %v1630
    %v1632 = vpop.xlane.xlu0 %1631
    %v1633 = vsel %vm1623, %v1622, -inf
    %1634 = vmax.xlane.f32.xlu0 %v1633
    %v1635 = vpop.xlane.xlu0 %1634
    %v1636 = vsub.f32 %v1619, %v1626
    %v1637 = vsub.f32 %v1620, %v1629
    %v1638 = vsub.f32 %v1621, %v1632
    %v1639 = vsub.f32 %v1622, %v1635
    %v1640 = vmul.f32 %v1636, 1.442695
    %v1641 = vpow.pop %v1640
    %v1642 = vmul.f32 %v1637, 1.442695
    %v1643 = vpow.pop %v1642
    %v1644 = vmul.f32 %v1638, 1.442695
    %v1645 = vpow.pop %v1644
    %v1646 = vmul.f32 %v1639, 1.442695
    %v1647 = vpow.pop %v1646
    %v1648 = vsel %vm1623, %v1641, 0.0
    %1649 = vadd.xlane.f32.xlu0 %v1648
    %v1650 = vpop.xlane.xlu0 %1649
    %v1651 = vsel %vm1623, %v1643, 0.0
    %1652 = vadd.xlane.f32.xlu0 %v1651
    %v1653 = vpop.xlane.xlu0 %1652
    %v1654 = vsel %vm1623, %v1645, 0.0
    %1655 = vadd.xlane.f32.xlu0 %v1654
    %v1656 = vpop.xlane.xlu0 %1655
    %v1657 = vsel %vm1623, %v1647, 0.0
    %1658 = vadd.xlane.f32.xlu0 %v1657
    %v1659 = vpop.xlane.xlu0 %1658
    %v1660 = vmax.f32 %v1650, 1e-30
    %v1661 = vmax.f32 %v1653, 1e-30
    %v1662 = vmax.f32 %v1656, 1e-30
    %v1663 = vmax.f32 %v1659, 1e-30
    %v1664 = vrcp.pop %v1660
    %v1665 = vrcp.pop %v1661
    %v1666 = vrcp.pop %v1662
    %v1667 = vrcp.pop %v1663
    %v1668 = vmul.f32 %v1641, %v1664
    %v1669 = vmul.f32 %v1643, %v1665
    %v1670 = vmul.f32 %v1645, %v1666
    %v1671 = vmul.f32 %v1647, %v1667
    %1672 = vrot.lane.b32.xlu0 %v1276, 96
    %v1673 = vpop.permute.xlu0 %1672
    %1674 = vrot.lane.b32.xlu0 %v1279, 96
    %v1675 = vpop.permute.xlu0 %1674
    %vm1677 = vcmask 97280
    %v1679 = vsel %vm1677, %v1668, 0
    %vm1681 = vcmask 1043456
    %v1682 = vsel %vm1681, %v1675, 0
    %1684 = vmatprep.subr.mxu0 0.0
    %1685 = vmatpush1.msra.mxu0 %v1673
    %1686 = vmatprep.subr.mxu0 0.0
    %1687 = vmatpush1.msra.mxu0 %v1682
    %1688 = vmatprep.subr.mxu0 0.0
    %1689 = vmatpush1.msra.mxu0 0.0
    %1690 = vmatprep.subr.mxu0 0.0
    %1691 = vmatpush1.msra.mxu0 0.0
    %1692 = vmatprep.subr.mxu0 0.0
    %1693 = vmatpush1.msra.mxu0 0.0
    %1694 = vmatprep.subr.mxu0 0.0
    %1695 = vmatpush1.msra.mxu0 0.0
    %1696 = vmatprep.subr.mxu0 0.0
    %1697 = vmatpush1.msra.mxu0 0.0
    %1698 = vmatprep.subr.mxu0 0.0
    %1699 = vmatpush1.msra.mxu0 0.0
    %1700 = vmatprep.subr.mxu0 0.0
    %1701 = vmatpush1.msra.mxu0 0.0
    %1702 = vmatprep.subr.mxu0 0.0
    %1703 = vmatpush1.msra.mxu0 0.0
    %1704 = vmatprep.subr.mxu0 0.0
    %1705 = vmatpush1.msra.mxu0 0.0
    %1706 = vmatprep.subr.mxu0 0.0
    %1707 = vmatpush1.msra.mxu0 0.0
    %1708 = vmatprep.subr.mxu0 0.0
    %1709 = vmatpush1.msra.mxu0 0.0
    %1710 = vmatprep.subr.mxu0 0.0
    %1711 = vmatpush1.msra.mxu0 0.0
    %1712 = vmatprep.subr.mxu0 0.0
    %1713 = vmatpush1.msra.mxu0 0.0
    %1714 = vmatprep.subr.mxu0 0.0
    %1715 = vmatpush1.msra.mxu0 0.0
    %1716 = vmatprep.subr.mxu0 0.0
    %1717 = vmatpush1.msra.mxu0 0.0
    %1718 = vmatprep.subr.mxu0 0.0
    %1719 = vmatpush1.msra.mxu0 0.0
    %1720 = vmatprep.subr.mxu0 0.0
    %1721 = vmatpush1.msra.mxu0 0.0
    %1722 = vmatprep.subr.mxu0 0.0
    %1723 = vmatpush1.msra.mxu0 0.0
    %1724 = vmatprep.subr.mxu0 0.0
    %1725 = vmatpush1.msra.mxu0 0.0
    %1726 = vmatprep.subr.mxu0 0.0
    %1727 = vmatpush1.msra.mxu0 0.0
    %1728 = vmatprep.subr.mxu0 0.0
    %1729 = vmatpush1.msra.mxu0 0.0
    %1730 = vmatprep.subr.mxu0 0.0
    %1731 = vmatpush1.msra.mxu0 0.0
    %1732 = vmatprep.subr.mxu0 0.0
    %1733 = vmatpush1.msra.mxu0 0.0
    %1734 = vmatprep.subr.mxu0 0.0
    %1735 = vmatpush1.msra.mxu0 0.0
    %1736 = vmatprep.subr.mxu0 0.0
    %1737 = vmatpush1.msra.mxu0 0.0
    %1738 = vmatprep.subr.mxu0 0.0
    %1739 = vmatpush1.msra.mxu0 0.0
    %1740 = vmatprep.subr.mxu0 0.0
    %1741 = vmatpush1.msra.mxu0 0.0
    %1742 = vmatprep.subr.mxu0 0.0
    %1743 = vmatpush1.msra.mxu0 0.0
    %1744 = vmatprep.subr.mxu0 0.0
    %1745 = vmatpush1.msra.mxu0 0.0
    %1746 = vmatprep.subr.mxu0 0.0
    %1747 = vmatpush1.msra.mxu0 0.0
    %1748 = vmatprep.mubr.f32.mxu0 0.0
    %1749 = vmatmul.mubr.f32.gmra.mrb[0].mxu0 %v1679
    %v1750 = vpop.f32.mrb[0].mxu0
    %v1751 = vadd.f32 0.0, %v1750
    %v1752 = vpop.f32.mrb[0].mxu0
    %1753 = vdwg.mxu0
    %1754 = vrot.lane.b32.xlu0 %v1293, 96
    %v1755 = vpop.permute.xlu0 %1754
    %1756 = vrot.lane.b32.xlu0 %v1295, 96
    %v1757 = vpop.permute.xlu0 %1756
    %v1760 = vsel %vm1677, %v1669, 0
    %v1762 = vsel %vm1681, %v1757, 0
    %1764 = vmatprep.subr.mxu0 0.0
    %1765 = vmatpush1.msra.mxu0 %v1755
    %1766 = vmatprep.subr.mxu0 0.0
    %1767 = vmatpush1.msra.mxu0 %v1762
    %1768 = vmatprep.subr.mxu0 0.0
    %1769 = vmatpush1.msra.mxu0 0.0
    %1770 = vmatprep.subr.mxu0 0.0
    %1771 = vmatpush1.msra.mxu0 0.0
    %1772 = vmatprep.subr.mxu0 0.0
    %1773 = vmatpush1.msra.mxu0 0.0
    %1774 = vmatprep.subr.mxu0 0.0
    %1775 = vmatpush1.msra.mxu0 0.0
    %1776 = vmatprep.subr.mxu0 0.0
    %1777 = vmatpush1.msra.mxu0 0.0
    %1778 = vmatprep.subr.mxu0 0.0
    %1779 = vmatpush1.msra.mxu0 0.0
    %1780 = vmatprep.subr.mxu0 0.0
    %1781 = vmatpush1.msra.mxu0 0.0
    %1782 = vmatprep.subr.mxu0 0.0
    %1783 = vmatpush1.msra.mxu0 0.0
    %1784 = vmatprep.subr.mxu0 0.0
    %1785 = vmatpush1.msra.mxu0 0.0
    %1786 = vmatprep.subr.mxu0 0.0
    %1787 = vmatpush1.msra.mxu0 0.0
    %1788 = vmatprep.subr.mxu0 0.0
    %1789 = vmatpush1.msra.mxu0 0.0
    %1790 = vmatprep.subr.mxu0 0.0
    %1791 = vmatpush1.msra.mxu0 0.0
    %1792 = vmatprep.subr.mxu0 0.0
    %1793 = vmatpush1.msra.mxu0 0.0
    %1794 = vmatprep.subr.mxu0 0.0
    %1795 = vmatpush1.msra.mxu0 0.0
    %1796 = vmatprep.subr.mxu0 0.0
    %1797 = vmatpush1.msra.mxu0 0.0
    %1798 = vmatprep.subr.mxu0 0.0
    %1799 = vmatpush1.msra.mxu0 0.0
    %1800 = vmatprep.subr.mxu0 0.0
    %1801 = vmatpush1.msra.mxu0 0.0
    %1802 = vmatprep.subr.mxu0 0.0
    %1803 = vmatpush1.msra.mxu0 0.0
    %1804 = vmatprep.subr.mxu0 0.0
    %1805 = vmatpush1.msra.mxu0 0.0
    %1806 = vmatprep.subr.mxu0 0.0
    %1807 = vmatpush1.msra.mxu0 0.0
    %1808 = vmatprep.subr.mxu0 0.0
    %1809 = vmatpush1.msra.mxu0 0.0
    %1810 = vmatprep.subr.mxu0 0.0
    %1811 = vmatpush1.msra.mxu0 0.0
    %1812 = vmatprep.subr.mxu0 0.0
    %1813 = vmatpush1.msra.mxu0 0.0
    %1814 = vmatprep.subr.mxu0 0.0
    %1815 = vmatpush1.msra.mxu0 0.0
    %1816 = vmatprep.subr.mxu0 0.0
    %1817 = vmatpush1.msra.mxu0 0.0
    %1818 = vmatprep.subr.mxu0 0.0
    %1819 = vmatpush1.msra.mxu0 0.0
    %1820 = vmatprep.subr.mxu0 0.0
    %1821 = vmatpush1.msra.mxu0 0.0
    %1822 = vmatprep.subr.mxu0 0.0
    %1823 = vmatpush1.msra.mxu0 0.0
    %1824 = vmatprep.subr.mxu0 0.0
    %1825 = vmatpush1.msra.mxu0 0.0
    %1826 = vmatprep.subr.mxu0 0.0
    %1827 = vmatpush1.msra.mxu0 0.0
    %1828 = vmatprep.mubr.f32.mxu0 0.0
    %1829 = vmatmul.mubr.f32.gmra.mrb[0].mxu0 %v1760
    %v1830 = vpop.f32.mrb[0].mxu0
    %v1831 = vadd.f32 0.0, %v1830
    %v1832 = vpop.f32.mrb[0].mxu0
    %1833 = vdwg.mxu0
    %1834 = vrot.lane.b32.xlu0 %v1297, 96
    %v1835 = vpop.permute.xlu0 %1834
    %1836 = vrot.lane.b32.xlu0 %v1299, 96
    %v1837 = vpop.permute.xlu0 %1836
    %v1840 = vsel %vm1677, %v1670, 0
    %v1842 = vsel %vm1681, %v1837, 0
    %1844 = vmatprep.subr.mxu0 0.0
    %1845 = vmatpush1.msra.mxu0 %v1835
    %1846 = vmatprep.subr.mxu0 0.0
    %1847 = vmatpush1.msra.mxu0 %v1842
    %1848 = vmatprep.subr.mxu0 0.0
    %1849 = vmatpush1.msra.mxu0 0.0
    %1850 = vmatprep.subr.mxu0 0.0
    %1851 = vmatpush1.msra.mxu0 0.0
    %1852 = vmatprep.subr.mxu0 0.0
    %1853 = vmatpush1.msra.mxu0 0.0
    %1854 = vmatprep.subr.mxu0 0.0
    %1855 = vmatpush1.msra.mxu0 0.0
    %1856 = vmatprep.subr.mxu0 0.0
    %1857 = vmatpush1.msra.mxu0 0.0
    %1858 = vmatprep.subr.mxu0 0.0
    %1859 = vmatpush1.msra.mxu0 0.0
    %1860 = vmatprep.subr.mxu0 0.0
    %1861 = vmatpush1.msra.mxu0 0.0
    %1862 = vmatprep.subr.mxu0 0.0
    %1863 = vmatpush1.msra.mxu0 0.0
    %1864 = vmatprep.subr.mxu0 0.0
    %1865 = vmatpush1.msra.mxu0 0.0
    %1866 = vmatprep.subr.mxu0 0.0
    %1867 = vmatpush1.msra.mxu0 0.0
    %1868 = vmatprep.subr.mxu0 0.0
    %1869 = vmatpush1.msra.mxu0 0.0
    %1870 = vmatprep.subr.mxu0 0.0
    %1871 = vmatpush1.msra.mxu0 0.0
    %1872 = vmatprep.subr.mxu0 0.0
    %1873 = vmatpush1.msra.mxu0 0.0
    %1874 = vmatprep.subr.mxu0 0.0
    %1875 = vmatpush1.msra.mxu0 0.0
    %1876 = vmatprep.subr.mxu0 0.0
    %1877 = vmatpush1.msra.mxu0 0.0
    %1878 = vmatprep.subr.mxu0 0.0
    %1879 = vmatpush1.msra.mxu0 0.0
    %1880 = vmatprep.subr.mxu0 0.0
    %1881 = vmatpush1.msra.mxu0 0.0
    %1882 = vmatprep.subr.mxu0 0.0
    %1883 = vmatpush1.msra.mxu0 0.0
    %1884 = vmatprep.subr.mxu0 0.0
    %1885 = vmatpush1.msra.mxu0 0.0
    %1886 = vmatprep.subr.mxu0 0.0
    %1887 = vmatpush1.msra.mxu0 0.0
    %1888 = vmatprep.subr.mxu0 0.0
    %1889 = vmatpush1.msra.mxu0 0.0
    %1890 = vmatprep.subr.mxu0 0.0
    %1891 = vmatpush1.msra.mxu0 0.0
    %1892 = vmatprep.subr.mxu0 0.0
    %1893 = vmatpush1.msra.mxu0 0.0
    %1894 = vmatprep.subr.mxu0 0.0
    %1895 = vmatpush1.msra.mxu0 0.0
    %1896 = vmatprep.subr.mxu0 0.0
    %1897 = vmatpush1.msra.mxu0 0.0
    %1898 = vmatprep.subr.mxu0 0.0
    %1899 = vmatpush1.msra.mxu0 0.0
    %1900 = vmatprep.subr.mxu0 0.0
    %1901 = vmatpush1.msra.mxu0 0.0
    %1902 = vmatprep.subr.mxu0 0.0
    %1903 = vmatpush1.msra.mxu0 0.0
    %1904 = vmatprep.subr.mxu0 0.0
    %1905 = vmatpush1.msra.mxu0 0.0
    %1906 = vmatprep.subr.mxu0 0.0
    %1907 = vmatpush1.msra.mxu0 0.0
    %1908 = vmatprep.mubr.f32.mxu0 0.0
    %1909 = vmatmul.mubr.f32.gmra.mrb[0].mxu0 %v1840
    %v1910 = vpop.f32.mrb[0].mxu0
    %v1911 = vadd.f32 0.0, %v1910
    %v1912 = vpop.f32.mrb[0].mxu0
    %1913 = vdwg.mxu0
    %1914 = vrot.lane.b32.xlu0 %v1301, 96
    %v1915 = vpop.permute.xlu0 %1914
    %1916 = vrot.lane.b32.xlu0 %v1303, 96
    %v1917 = vpop.permute.xlu0 %1916
    %v1920 = vsel %vm1677, %v1671, 0
    %v1922 = vsel %vm1681, %v1917, 0
    %1924 = vmatprep.subr.mxu0 0.0
    %1925 = vmatpush1.msra.mxu0 %v1915
    %1926 = vmatprep.subr.mxu0 0.0
    %1927 = vmatpush1.msra.mxu0 %v1922
    %1928 = vmatprep.subr.mxu0 0.0
    %1929 = vmatpush1.msra.mxu0 0.0
    %1930 = vmatprep.subr.mxu0 0.0
    %1931 = vmatpush1.msra.mxu0 0.0
    %1932 = vmatprep.subr.mxu0 0.0
    %1933 = vmatpush1.msra.mxu0 0.0
    %1934 = vmatprep.subr.mxu0 0.0
    %1935 = vmatpush1.msra.mxu0 0.0
    %1936 = vmatprep.subr.mxu0 0.0
    %1937 = vmatpush1.msra.mxu0 0.0
    %1938 = vmatprep.subr.mxu0 0.0
    %1939 = vmatpush1.msra.mxu0 0.0
    %1940 = vmatprep.subr.mxu0 0.0
    %1941 = vmatpush1.msra.mxu0 0.0
    %1942 = vmatprep.subr.mxu0 0.0
    %1943 = vmatpush1.msra.mxu0 0.0
    %1944 = vmatprep.subr.mxu0 0.0
    %1945 = vmatpush1.msra.mxu0 0.0
    %1946 = vmatprep.subr.mxu0 0.0
    %1947 = vmatpush1.msra.mxu0 0.0
    %1948 = vmatprep.subr.mxu0 0.0
    %1949 = vmatpush1.msra.mxu0 0.0
    %1950 = vmatprep.subr.mxu0 0.0
    %1951 = vmatpush1.msra.mxu0 0.0
    %1952 = vmatprep.subr.mxu0 0.0
    %1953 = vmatpush1.msra.mxu0 0.0
    %1954 = vmatprep.subr.mxu0 0.0
    %1955 = vmatpush1.msra.mxu0 0.0
    %1956 = vmatprep.subr.mxu0 0.0
    %1957 = vmatpush1.msra.mxu0 0.0
    %1958 = vmatprep.subr.mxu0 0.0
    %1959 = vmatpush1.msra.mxu0 0.0
    %1960 = vmatprep.subr.mxu0 0.0
    %1961 = vmatpush1.msra.mxu0 0.0
    %1962 = vmatprep.subr.mxu0 0.0
    %1963 = vmatpush1.msra.mxu0 0.0
    %1964 = vmatprep.subr.mxu0 0.0
    %1965 = vmatpush1.msra.mxu0 0.0
    %1966 = vmatprep.subr.mxu0 0.0
    %1967 = vmatpush1.msra.mxu0 0.0
    %1968 = vmatprep.subr.mxu0 0.0
    %1969 = vmatpush1.msra.mxu0 0.0
    %1970 = vmatprep.subr.mxu0 0.0
    %1971 = vmatpush1.msra.mxu0 0.0
    %1972 = vmatprep.subr.mxu0 0.0
    %1973 = vmatpush1.msra.mxu0 0.0
    %1974 = vmatprep.subr.mxu0 0.0
    %1975 = vmatpush1.msra.mxu0 0.0
    %1976 = vmatprep.subr.mxu0 0.0
    %1977 = vmatpush1.msra.mxu0 0.0
    %1978 = vmatprep.subr.mxu0 0.0
    %1979 = vmatpush1.msra.mxu0 0.0
    %1980 = vmatprep.subr.mxu0 0.0
    %1981 = vmatpush1.msra.mxu0 0.0
    %1982 = vmatprep.subr.mxu0 0.0
    %1983 = vmatpush1.msra.mxu0 0.0
    %1984 = vmatprep.subr.mxu0 0.0
    %1985 = vmatpush1.msra.mxu0 0.0
    %1986 = vmatprep.subr.mxu0 0.0
    %1987 = vmatpush1.msra.mxu0 0.0
    %1988 = vmatprep.mubr.f32.mxu0 0.0
    %1989 = vmatmul.mubr.f32.gmra.mrb[0].mxu0 %v1920
    %v1990 = vpop.f32.mrb[0].mxu0
    %v1991 = vadd.f32 0.0, %v1990
    %v1992 = vpop.f32.mrb[0].mxu0
    %1993 = vdwg.mxu0
    %1995 = vrot.lane.b32.xlu0 %v1831, 8
    %v1996 = vpop.permute.xlu0 %1995
    %1999 = vrot.lane.b32.xlu0 %v1911, 16
    %v2000 = vpop.permute.xlu0 %1999
    %2003 = vrot.lane.b32.xlu0 %v1991, 24
    %v2004 = vpop.permute.xlu0 %2003
    %v2006 = vsel %vm1304, %v1751, %v1996
    %vm2007 = vcmask 130048
    %v2008 = vsel %vm2007, %v2006, %v2000
    %vm2009 = vcmask 195584
    %v2010 = vsel %vm2009, %v2008, %v2004
    %s2011 = scalar_lea.vmem %s25, 16
    %v2012 = vld [vmem:[%s2011] sm:$0xff]
    %v2013 = vrot.slane %v1273, 4
    %2014 = vrot.lane.b32.xlu0 %v2013, 96
    %v2015 = vpop.permute.xlu0 %2014
    %s2017 = scalar_lea.vmem %s61, 16
    %2018 = vst.msk [vmem:[%s2017 - $0x4] sm:$0xf0] %vm1281, %v2012
    %2019 = vst.msk [vmem:[%s2017 + $0x4] sm:$0xf] %vm1283, %v2015
    %2021 = vrot.lane.b32.xlu0 %v2012, 120
    %v2022 = vpop.permute.xlu0 %2021
    %2023 = vrot.lane.b32.xlu0 %v2015, 120
    %v2024 = vpop.permute.xlu0 %2023
    %2025 = vrot.lane.b32.xlu0 %v2012, 112
    %v2026 = vpop.permute.xlu0 %2025
    %2027 = vrot.lane.b32.xlu0 %v2015, 112
    %v2028 = vpop.permute.xlu0 %2027
    %2029 = vrot.lane.b32.xlu0 %v2012, 104
    %v2030 = vpop.permute.xlu0 %2029
    %2031 = vrot.lane.b32.xlu0 %v2015, 104
    %v2032 = vpop.permute.xlu0 %2031
    %v2033 = vsel %vm1304, %v2013, 0
    %v2035 = vsel %vm1304, %v2012, 0
    %v2037 = vsel %vm1304, %v2015, 0
    %2039 = vmatprep.subr.mxu0 0.0
    %2040 = vmatpush1.xpose.msra.mxu0 %v2035
    %2041 = vmatprep.subr.mxu0 0.0
    %2042 = vmatpush1.xpose.msra.mxu0 %v2037
    %2043 = vmatprep.subr.mxu0 0.0
    %2044 = vmatpush1.xpose.msra.mxu0 0.0
    %2045 = vmatprep.subr.mxu0 0.0
    %2046 = vmatpush1.xpose.msra.mxu0 0.0
    %2047 = vmatprep.subr.mxu0 0.0
    %2048 = vmatpush1.xpose.msra.mxu0 0.0
    %2049 = vmatprep.subr.mxu0 0.0
    %2050 = vmatpush1.xpose.msra.mxu0 0.0
    %2051 = vmatprep.subr.mxu0 0.0
    %2052 = vmatpush1.xpose.msra.mxu0 0.0
    %2053 = vmatprep.subr.mxu0 0.0
    %2054 = vmatpush1.xpose.msra.mxu0 0.0
    %2055 = vmatprep.subr.mxu0 0.0
    %2056 = vmatpush1.xpose.msra.mxu0 0.0
    %2057 = vmatprep.subr.mxu0 0.0
    %2058 = vmatpush1.xpose.msra.mxu0 0.0
    %2059 = vmatprep.subr.mxu0 0.0
    %2060 = vmatpush1.xpose.msra.mxu0 0.0
    %2061 = vmatprep.subr.mxu0 0.0
    %2062 = vmatpush1.xpose.msra.mxu0 0.0
    %2063 = vmatprep.subr.mxu0 0.0
    %2064 = vmatpush1.xpose.msra.mxu0 0.0
    %2065 = vmatprep.subr.mxu0 0.0
    %2066 = vmatpush1.xpose.msra.mxu0 0.0
    %2067 = vmatprep.subr.mxu0 0.0
    %2068 = vmatpush1.xpose.msra.mxu0 0.0
    %2069 = vmatprep.subr.mxu0 0.0
    %2070 = vmatpush1.xpose.msra.mxu0 0.0
    %2071 = vmatprep.subr.mxu0 0.0
    %2072 = vmatpush1.xpose.msra.mxu0 0.0
    %2073 = vmatprep.subr.mxu0 0.0
    %2074 = vmatpush1.xpose.msra.mxu0 0.0
    %2075 = vmatprep.subr.mxu0 0.0
    %2076 = vmatpush1.xpose.msra.mxu0 0.0
    %2077 = vmatprep.subr.mxu0 0.0
    %2078 = vmatpush1.xpose.msra.mxu0 0.0
    %2079 = vmatprep.subr.mxu0 0.0
    %2080 = vmatpush1.xpose.msra.mxu0 0.0
    %2081 = vmatprep.subr.mxu0 0.0
    %2082 = vmatpush1.xpose.msra.mxu0 0.0
    %2083 = vmatprep.subr.mxu0 0.0
    %2084 = vmatpush1.xpose.msra.mxu0 0.0
    %2085 = vmatprep.subr.mxu0 0.0
    %2086 = vmatpush1.xpose.msra.mxu0 0.0
    %2087 = vmatprep.subr.mxu0 0.0
    %2088 = vmatpush1.xpose.msra.mxu0 0.0
    %2089 = vmatprep.subr.mxu0 0.0
    %2090 = vmatpush1.xpose.msra.mxu0 0.0
    %2091 = vmatprep.subr.mxu0 0.0
    %2092 = vmatpush1.xpose.msra.mxu0 0.0
    %2093 = vmatprep.subr.mxu0 0.0
    %2094 = vmatpush1.xpose.msra.mxu0 0.0
    %2095 = vmatprep.subr.mxu0 0.0
    %2096 = vmatpush1.xpose.msra.mxu0 0.0
    %2097 = vmatprep.subr.mxu0 0.0
    %2098 = vmatpush1.xpose.msra.mxu0 0.0
    %2099 = vmatprep.subr.mxu0 0.0
    %2100 = vmatpush1.xpose.msra.mxu0 0.0
    %2101 = vmatprep.subr.mxu0 0.0
    %2102 = vmatpush1.xpose.msra.mxu0 0.0
    %2103 = vmatprep.mubr.f32.mxu0 0.0
    %2104 = vmatmul.mubr.f32.gmra.mrb[0].mxu0 %v2033
    %v2105 = vpop.f32.mrb[0].mxu0
    %v2106 = vadd.f32 0.0, %v2105
    %v2107 = vpop.f32.mrb[0].mxu0
    %2108 = vdwg.mxu0
    %v2109 = vrot.slane %v1286, 4
    %v2110 = vsel %vm1304, %v2109, 0
    %v2112 = vsel %vm1304, %v2022, 0
    %v2114 = vsel %vm1304, %v2024, 0
    %2116 = vmatprep.subr.mxu0 0.0
    %2117 = vmatpush1.xpose.msra.mxu0 %v2112
    %2118 = vmatprep.subr.mxu0 0.0
    %2119 = vmatpush1.xpose.msra.mxu0 %v2114
    %2120 = vmatprep.subr.mxu0 0.0
    %2121 = vmatpush1.xpose.msra.mxu0 0.0
    %2122 = vmatprep.subr.mxu0 0.0
    %2123 = vmatpush1.xpose.msra.mxu0 0.0
    %2124 = vmatprep.subr.mxu0 0.0
    %2125 = vmatpush1.xpose.msra.mxu0 0.0
    %2126 = vmatprep.subr.mxu0 0.0
    %2127 = vmatpush1.xpose.msra.mxu0 0.0
    %2128 = vmatprep.subr.mxu0 0.0
    %2129 = vmatpush1.xpose.msra.mxu0 0.0
    %2130 = vmatprep.subr.mxu0 0.0
    %2131 = vmatpush1.xpose.msra.mxu0 0.0
    %2132 = vmatprep.subr.mxu0 0.0
    %2133 = vmatpush1.xpose.msra.mxu0 0.0
    %2134 = vmatprep.subr.mxu0 0.0
    %2135 = vmatpush1.xpose.msra.mxu0 0.0
    %2136 = vmatprep.subr.mxu0 0.0
    %2137 = vmatpush1.xpose.msra.mxu0 0.0
    %2138 = vmatprep.subr.mxu0 0.0
    %2139 = vmatpush1.xpose.msra.mxu0 0.0
    %2140 = vmatprep.subr.mxu0 0.0
    %2141 = vmatpush1.xpose.msra.mxu0 0.0
    %2142 = vmatprep.subr.mxu0 0.0
    %2143 = vmatpush1.xpose.msra.mxu0 0.0
    %2144 = vmatprep.subr.mxu0 0.0
    %2145 = vmatpush1.xpose.msra.mxu0 0.0
    %2146 = vmatprep.subr.mxu0 0.0
    %2147 = vmatpush1.xpose.msra.mxu0 0.0
    %2148 = vmatprep.subr.mxu0 0.0
    %2149 = vmatpush1.xpose.msra.mxu0 0.0
    %2150 = vmatprep.subr.mxu0 0.0
    %2151 = vmatpush1.xpose.msra.mxu0 0.0
    %2152 = vmatprep.subr.mxu0 0.0
    %2153 = vmatpush1.xpose.msra.mxu0 0.0
    %2154 = vmatprep.subr.mxu0 0.0
    %2155 = vmatpush1.xpose.msra.mxu0 0.0
    %2156 = vmatprep.subr.mxu0 0.0
    %2157 = vmatpush1.xpose.msra.mxu0 0.0
    %2158 = vmatprep.subr.mxu0 0.0
    %2159 = vmatpush1.xpose.msra.mxu0 0.0
    %2160 = vmatprep.subr.mxu0 0.0
    %2161 = vmatpush1.xpose.msra.mxu0 0.0
    %2162 = vmatprep.subr.mxu0 0.0
    %2163 = vmatpush1.xpose.msra.mxu0 0.0
    %2164 = vmatprep.subr.mxu0 0.0
    %2165 = vmatpush1.xpose.msra.mxu0 0.0
    %2166 = vmatprep.subr.mxu0 0.0
    %2167 = vmatpush1.xpose.msra.mxu0 0.0
    %2168 = vmatprep.subr.mxu0 0.0
    %2169 = vmatpush1.xpose.msra.mxu0 0.0
    %2170 = vmatprep.subr.mxu0 0.0
    %2171 = vmatpush1.xpose.msra.mxu0 0.0
    %2172 = vmatprep.subr.mxu0 0.0
    %2173 = vmatpush1.xpose.msra.mxu0 0.0
    %2174 = vmatprep.subr.mxu0 0.0
    %2175 = vmatpush1.xpose.msra.mxu0 0.0
    %2176 = vmatprep.subr.mxu0 0.0
    %2177 = vmatpush1.xpose.msra.mxu0 0.0
    %2178 = vmatprep.subr.mxu0 0.0
    %2179 = vmatpush1.xpose.msra.mxu0 0.0
    %2180 = vmatprep.mubr.f32.mxu0 0.0
    %2181 = vmatmul.mubr.f32.gmra.mrb[0].mxu0 %v2110
    %v2182 = vpop.f32.mrb[0].mxu0
    %v2183 = vadd.f32 0.0, %v2182
    %v2184 = vpop.f32.mrb[0].mxu0
    %2185 = vdwg.mxu0
    %v2186 = vrot.slane %v1288, 4
    %v2187 = vsel %vm1304, %v2186, 0
    %v2189 = vsel %vm1304, %v2026, 0
    %v2191 = vsel %vm1304, %v2028, 0
    %2193 = vmatprep.subr.mxu0 0.0
    %2194 = vmatpush1.xpose.msra.mxu0 %v2189
    %2195 = vmatprep.subr.mxu0 0.0
    %2196 = vmatpush1.xpose.msra.mxu0 %v2191
    %2197 = vmatprep.subr.mxu0 0.0
    %2198 = vmatpush1.xpose.msra.mxu0 0.0
    %2199 = vmatprep.subr.mxu0 0.0
    %2200 = vmatpush1.xpose.msra.mxu0 0.0
    %2201 = vmatprep.subr.mxu0 0.0
    %2202 = vmatpush1.xpose.msra.mxu0 0.0
    %2203 = vmatprep.subr.mxu0 0.0
    %2204 = vmatpush1.xpose.msra.mxu0 0.0
    %2205 = vmatprep.subr.mxu0 0.0
    %2206 = vmatpush1.xpose.msra.mxu0 0.0
    %2207 = vmatprep.subr.mxu0 0.0
    %2208 = vmatpush1.xpose.msra.mxu0 0.0
    %2209 = vmatprep.subr.mxu0 0.0
    %2210 = vmatpush1.xpose.msra.mxu0 0.0
    %2211 = vmatprep.subr.mxu0 0.0
    %2212 = vmatpush1.xpose.msra.mxu0 0.0
    %2213 = vmatprep.subr.mxu0 0.0
    %2214 = vmatpush1.xpose.msra.mxu0 0.0
    %2215 = vmatprep.subr.mxu0 0.0
    %2216 = vmatpush1.xpose.msra.mxu0 0.0
    %2217 = vmatprep.subr.mxu0 0.0
    %2218 = vmatpush1.xpose.msra.mxu0 0.0
    %2219 = vmatprep.subr.mxu0 0.0
    %2220 = vmatpush1.xpose.msra.mxu0 0.0
    %2221 = vmatprep.subr.mxu0 0.0
    %2222 = vmatpush1.xpose.msra.mxu0 0.0
    %2223 = vmatprep.subr.mxu0 0.0
    %2224 = vmatpush1.xpose.msra.mxu0 0.0
    %2225 = vmatprep.subr.mxu0 0.0
    %2226 = vmatpush1.xpose.msra.mxu0 0.0
    %2227 = vmatprep.subr.mxu0 0.0
    %2228 = vmatpush1.xpose.msra.mxu0 0.0
    %2229 = vmatprep.subr.mxu0 0.0
    %2230 = vmatpush1.xpose.msra.mxu0 0.0
    %2231 = vmatprep.subr.mxu0 0.0
    %2232 = vmatpush1.xpose.msra.mxu0 0.0
    %2233 = vmatprep.subr.mxu0 0.0
    %2234 = vmatpush1.xpose.msra.mxu0 0.0
    %2235 = vmatprep.subr.mxu0 0.0
    %2236 = vmatpush1.xpose.msra.mxu0 0.0
    %2237 = vmatprep.subr.mxu0 0.0
    %2238 = vmatpush1.xpose.msra.mxu0 0.0
    %2239 = vmatprep.subr.mxu0 0.0
    %2240 = vmatpush1.xpose.msra.mxu0 0.0
    %2241 = vmatprep.subr.mxu0 0.0
    %2242 = vmatpush1.xpose.msra.mxu0 0.0
    %2243 = vmatprep.subr.mxu0 0.0
    %2244 = vmatpush1.xpose.msra.mxu0 0.0
    %2245 = vmatprep.subr.mxu0 0.0
    %2246 = vmatpush1.xpose.msra.mxu0 0.0
    %2247 = vmatprep.subr.mxu0 0.0
    %2248 = vmatpush1.xpose.msra.mxu0 0.0
    %2249 = vmatprep.subr.mxu0 0.0
    %2250 = vmatpush1.xpose.msra.mxu0 0.0
    %2251 = vmatprep.subr.mxu0 0.0
    %2252 = vmatpush1.xpose.msra.mxu0 0.0
    %2253 = vmatprep.subr.mxu0 0.0
    %2254 = vmatpush1.xpose.msra.mxu0 0.0
    %2255 = vmatprep.subr.mxu0 0.0
    %2256 = vmatpush1.xpose.msra.mxu0 0.0
    %2257 = vmatprep.mubr.f32.mxu0 0.0
    %2258 = vmatmul.mubr.f32.gmra.mrb[0].mxu0 %v2187
    %v2259 = vpop.f32.mrb[0].mxu0
    %v2260 = vadd.f32 0.0, %v2259
    %v2261 = vpop.f32.mrb[0].mxu0
    %2262 = vdwg.mxu0
    %v2263 = vrot.slane %v1290, 4
    %v2264 = vsel %vm1304, %v2263, 0
    %v2266 = vsel %vm1304, %v2030, 0
    %v2268 = vsel %vm1304, %v2032, 0
    %2270 = vmatprep.subr.mxu0 0.0
    %2271 = vmatpush1.xpose.msra.mxu0 %v2266
    %2272 = vmatprep.subr.mxu0 0.0
    %2273 = vmatpush1.xpose.msra.mxu0 %v2268
    %2274 = vmatprep.subr.mxu0 0.0
    %2275 = vmatpush1.xpose.msra.mxu0 0.0
    %2276 = vmatprep.subr.mxu0 0.0
    %2277 = vmatpush1.xpose.msra.mxu0 0.0
    %2278 = vmatprep.subr.mxu0 0.0
    %2279 = vmatpush1.xpose.msra.mxu0 0.0
    %2280 = vmatprep.subr.mxu0 0.0
    %2281 = vmatpush1.xpose.msra.mxu0 0.0
    %2282 = vmatprep.subr.mxu0 0.0
    %2283 = vmatpush1.xpose.msra.mxu0 0.0
    %2284 = vmatprep.subr.mxu0 0.0
    %2285 = vmatpush1.xpose.msra.mxu0 0.0
    %2286 = vmatprep.subr.mxu0 0.0
    %2287 = vmatpush1.xpose.msra.mxu0 0.0
    %2288 = vmatprep.subr.mxu0 0.0
    %2289 = vmatpush1.xpose.msra.mxu0 0.0
    %2290 = vmatprep.subr.mxu0 0.0
    %2291 = vmatpush1.xpose.msra.mxu0 0.0
    %2292 = vmatprep.subr.mxu0 0.0
    %2293 = vmatpush1.xpose.msra.mxu0 0.0
    %2294 = vmatprep.subr.mxu0 0.0
    %2295 = vmatpush1.xpose.msra.mxu0 0.0
    %2296 = vmatprep.subr.mxu0 0.0
    %2297 = vmatpush1.xpose.msra.mxu0 0.0
    %2298 = vmatprep.subr.mxu0 0.0
    %2299 = vmatpush1.xpose.msra.mxu0 0.0
    %2300 = vmatprep.subr.mxu0 0.0
    %2301 = vmatpush1.xpose.msra.mxu0 0.0
    %2302 = vmatprep.subr.mxu0 0.0
    %2303 = vmatpush1.xpose.msra.mxu0 0.0
    %2304 = vmatprep.subr.mxu0 0.0
    %2305 = vmatpush1.xpose.msra.mxu0 0.0
    %2306 = vmatprep.subr.mxu0 0.0
    %2307 = vmatpush1.xpose.msra.mxu0 0.0
    %2308 = vmatprep.subr.mxu0 0.0
    %2309 = vmatpush1.xpose.msra.mxu0 0.0
    %2310 = vmatprep.subr.mxu0 0.0
    %2311 = vmatpush1.xpose.msra.mxu0 0.0
    %2312 = vmatprep.subr.mxu0 0.0
    %2313 = vmatpush1.xpose.msra.mxu0 0.0
    %2314 = vmatprep.subr.mxu0 0.0
    %2315 = vmatpush1.xpose.msra.mxu0 0.0
    %2316 = vmatprep.subr.mxu0 0.0
    %2317 = vmatpush1.xpose.msra.mxu0 0.0
    %2318 = vmatprep.subr.mxu0 0.0
    %2319 = vmatpush1.xpose.msra.mxu0 0.0
    %2320 = vmatprep.subr.mxu0 0.0
    %2321 = vmatpush1.xpose.msra.mxu0 0.0
    %2322 = vmatprep.subr.mxu0 0.0
    %2323 = vmatpush1.xpose.msra.mxu0 0.0
    %2324 = vmatprep.subr.mxu0 0.0
    %2325 = vmatpush1.xpose.msra.mxu0 0.0
    %2326 = vmatprep.subr.mxu0 0.0
    %2327 = vmatpush1.xpose.msra.mxu0 0.0
    %2328 = vmatprep.subr.mxu0 0.0
    %2329 = vmatpush1.xpose.msra.mxu0 0.0
    %2330 = vmatprep.subr.mxu0 0.0
    %2331 = vmatpush1.xpose.msra.mxu0 0.0
    %2332 = vmatprep.subr.mxu0 0.0
    %2333 = vmatpush1.xpose.msra.mxu0 0.0
    %2334 = vmatprep.mubr.f32.mxu0 0.0
    %2335 = vmatmul.mubr.f32.gmra.mrb[0].mxu0 %v2264
    %v2336 = vpop.f32.mrb[0].mxu0
    %v2337 = vadd.f32 0.0, %v2336
    %v2338 = vpop.f32.mrb[0].mxu0
    %2339 = vdwg.mxu0
    %v2340 = vmul.f32 %v2106, 0.35355338
    %v2341 = vmul.f32 %v2183, 0.35355338
    %v2342 = vmul.f32 %v2260, 0.35355338
    %v2343 = vmul.f32 %v2337, 0.35355338
    %v2344 = vsel %vm1161, 1, 0
    %v2345 = vlaneseq
    %v2346 = vshrl.u32 %v2345, 7
    %v2347 = vsub.s32 0, %v2346
    %v2348 = vrot.slane %v2344, %v2347
    %vm2349 = vcmp.eq.s32.totalorder %v2348, 1
    %v2350 = vsel %vm2349, %v2340, -1e+30
    %v2351 = vsel %vm2349, %v2341, -1e+30
    %v2352 = vsel %vm2349, %v2342, -1e+30
    %v2353 = vsel %vm2349, %v2343, -1e+30
    %v2354 = vsel %vm1623, %v2350, -inf
    %2355 = vmax.xlane.f32.xlu0 %v2354
    %v2356 = vpop.xlane.xlu0 %2355
    %v2357 = vsel %vm1623, %v2351, -inf
    %2358 = vmax.xlane.f32.xlu0 %v2357
    %v2359 = vpop.xlane.xlu0 %2358
    %v2360 = vsel %vm1623, %v2352, -inf
    %2361 = vmax.xlane.f32.xlu0 %v2360
    %v2362 = vpop.xlane.xlu0 %2361
    %v2363 = vsel %vm1623, %v2353, -inf
    %2364 = vmax.xlane.f32.xlu0 %v2363
    %v2365 = vpop.xlane.xlu0 %2364
    %v2366 = vsub.f32 %v2350, %v2356
    %v2367 = vsub.f32 %v2351, %v2359
    %v2368 = vsub.f32 %v2352, %v2362
    %v2369 = vsub.f32 %v2353, %v2365
    %v2370 = vmul.f32 %v2366, 1.442695
    %v2371 = vpow.pop %v2370
    %v2372 = vmul.f32 %v2367, 1.442695
    %v2373 = vpow.pop %v2372
    %v2374 = vmul.f32 %v2368, 1.442695
    %v2375 = vpow.pop %v2374
    %v2376 = vmul.f32 %v2369, 1.442695
    %v2377 = vpow.pop %v2376
    %v2378 = vsel %vm1623, %v2371, 0.0
    %2379 = vadd.xlane.f32.xlu0 %v2378
    %v2380 = vpop.xlane.xlu0 %2379
    %v2381 = vsel %vm1623, %v2373, 0.0
    %2382 = vadd.xlane.f32.xlu0 %v2381
    %v2383 = vpop.xlane.xlu0 %2382
    %v2384 = vsel %vm1623, %v2375, 0.0
    %2385 = vadd.xlane.f32.xlu0 %v2384
    %v2386 = vpop.xlane.xlu0 %2385
    %v2387 = vsel %vm1623, %v2377, 0.0
    %2388 = vadd.xlane.f32.xlu0 %v2387
    %v2389 = vpop.xlane.xlu0 %2388
    %v2390 = vmax.f32 %v2380, 1e-30
    %v2391 = vmax.f32 %v2383, 1e-30
    %v2392 = vmax.f32 %v2386, 1e-30
    %v2393 = vmax.f32 %v2389, 1e-30
    %v2394 = vrcp.pop %v2390
    %v2395 = vrcp.pop %v2391
    %v2396 = vrcp.pop %v2392
    %v2397 = vrcp.pop %v2393
    %v2398 = vmul.f32 %v2371, %v2394
    %v2399 = vmul.f32 %v2373, %v2395
    %v2400 = vmul.f32 %v2375, %v2396
    %v2401 = vmul.f32 %v2377, %v2397
    %2402 = vrot.lane.b32.xlu0 %v2012, 96
    %v2403 = vpop.permute.xlu0 %2402
    %2404 = vrot.lane.b32.xlu0 %v2015, 96
    %v2405 = vpop.permute.xlu0 %2404
    %v2408 = vsel %vm1677, %v2398, 0
    %v2410 = vsel %vm1681, %v2405, 0
    %2412 = vmatprep.subr.mxu0 0.0
    %2413 = vmatpush1.msra.mxu0 %v2403
    %2414 = vmatprep.subr.mxu0 0.0
    %2415 = vmatpush1.msra.mxu0 %v2410
    %2416 = vmatprep.subr.mxu0 0.0
    %2417 = vmatpush1.msra.mxu0 0.0
    %2418 = vmatprep.subr.mxu0 0.0
    %2419 = vmatpush1.msra.mxu0 0.0
    %2420 = vmatprep.subr.mxu0 0.0
    %2421 = vmatpush1.msra.mxu0 0.0
    %2422 = vmatprep.subr.mxu0 0.0
    %2423 = vmatpush1.msra.mxu0 0.0
    %2424 = vmatprep.subr.mxu0 0.0
    %2425 = vmatpush1.msra.mxu0 0.0
    %2426 = vmatprep.subr.mxu0 0.0
    %2427 = vmatpush1.msra.mxu0 0.0
    %2428 = vmatprep.subr.mxu0 0.0
    %2429 = vmatpush1.msra.mxu0 0.0
    %2430 = vmatprep.subr.mxu0 0.0
    %2431 = vmatpush1.msra.mxu0 0.0
    %2432 = vmatprep.subr.mxu0 0.0
    %2433 = vmatpush1.msra.mxu0 0.0
    %2434 = vmatprep.subr.mxu0 0.0
    %2435 = vmatpush1.msra.mxu0 0.0
    %2436 = vmatprep.subr.mxu0 0.0
    %2437 = vmatpush1.msra.mxu0 0.0
    %2438 = vmatprep.subr.mxu0 0.0
    %2439 = vmatpush1.msra.mxu0 0.0
    %2440 = vmatprep.subr.mxu0 0.0
    %2441 = vmatpush1.msra.mxu0 0.0
    %2442 = vmatprep.subr.mxu0 0.0
    %2443 = vmatpush1.msra.mxu0 0.0
    %2444 = vmatprep.subr.mxu0 0.0
    %2445 = vmatpush1.msra.mxu0 0.0
    %2446 = vmatprep.subr.mxu0 0.0
    %2447 = vmatpush1.msra.mxu0 0.0
    %2448 = vmatprep.subr.mxu0 0.0
    %2449 = vmatpush1.msra.mxu0 0.0
    %2450 = vmatprep.subr.mxu0 0.0
    %2451 = vmatpush1.msra.mxu0 0.0
    %2452 = vmatprep.subr.mxu0 0.0
    %2453 = vmatpush1.msra.mxu0 0.0
    %2454 = vmatprep.subr.mxu0 0.0
    %2455 = vmatpush1.msra.mxu0 0.0
    %2456 = vmatprep.subr.mxu0 0.0
    %2457 = vmatpush1.msra.mxu0 0.0
    %2458 = vmatprep.subr.mxu0 0.0
    %2459 = vmatpush1.msra.mxu0 0.0
    %2460 = vmatprep.subr.mxu0 0.0
    %2461 = vmatpush1.msra.mxu0 0.0
    %2462 = vmatprep.subr.mxu0 0.0
    %2463 = vmatpush1.msra.mxu0 0.0
    %2464 = vmatprep.subr.mxu0 0.0
    %2465 = vmatpush1.msra.mxu0 0.0
    %2466 = vmatprep.subr.mxu0 0.0
    %2467 = vmatpush1.msra.mxu0 0.0
    %2468 = vmatprep.subr.mxu0 0.0
    %2469 = vmatpush1.msra.mxu0 0.0
    %2470 = vmatprep.subr.mxu0 0.0
    %2471 = vmatpush1.msra.mxu0 0.0
    %2472 = vmatprep.subr.mxu0 0.0
    %2473 = vmatpush1.msra.mxu0 0.0
    %2474 = vmatprep.subr.mxu0 0.0
    %2475 = vmatpush1.msra.mxu0 0.0
    %2476 = vmatprep.mubr.f32.mxu0 0.0
    %2477 = vmatmul.mubr.f32.gmra.mrb[0].mxu0 %v2408
    %v2478 = vpop.f32.mrb[0].mxu0
    %v2479 = vadd.f32 0.0, %v2478
    %v2480 = vpop.f32.mrb[0].mxu0
    %2481 = vdwg.mxu0
    %2482 = vrot.lane.b32.xlu0 %v2022, 96
    %v2483 = vpop.permute.xlu0 %2482
    %2484 = vrot.lane.b32.xlu0 %v2024, 96
    %v2485 = vpop.permute.xlu0 %2484
    %v2488 = vsel %vm1677, %v2399, 0
    %v2490 = vsel %vm1681, %v2485, 0
    %2492 = vmatprep.subr.mxu0 0.0
    %2493 = vmatpush1.msra.mxu0 %v2483
    %2494 = vmatprep.subr.mxu0 0.0
    %2495 = vmatpush1.msra.mxu0 %v2490
    %2496 = vmatprep.subr.mxu0 0.0
    %2497 = vmatpush1.msra.mxu0 0.0
    %2498 = vmatprep.subr.mxu0 0.0
    %2499 = vmatpush1.msra.mxu0 0.0
    %2500 = vmatprep.subr.mxu0 0.0
    %2501 = vmatpush1.msra.mxu0 0.0
    %2502 = vmatprep.subr.mxu0 0.0
    %2503 = vmatpush1.msra.mxu0 0.0
    %2504 = vmatprep.subr.mxu0 0.0
    %2505 = vmatpush1.msra.mxu0 0.0
    %2506 = vmatprep.subr.mxu0 0.0
    %2507 = vmatpush1.msra.mxu0 0.0
    %2508 = vmatprep.subr.mxu0 0.0
    %2509 = vmatpush1.msra.mxu0 0.0
    %2510 = vmatprep.subr.mxu0 0.0
    %2511 = vmatpush1.msra.mxu0 0.0
    %2512 = vmatprep.subr.mxu0 0.0
    %2513 = vmatpush1.msra.mxu0 0.0
    %2514 = vmatprep.subr.mxu0 0.0
    %2515 = vmatpush1.msra.mxu0 0.0
    %2516 = vmatprep.subr.mxu0 0.0
    %2517 = vmatpush1.msra.mxu0 0.0
    %2518 = vmatprep.subr.mxu0 0.0
    %2519 = vmatpush1.msra.mxu0 0.0
    %2520 = vmatprep.subr.mxu0 0.0
    %2521 = vmatpush1.msra.mxu0 0.0
    %2522 = vmatprep.subr.mxu0 0.0
    %2523 = vmatpush1.msra.mxu0 0.0
    %2524 = vmatprep.subr.mxu0 0.0
    %2525 = vmatpush1.msra.mxu0 0.0
    %2526 = vmatprep.subr.mxu0 0.0
    %2527 = vmatpush1.msra.mxu0 0.0
    %2528 = vmatprep.subr.mxu0 0.0
    %2529 = vmatpush1.msra.mxu0 0.0
    %2530 = vmatprep.subr.mxu0 0.0
    %2531 = vmatpush1.msra.mxu0 0.0
    %2532 = vmatprep.subr.mxu0 0.0
    %2533 = vmatpush1.msra.mxu0 0.0
    %2534 = vmatprep.subr.mxu0 0.0
    %2535 = vmatpush1.msra.mxu0 0.0
    %2536 = vmatprep.subr.mxu0 0.0
    %2537 = vmatpush1.msra.mxu0 0.0
    %2538 = vmatprep.subr.mxu0 0.0
    %2539 = vmatpush1.msra.mxu0 0.0
    %2540 = vmatprep.subr.mxu0 0.0
    %2541 = vmatpush1.msra.mxu0 0.0
    %2542 = vmatprep.subr.mxu0 0.0
    %2543 = vmatpush1.msra.mxu0 0.0
    %2544 = vmatprep.subr.mxu0 0.0
    %2545 = vmatpush1.msra.mxu0 0.0
    %2546 = vmatprep.subr.mxu0 0.0
    %2547 = vmatpush1.msra.mxu0 0.0
    %2548 = vmatprep.subr.mxu0 0.0
    %2549 = vmatpush1.msra.mxu0 0.0
    %2550 = vmatprep.subr.mxu0 0.0
    %2551 = vmatpush1.msra.mxu0 0.0
    %2552 = vmatprep.subr.mxu0 0.0
    %2553 = vmatpush1.msra.mxu0 0.0
    %2554 = vmatprep.subr.mxu0 0.0
    %2555 = vmatpush1.msra.mxu0 0.0
    %2556 = vmatprep.mubr.f32.mxu0 0.0
    %2557 = vmatmul.mubr.f32.gmra.mrb[0].mxu0 %v2488
    %v2558 = vpop.f32.mrb[0].mxu0
    %v2559 = vadd.f32 0.0, %v2558
    %v2560 = vpop.f32.mrb[0].mxu0
    %2561 = vdwg.mxu0
    %2562 = vrot.lane.b32.xlu0 %v2026, 96
    %v2563 = vpop.permute.xlu0 %2562
    %2564 = vrot.lane.b32.xlu0 %v2028, 96
    %v2565 = vpop.permute.xlu0 %2564
    %v2568 = vsel %vm1677, %v2400, 0
    %v2570 = vsel %vm1681, %v2565, 0
    %2572 = vmatprep.subr.mxu0 0.0
    %2573 = vmatpush1.msra.mxu0 %v2563
    %2574 = vmatprep.subr.mxu0 0.0
    %2575 = vmatpush1.msra.mxu0 %v2570
    %2576 = vmatprep.subr.mxu0 0.0
    %2577 = vmatpush1.msra.mxu0 0.0
    %2578 = vmatprep.subr.mxu0 0.0
    %2579 = vmatpush1.msra.mxu0 0.0
    %2580 = vmatprep.subr.mxu0 0.0
    %2581 = vmatpush1.msra.mxu0 0.0
    %2582 = vmatprep.subr.mxu0 0.0
    %2583 = vmatpush1.msra.mxu0 0.0
    %2584 = vmatprep.subr.mxu0 0.0
    %2585 = vmatpush1.msra.mxu0 0.0
    %2586 = vmatprep.subr.mxu0 0.0
    %2587 = vmatpush1.msra.mxu0 0.0
    %2588 = vmatprep.subr.mxu0 0.0
    %2589 = vmatpush1.msra.mxu0 0.0
    %2590 = vmatprep.subr.mxu0 0.0
    %2591 = vmatpush1.msra.mxu0 0.0
    %2592 = vmatprep.subr.mxu0 0.0
    %2593 = vmatpush1.msra.mxu0 0.0
    %2594 = vmatprep.subr.mxu0 0.0
    %2595 = vmatpush1.msra.mxu0 0.0
    %2596 = vmatprep.subr.mxu0 0.0
    %2597 = vmatpush1.msra.mxu0 0.0
    %2598 = vmatprep.subr.mxu0 0.0
    %2599 = vmatpush1.msra.mxu0 0.0
    %2600 = vmatprep.subr.mxu0 0.0
    %2601 = vmatpush1.msra.mxu0 0.0
    %2602 = vmatprep.subr.mxu0 0.0
    %2603 = vmatpush1.msra.mxu0 0.0
    %2604 = vmatprep.subr.mxu0 0.0
    %2605 = vmatpush1.msra.mxu0 0.0
    %2606 = vmatprep.subr.mxu0 0.0
    %2607 = vmatpush1.msra.mxu0 0.0
    %2608 = vmatprep.subr.mxu0 0.0
    %2609 = vmatpush1.msra.mxu0 0.0
    %2610 = vmatprep.subr.mxu0 0.0
    %2611 = vmatpush1.msra.mxu0 0.0
    %2612 = vmatprep.subr.mxu0 0.0
    %2613 = vmatpush1.msra.mxu0 0.0
    %2614 = vmatprep.subr.mxu0 0.0
    %2615 = vmatpush1.msra.mxu0 0.0
    %2616 = vmatprep.subr.mxu0 0.0
    %2617 = vmatpush1.msra.mxu0 0.0
    %2618 = vmatprep.subr.mxu0 0.0
    %2619 = vmatpush1.msra.mxu0 0.0
    %2620 = vmatprep.subr.mxu0 0.0
    %2621 = vmatpush1.msra.mxu0 0.0
    %2622 = vmatprep.subr.mxu0 0.0
    %2623 = vmatpush1.msra.mxu0 0.0
    %2624 = vmatprep.subr.mxu0 0.0
    %2625 = vmatpush1.msra.mxu0 0.0
    %2626 = vmatprep.subr.mxu0 0.0
    %2627 = vmatpush1.msra.mxu0 0.0
    %2628 = vmatprep.subr.mxu0 0.0
    %2629 = vmatpush1.msra.mxu0 0.0
    %2630 = vmatprep.subr.mxu0 0.0
    %2631 = vmatpush1.msra.mxu0 0.0
    %2632 = vmatprep.subr.mxu0 0.0
    %2633 = vmatpush1.msra.mxu0 0.0
    %2634 = vmatprep.subr.mxu0 0.0
    %2635 = vmatpush1.msra.mxu0 0.0
    %2636 = vmatprep.mubr.f32.mxu0 0.0
    %2637 = vmatmul.mubr.f32.gmra.mrb[0].mxu0 %v2568
    %v2638 = vpop.f32.mrb[0].mxu0
    %v2639 = vadd.f32 0.0, %v2638
    %v2640 = vpop.f32.mrb[0].mxu0
    %2641 = vdwg.mxu0
    %2642 = vrot.lane.b32.xlu0 %v2030, 96
    %v2643 = vpop.permute.xlu0 %2642
    %2644 = vrot.lane.b32.xlu0 %v2032, 96
    %v2645 = vpop.permute.xlu0 %2644
    %v2648 = vsel %vm1677, %v2401, 0
    %v2650 = vsel %vm1681, %v2645, 0
    %2652 = vmatprep.subr.mxu0 0.0
    %2653 = vmatpush1.msra.mxu0 %v2643
    %2654 = vmatprep.subr.mxu0 0.0
    %2655 = vmatpush1.msra.mxu0 %v2650
    %2656 = vmatprep.subr.mxu0 0.0
    %2657 = vmatpush1.msra.mxu0 0.0
    %2658 = vmatprep.subr.mxu0 0.0
    %2659 = vmatpush1.msra.mxu0 0.0
    %2660 = vmatprep.subr.mxu0 0.0
    %2661 = vmatpush1.msra.mxu0 0.0
    %2662 = vmatprep.subr.mxu0 0.0
    %2663 = vmatpush1.msra.mxu0 0.0
    %2664 = vmatprep.subr.mxu0 0.0
    %2665 = vmatpush1.msra.mxu0 0.0
    %2666 = vmatprep.subr.mxu0 0.0
    %2667 = vmatpush1.msra.mxu0 0.0
    %2668 = vmatprep.subr.mxu0 0.0
    %2669 = vmatpush1.msra.mxu0 0.0
    %2670 = vmatprep.subr.mxu0 0.0
    %2671 = vmatpush1.msra.mxu0 0.0
    %2672 = vmatprep.subr.mxu0 0.0
    %2673 = vmatpush1.msra.mxu0 0.0
    %2674 = vmatprep.subr.mxu0 0.0
    %2675 = vmatpush1.msra.mxu0 0.0
    %2676 = vmatprep.subr.mxu0 0.0
    %2677 = vmatpush1.msra.mxu0 0.0
    %2678 = vmatprep.subr.mxu0 0.0
    %2679 = vmatpush1.msra.mxu0 0.0
    %2680 = vmatprep.subr.mxu0 0.0
    %2681 = vmatpush1.msra.mxu0 0.0
    %2682 = vmatprep.subr.mxu0 0.0
    %2683 = vmatpush1.msra.mxu0 0.0
    %2684 = vmatprep.subr.mxu0 0.0
    %2685 = vmatpush1.msra.mxu0 0.0
    %2686 = vmatprep.subr.mxu0 0.0
    %2687 = vmatpush1.msra.mxu0 0.0
    %2688 = vmatprep.subr.mxu0 0.0
    %2689 = vmatpush1.msra.mxu0 0.0
    %2690 = vmatprep.subr.mxu0 0.0
    %2691 = vmatpush1.msra.mxu0 0.0
    %2692 = vmatprep.subr.mxu0 0.0
    %2693 = vmatpush1.msra.mxu0 0.0
    %2694 = vmatprep.subr.mxu0 0.0
    %2695 = vmatpush1.msra.mxu0 0.0
    %2696 = vmatprep.subr.mxu0 0.0
    %2697 = vmatpush1.msra.mxu0 0.0
    %2698 = vmatprep.subr.mxu0 0.0
    %2699 = vmatpush1.msra.mxu0 0.0
    %2700 = vmatprep.subr.mxu0 0.0
    %2701 = vmatpush1.msra.mxu0 0.0
    %2702 = vmatprep.subr.mxu0 0.0
    %2703 = vmatpush1.msra.mxu0 0.0
    %2704 = vmatprep.subr.mxu0 0.0
    %2705 = vmatpush1.msra.mxu0 0.0
    %2706 = vmatprep.subr.mxu0 0.0
    %2707 = vmatpush1.msra.mxu0 0.0
    %2708 = vmatprep.subr.mxu0 0.0
    %2709 = vmatpush1.msra.mxu0 0.0
    %2710 = vmatprep.subr.mxu0 0.0
    %2711 = vmatpush1.msra.mxu0 0.0
    %2712 = vmatprep.subr.mxu0 0.0
    %2713 = vmatpush1.msra.mxu0 0.0
    %2714 = vmatprep.subr.mxu0 0.0
    %2715 = vmatpush1.msra.mxu0 0.0
    %2716 = vmatprep.mubr.f32.mxu0 0.0
    %2717 = vmatmul.mubr.f32.gmra.mrb[0].mxu0 %v2648
    %v2718 = vpop.f32.mrb[0].mxu0
    %v2719 = vadd.f32 0.0, %v2718
    %v2720 = vpop.f32.mrb[0].mxu0
    %2721 = vdwg.mxu0
    %2723 = vrot.lane.b32.xlu0 %v2559, 8
    %v2724 = vpop.permute.xlu0 %2723
    %2727 = vrot.lane.b32.xlu0 %v2639, 16
    %v2728 = vpop.permute.xlu0 %2727
    %2731 = vrot.lane.b32.xlu0 %v2719, 24
    %v2732 = vpop.permute.xlu0 %2731
    %v2734 = vsel %vm1304, %v2479, %v2724
    %v2735 = vsel %vm2007, %v2734, %v2728
    %v2736 = vsel %vm2009, %v2735, %v2732
    %v2738 = vrot.slane %v2736, 4
    %v2740 = vsel %vm1681, %v2010, %v2738
    %v2741 = vld [vmem:[%s35] sm:$0xff]
    %v2742 = vld [vmem:[%s35 + $0x8] sm:$0xff]
    %v2743 = vld [vmem:[%s35 + $0x10] sm:$0xff]
    %v2744 = vld [vmem:[%s35 + $0x18] sm:$0xff]
    %v2746 = vsel %vm816, %v2740, 0
    %2748 = vmatprep.subr.mxu0 0.0
    %2749 = vmatpush1.msra.mxu0 %v2741
    %2750 = vmatprep.subr.mxu0 0.0
    %2751 = vmatpush1.msra.mxu0 %v2742
    %2752 = vmatprep.subr.mxu0 0.0
    %2753 = vmatpush1.msra.mxu0 %v2743
    %2754 = vmatprep.subr.mxu0 0.0
    %2755 = vmatpush1.msra.mxu0 %v2744
    %2756 = vmatprep.subr.mxu0 0.0
    %2757 = vmatpush1.msra.mxu0 0.0
    %2758 = vmatprep.subr.mxu0 0.0
    %2759 = vmatpush1.msra.mxu0 0.0
    %2760 = vmatprep.subr.mxu0 0.0
    %2761 = vmatpush1.msra.mxu0 0.0
    %2762 = vmatprep.subr.mxu0 0.0
    %2763 = vmatpush1.msra.mxu0 0.0
    %2764 = vmatprep.subr.mxu0 0.0
    %2765 = vmatpush1.msra.mxu0 0.0
    %2766 = vmatprep.subr.mxu0 0.0
    %2767 = vmatpush1.msra.mxu0 0.0
    %2768 = vmatprep.subr.mxu0 0.0
    %2769 = vmatpush1.msra.mxu0 0.0
    %2770 = vmatprep.subr.mxu0 0.0
    %2771 = vmatpush1.msra.mxu0 0.0
    %2772 = vmatprep.subr.mxu0 0.0
    %2773 = vmatpush1.msra.mxu0 0.0
    %2774 = vmatprep.subr.mxu0 0.0
    %2775 = vmatpush1.msra.mxu0 0.0
    %2776 = vmatprep.subr.mxu0 0.0
    %2777 = vmatpush1.msra.mxu0 0.0
    %2778 = vmatprep.subr.mxu0 0.0
    %2779 = vmatpush1.msra.mxu0 0.0
    %2780 = vmatprep.subr.mxu0 0.0
    %2781 = vmatpush1.msra.mxu0 0.0
    %2782 = vmatprep.subr.mxu0 0.0
    %2783 = vmatpush1.msra.mxu0 0.0
    %2784 = vmatprep.subr.mxu0 0.0
    %2785 = vmatpush1.msra.mxu0 0.0
    %2786 = vmatprep.subr.mxu0 0.0
    %2787 = vmatpush1.msra.mxu0 0.0
    %2788 = vmatprep.subr.mxu0 0.0
    %2789 = vmatpush1.msra.mxu0 0.0
    %2790 = vmatprep.subr.mxu0 0.0
    %2791 = vmatpush1.msra.mxu0 0.0
    %2792 = vmatprep.subr.mxu0 0.0
    %2793 = vmatpush1.msra.mxu0 0.0
    %2794 = vmatprep.subr.mxu0 0.0
    %2795 = vmatpush1.msra.mxu0 0.0
    %2796 = vmatprep.subr.mxu0 0.0
    %2797 = vmatpush1.msra.mxu0 0.0
    %2798 = vmatprep.subr.mxu0 0.0
    %2799 = vmatpush1.msra.mxu0 0.0
    %2800 = vmatprep.subr.mxu0 0.0
    %2801 = vmatpush1.msra.mxu0 0.0
    %2802 = vmatprep.subr.mxu0 0.0
    %2803 = vmatpush1.msra.mxu0 0.0
    %2804 = vmatprep.subr.mxu0 0.0
    %2805 = vmatpush1.msra.mxu0 0.0
    %2806 = vmatprep.subr.mxu0 0.0
    %2807 = vmatpush1.msra.mxu0 0.0
    %2808 = vmatprep.subr.mxu0 0.0
    %2809 = vmatpush1.msra.mxu0 0.0
    %2810 = vmatprep.subr.mxu0 0.0
    %2811 = vmatpush1.msra.mxu0 0.0
    %2812 = vmatprep.mubr.f32.mxu0 0.0
    %2813 = vmatmul.mubr.f32.gmra.mrb[0].mxu0 %v2746
    %v2814 = vpop.f32.mrb[0].mxu0
    %v2815 = vadd.f32 0.0, %v2814
    %v2816 = vpop.f32.mrb[0].mxu0
    %2817 = vdwg.mxu0
    %v2818 = vadd.f32 %v1156, %v2815
    %v2819 = vld [vmem:[%s37] sm:$0x1]
    %v2821 = vlaneseq
    %v2822 = vshrl.u32 %v2821, 7
    %v2823 = vsub.s32 0, %v2822
    %v2824 = vrot.slane %v2819, %v2823
    %v2826 = vadd.f32 %v2818, %v2824
    %v2827 = vld [vmem:[%s39] sm:$0x1]
    %v2828 = vld [vmem:[%s41] sm:$0x1]
    %v2829 = vsel %vm816, %v2826, 0.0
    %2830 = vadd.xlane.f32.xlu0 %v2829
    %v2831 = vpop.xlane.xlu0 %2830
    %v2832 = vmul.f32 %v2831, %v1167
    %v2833 = vsub.f32 %v2826, %v2832
    %v2834 = vmul.f32 %v2833, %v2833
    %v2835 = vsel %vm816, %v2834, 0.0
    %2836 = vadd.xlane.f32.xlu0 %v2835
    %v2837 = vpop.xlane.xlu0 %2836
    %v2838 = vmul.f32 %v2837, %v1167
    %v2839 = vadd.f32 %v2838, 1e-05
    %v2840 = vrsqrt.pop %v2839
    %v2841 = vmul.f32 %v2833, %v2840
    %v2843 = vlaneseq
    %v2844 = vshrl.u32 %v2843, 7
    %v2845 = vsub.s32 0, %v2844
    %v2846 = vrot.slane %v2827, %v2845
    %v2848 = vmul.f32 %v2841, %v2846
    %v2850 = vlaneseq
    %v2851 = vshrl.u32 %v2850, 7
    %v2852 = vsub.s32 0, %v2851
    %v2853 = vrot.slane %v2828, %v2852
    %v2855 = vadd.f32 %v2848, %v2853
    %v2856 = vld [vmem:[%s43] sm:$0xff]
    %v2857 = vld [vmem:[%s43 + $0x8] sm:$0xff]
    %v2858 = vld [vmem:[%s43 + $0x10] sm:$0xff]
    %v2859 = vld [vmem:[%s43 + $0x18] sm:$0xff]
    %v2860 = vld [vmem:[%s45] sm:$0x1]
    %v2862 = vlaneseq
    %v2863 = vshrl.u32 %v2862, 7
    %v2864 = vsub.s32 0, %v2863
    %v2865 = vrot.slane %v2860, %v2864
    %v2868 = vsel %vm816, %v2855, 0
    %2870 = vmatprep.subr.mxu0 0.0
    %2871 = vmatpush1.msra.mxu0 %v2856
    %2872 = vmatprep.subr.mxu0 0.0
    %2873 = vmatpush1.msra.mxu0 %v2857
    %2874 = vmatprep.subr.mxu0 0.0
    %2875 = vmatpush1.msra.mxu0 %v2858
    %2876 = vmatprep.subr.mxu0 0.0
    %2877 = vmatpush1.msra.mxu0 %v2859
    %2878 = vmatprep.subr.mxu0 0.0
    %2879 = vmatpush1.msra.mxu0 0.0
    %2880 = vmatprep.subr.mxu0 0.0
    %2881 = vmatpush1.msra.mxu0 0.0
    %2882 = vmatprep.subr.mxu0 0.0
    %2883 = vmatpush1.msra.mxu0 0.0
    %2884 = vmatprep.subr.mxu0 0.0
    %2885 = vmatpush1.msra.mxu0 0.0
    %2886 = vmatprep.subr.mxu0 0.0
    %2887 = vmatpush1.msra.mxu0 0.0
    %2888 = vmatprep.subr.mxu0 0.0
    %2889 = vmatpush1.msra.mxu0 0.0
    %2890 = vmatprep.subr.mxu0 0.0
    %2891 = vmatpush1.msra.mxu0 0.0
    %2892 = vmatprep.subr.mxu0 0.0
    %2893 = vmatpush1.msra.mxu0 0.0
    %2894 = vmatprep.subr.mxu0 0.0
    %2895 = vmatpush1.msra.mxu0 0.0
    %2896 = vmatprep.subr.mxu0 0.0
    %2897 = vmatpush1.msra.mxu0 0.0
    %2898 = vmatprep.subr.mxu0 0.0
    %2899 = vmatpush1.msra.mxu0 0.0
    %2900 = vmatprep.subr.mxu0 0.0
    %2901 = vmatpush1.msra.mxu0 0.0
    %2902 = vmatprep.subr.mxu0 0.0
    %2903 = vmatpush1.msra.mxu0 0.0
    %2904 = vmatprep.subr.mxu0 0.0
    %2905 = vmatpush1.msra.mxu0 0.0
    %2906 = vmatprep.subr.mxu0 0.0
    %2907 = vmatpush1.msra.mxu0 0.0
    %2908 = vmatprep.subr.mxu0 0.0
    %2909 = vmatpush1.msra.mxu0 0.0
    %2910 = vmatprep.subr.mxu0 0.0
    %2911 = vmatpush1.msra.mxu0 0.0
    %2912 = vmatprep.subr.mxu0 0.0
    %2913 = vmatpush1.msra.mxu0 0.0
    %2914 = vmatprep.subr.mxu0 0.0
    %2915 = vmatpush1.msra.mxu0 0.0
    %2916 = vmatprep.subr.mxu0 0.0
    %2917 = vmatpush1.msra.mxu0 0.0
    %2918 = vmatprep.subr.mxu0 0.0
    %2919 = vmatpush1.msra.mxu0 0.0
    %2920 = vmatprep.subr.mxu0 0.0
    %2921 = vmatpush1.msra.mxu0 0.0
    %2922 = vmatprep.subr.mxu0 0.0
    %2923 = vmatpush1.msra.mxu0 0.0
    %2924 = vmatprep.subr.mxu0 0.0
    %2925 = vmatpush1.msra.mxu0 0.0
    %2926 = vmatprep.subr.mxu0 0.0
    %2927 = vmatpush1.msra.mxu0 0.0
    %2928 = vmatprep.subr.mxu0 0.0
    %2929 = vmatpush1.msra.mxu0 0.0
    %2930 = vmatprep.subr.mxu0 0.0
    %2931 = vmatpush1.msra.mxu0 0.0
    %2932 = vmatprep.subr.mxu0 0.0
    %2933 = vmatpush1.msra.mxu0 0.0
    %2934 = vmatprep.mubr.f32.mxu0 0.0
    %2935 = vmatmul.mubr.f32.gmra.mrb[0].mxu0 %v2868
    %v2936 = vpop.f32.mrb[0].mxu0
    %v2937 = vadd.f32 %v2865, %v2936
    %v2938 = vpop.f32.mrb[0].mxu0
    %2939 = vdwg.mxu0
    %v2940 = vmax.f32 %v2937, 0.0
    %v2941 = vld [vmem:[%s47] sm:$0xff]
    %v2942 = vld [vmem:[%s47 + $0x8] sm:$0xff]
    %v2943 = vld [vmem:[%s47 + $0x10] sm:$0xff]
    %v2944 = vld [vmem:[%s47 + $0x18] sm:$0xff]
    %v2945 = vld [vmem:[%s47 + $0x20] sm:$0xff]
    %v2946 = vld [vmem:[%s47 + $0x28] sm:$0xff]
    %v2947 = vld [vmem:[%s47 + $0x30] sm:$0xff]
    %v2948 = vld [vmem:[%s47 + $0x38] sm:$0xff]
    %v2950 = vsel %vm820, %v2940, 0
    %2952 = vmatprep.subr.mxu0 0.0
    %2953 = vmatpush1.msra.mxu0 %v2941
    %2954 = vmatprep.subr.mxu0 0.0
    %2955 = vmatpush1.msra.mxu0 %v2942
    %2956 = vmatprep.subr.mxu0 0.0
    %2957 = vmatpush1.msra.mxu0 %v2943
    %2958 = vmatprep.subr.mxu0 0.0
    %2959 = vmatpush1.msra.mxu0 %v2944
    %2960 = vmatprep.subr.mxu0 0.0
    %2961 = vmatpush1.msra.mxu0 %v2945
    %2962 = vmatprep.subr.mxu0 0.0
    %2963 = vmatpush1.msra.mxu0 %v2946
    %2964 = vmatprep.subr.mxu0 0.0
    %2965 = vmatpush1.msra.mxu0 %v2947
    %2966 = vmatprep.subr.mxu0 0.0
    %2967 = vmatpush1.msra.mxu0 %v2948
    %2968 = vmatprep.subr.mxu0 0.0
    %2969 = vmatpush1.msra.mxu0 0.0
    %2970 = vmatprep.subr.mxu0 0.0
    %2971 = vmatpush1.msra.mxu0 0.0
    %2972 = vmatprep.subr.mxu0 0.0
    %2973 = vmatpush1.msra.mxu0 0.0
    %2974 = vmatprep.subr.mxu0 0.0
    %2975 = vmatpush1.msra.mxu0 0.0
    %2976 = vmatprep.subr.mxu0 0.0
    %2977 = vmatpush1.msra.mxu0 0.0
    %2978 = vmatprep.subr.mxu0 0.0
    %2979 = vmatpush1.msra.mxu0 0.0
    %2980 = vmatprep.subr.mxu0 0.0
    %2981 = vmatpush1.msra.mxu0 0.0
    %2982 = vmatprep.subr.mxu0 0.0
    %2983 = vmatpush1.msra.mxu0 0.0
    %2984 = vmatprep.subr.mxu0 0.0
    %2985 = vmatpush1.msra.mxu0 0.0
    %2986 = vmatprep.subr.mxu0 0.0
    %2987 = vmatpush1.msra.mxu0 0.0
    %2988 = vmatprep.subr.mxu0 0.0
    %2989 = vmatpush1.msra.mxu0 0.0
    %2990 = vmatprep.subr.mxu0 0.0
    %2991 = vmatpush1.msra.mxu0 0.0
    %2992 = vmatprep.subr.mxu0 0.0
    %2993 = vmatpush1.msra.mxu0 0.0
    %2994 = vmatprep.subr.mxu0 0.0
    %2995 = vmatpush1.msra.mxu0 0.0
    %2996 = vmatprep.subr.mxu0 0.0
    %2997 = vmatpush1.msra.mxu0 0.0
    %2998 = vmatprep.subr.mxu0 0.0
    %2999 = vmatpush1.msra.mxu0 0.0
    %3000 = vmatprep.subr.mxu0 0.0
    %3001 = vmatpush1.msra.mxu0 0.0
    %3002 = vmatprep.subr.mxu0 0.0
    %3003 = vmatpush1.msra.mxu0 0.0
    %3004 = vmatprep.subr.mxu0 0.0
    %3005 = vmatpush1.msra.mxu0 0.0
    %3006 = vmatprep.subr.mxu0 0.0
    %3007 = vmatpush1.msra.mxu0 0.0
    %3008 = vmatprep.subr.mxu0 0.0
    %3009 = vmatpush1.msra.mxu0 0.0
    %3010 = vmatprep.subr.mxu0 0.0
    %3011 = vmatpush1.msra.mxu0 0.0
    %3012 = vmatprep.subr.mxu0 0.0
    %3013 = vmatpush1.msra.mxu0 0.0
    %3014 = vmatprep.subr.mxu0 0.0
    %3015 = vmatpush1.msra.mxu0 0.0
    %3016 = vmatprep.mubr.f32.mxu0 0.0
    %3017 = vmatmul.mubr.f32.gmra.mrb[0].mxu0 %v2950
    %v3018 = vpop.f32.mrb[0].mxu0
    %v3019 = vadd.f32 0.0, %v3018
    %v3020 = vpop.f32.mrb[0].mxu0
    %3021 = vdwg.mxu0
    %v3022 = vadd.f32 %v2826, %v3019
    %v3023 = vld [vmem:[%s49] sm:$0x1]
    %v3025 = vlaneseq
    %v3026 = vshrl.u32 %v3025, 7
    %v3027 = vsub.s32 0, %v3026
    %v3028 = vrot.slane %v3023, %v3027
    %v3030 = vadd.f32 %v3022, %v3028
    %s3031 = scalar_lea.vmem %s27, 1
    %v3032 = vld [vmem:[%s3031] sm:$0x1]
    %s3033 = scalar_lea.vmem %s29, 1
    %v3034 = vld [vmem:[%s3033] sm:$0x1]
    %v3035 = vsel %vm816, %v3030, 0.0
    %3036 = vadd.xlane.f32.xlu0 %v3035
    %v3037 = vpop.xlane.xlu0 %3036
    %v3038 = vmul.f32 %v3037, %v1167
    %v3039 = vsub.f32 %v3030, %v3038
    %v3040 = vmul.f32 %v3039, %v3039
    %v3041 = vsel %vm816, %v3040, 0.0
    %3042 = vadd.xlane.f32.xlu0 %v3041
    %v3043 = vpop.xlane.xlu0 %3042
    %v3044 = vmul.f32 %v3043, %v1167
    %v3045 = vadd.f32 %v3044, 1e-05
    %v3046 = vrsqrt.pop %v3045
    %v3047 = vmul.f32 %v3039, %v3046
    %v3049 = vlaneseq
    %v3050 = vshrl.u32 %v3049, 7
    %v3051 = vsub.s32 0, %v3050
    %v3052 = vrot.slane %v3032, %v3051
    %v3054 = vmul.f32 %v3047, %v3052
    %v3056 = vlaneseq
    %v3057 = vshrl.u32 %v3056, 7
    %v3058 = vsub.s32 0, %v3057
    %v3059 = vrot.slane %v3034, %v3058
    %v3061 = vadd.f32 %v3054, %v3059
    %s3062 = scalar_lea.vmem %s31, 32
    %v3063 = vld [vmem:[%s3062] sm:$0xff]
    %v3064 = vld [vmem:[%s3062 + $0x8] sm:$0xff]
    %v3065 = vld [vmem:[%s3062 + $0x10] sm:$0xff]
    %v3066 = vld [vmem:[%s3062 + $0x18] sm:$0xff]
    %s3067 = scalar_lea.vmem %s33, 1
    %v3068 = vld [vmem:[%s3067] sm:$0x1]
    %v3070 = vlaneseq
    %v3071 = vshrl.u32 %v3070, 7
    %v3072 = vsub.s32 0, %v3071
    %v3073 = vrot.slane %v3068, %v3072
    %v3076 = vsel %vm816, %v3061, 0
    %3078 = vmatprep.subr.mxu0 0.0
    %3079 = vmatpush1.msra.mxu0 %v3063
    %3080 = vmatprep.subr.mxu0 0.0
    %3081 = vmatpush1.msra.mxu0 %v3064
    %3082 = vmatprep.subr.mxu0 0.0
    %3083 = vmatpush1.msra.mxu0 %v3065
    %3084 = vmatprep.subr.mxu0 0.0
    %3085 = vmatpush1.msra.mxu0 %v3066
    %3086 = vmatprep.subr.mxu0 0.0
    %3087 = vmatpush1.msra.mxu0 0.0
    %3088 = vmatprep.subr.mxu0 0.0
    %3089 = vmatpush1.msra.mxu0 0.0
    %3090 = vmatprep.subr.mxu0 0.0
    %3091 = vmatpush1.msra.mxu0 0.0
    %3092 = vmatprep.subr.mxu0 0.0
    %3093 = vmatpush1.msra.mxu0 0.0
    %3094 = vmatprep.subr.mxu0 0.0
    %3095 = vmatpush1.msra.mxu0 0.0
    %3096 = vmatprep.subr.mxu0 0.0
    %3097 = vmatpush1.msra.mxu0 0.0
    %3098 = vmatprep.subr.mxu0 0.0
    %3099 = vmatpush1.msra.mxu0 0.0
    %3100 = vmatprep.subr.mxu0 0.0
    %3101 = vmatpush1.msra.mxu0 0.0
    %3102 = vmatprep.subr.mxu0 0.0
    %3103 = vmatpush1.msra.mxu0 0.0
    %3104 = vmatprep.subr.mxu0 0.0
    %3105 = vmatpush1.msra.mxu0 0.0
    %3106 = vmatprep.subr.mxu0 0.0
    %3107 = vmatpush1.msra.mxu0 0.0
    %3108 = vmatprep.subr.mxu0 0.0
    %3109 = vmatpush1.msra.mxu0 0.0
    %3110 = vmatprep.subr.mxu0 0.0
    %3111 = vmatpush1.msra.mxu0 0.0
    %3112 = vmatprep.subr.mxu0 0.0
    %3113 = vmatpush1.msra.mxu0 0.0
    %3114 = vmatprep.subr.mxu0 0.0
    %3115 = vmatpush1.msra.mxu0 0.0
    %3116 = vmatprep.subr.mxu0 0.0
    %3117 = vmatpush1.msra.mxu0 0.0
    %3118 = vmatprep.subr.mxu0 0.0
    %3119 = vmatpush1.msra.mxu0 0.0
    %3120 = vmatprep.subr.mxu0 0.0
    %3121 = vmatpush1.msra.mxu0 0.0
    %3122 = vmatprep.subr.mxu0 0.0
    %3123 = vmatpush1.msra.mxu0 0.0
    %3124 = vmatprep.subr.mxu0 0.0
    %3125 = vmatpush1.msra.mxu0 0.0
    %3126 = vmatprep.subr.mxu0 0.0
    %3127 = vmatpush1.msra.mxu0 0.0
    %3128 = vmatprep.subr.mxu0 0.0
    %3129 = vmatpush1.msra.mxu0 0.0
    %3130 = vmatprep.subr.mxu0 0.0
    %3131 = vmatpush1.msra.mxu0 0.0
    %3132 = vmatprep.subr.mxu0 0.0
    %3133 = vmatpush1.msra.mxu0 0.0
    %3134 = vmatprep.subr.mxu0 0.0
    %3135 = vmatpush1.msra.mxu0 0.0
    %3136 = vmatprep.subr.mxu0 0.0
    %3137 = vmatpush1.msra.mxu0 0.0
    %3138 = vmatprep.subr.mxu0 0.0
    %3139 = vmatpush1.msra.mxu0 0.0
    %3140 = vmatprep.subr.mxu0 0.0
    %3141 = vmatpush1.msra.mxu0 0.0
    %3142 = vmatprep.mubr.f32.mxu0 0.0
    %3143 = vmatmul.mubr.f32.gmra.mrb[0].mxu0 %v3076
    %v3144 = vpop.f32.mrb[0].mxu0
    %v3145 = vadd.f32 %v3073, %v3144
    %v3146 = vpop.f32.mrb[0].mxu0
    %3147 = vdwg.mxu0
    %s3148 = scalar_lea.vmem %s25, 8
    %v3149 = vld [vmem:[%s3148] sm:$0xff]
    %3151 = vrot.lane.b32.xlu0 %v3145, 96
    %v3152 = vpop.permute.xlu0 %3151
    %s3154 = scalar_lea.vmem %s61, 8
    %3155 = vst.msk [vmem:[%s3154 - $0x4] sm:$0xf0] %vm1281, %v3149
    %3156 = vst.msk [vmem:[%s3154 + $0x4] sm:$0xf] %vm1283, %v3152
    %3157 = vrot.lane.b32.xlu0 %v3145, 120
    %v3158 = vpop.permute.xlu0 %3157
    %3159 = vrot.lane.b32.xlu0 %v3145, 112
    %v3160 = vpop.permute.xlu0 %3159
    %3161 = vrot.lane.b32.xlu0 %v3145, 104
    %v3162 = vpop.permute.xlu0 %3161
    %3164 = vrot.lane.b32.xlu0 %v3149, 120
    %v3165 = vpop.permute.xlu0 %3164
    %3166 = vrot.lane.b32.xlu0 %v3152, 120
    %v3167 = vpop.permute.xlu0 %3166
    %3168 = vrot.lane.b32.xlu0 %v3149, 112
    %v3169 = vpop.permute.xlu0 %3168
    %3170 = vrot.lane.b32.xlu0 %v3152, 112
    %v3171 = vpop.permute.xlu0 %3170
    %3172 = vrot.lane.b32.xlu0 %v3149, 104
    %v3173 = vpop.permute.xlu0 %3172
    %3174 = vrot.lane.b32.xlu0 %v3152, 104
    %v3175 = vpop.permute.xlu0 %3174
    %v3176 = vsel %vm1304, %v3145, 0
    %v3178 = vsel %vm1304, %v3149, 0
    %v3180 = vsel %vm1304, %v3152, 0
    %3182 = vmatprep.subr.mxu0 0.0
    %3183 = vmatpush1.xpose.msra.mxu0 %v3178
    %3184 = vmatprep.subr.mxu0 0.0
    %3185 = vmatpush1.xpose.msra.mxu0 %v3180
    %3186 = vmatprep.subr.mxu0 0.0
    %3187 = vmatpush1.xpose.msra.mxu0 0.0
    %3188 = vmatprep.subr.mxu0 0.0
    %3189 = vmatpush1.xpose.msra.mxu0 0.0
    %3190 = vmatprep.subr.mxu0 0.0
    %3191 = vmatpush1.xpose.msra.mxu0 0.0
    %3192 = vmatprep.subr.mxu0 0.0
    %3193 = vmatpush1.xpose.msra.mxu0 0.0
    %3194 = vmatprep.subr.mxu0 0.0
    %3195 = vmatpush1.xpose.msra.mxu0 0.0
    %3196 = vmatprep.subr.mxu0 0.0
    %3197 = vmatpush1.xpose.msra.mxu0 0.0
    %3198 = vmatprep.subr.mxu0 0.0
    %3199 = vmatpush1.xpose.msra.mxu0 0.0
    %3200 = vmatprep.subr.mxu0 0.0
    %3201 = vmatpush1.xpose.msra.mxu0 0.0
    %3202 = vmatprep.subr.mxu0 0.0
    %3203 = vmatpush1.xpose.msra.mxu0 0.0
    %3204 = vmatprep.subr.mxu0 0.0
    %3205 = vmatpush1.xpose.msra.mxu0 0.0
    %3206 = vmatprep.subr.mxu0 0.0
    %3207 = vmatpush1.xpose.msra.mxu0 0.0
    %3208 = vmatprep.subr.mxu0 0.0
    %3209 = vmatpush1.xpose.msra.mxu0 0.0
    %3210 = vmatprep.subr.mxu0 0.0
    %3211 = vmatpush1.xpose.msra.mxu0 0.0
    %3212 = vmatprep.subr.mxu0 0.0
    %3213 = vmatpush1.xpose.msra.mxu0 0.0
    %3214 = vmatprep.subr.mxu0 0.0
    %3215 = vmatpush1.xpose.msra.mxu0 0.0
    %3216 = vmatprep.subr.mxu0 0.0
    %3217 = vmatpush1.xpose.msra.mxu0 0.0
    %3218 = vmatprep.subr.mxu0 0.0
    %3219 = vmatpush1.xpose.msra.mxu0 0.0
    %3220 = vmatprep.subr.mxu0 0.0
    %3221 = vmatpush1.xpose.msra.mxu0 0.0
    %3222 = vmatprep.subr.mxu0 0.0
    %3223 = vmatpush1.xpose.msra.mxu0 0.0
    %3224 = vmatprep.subr.mxu0 0.0
    %3225 = vmatpush1.xpose.msra.mxu0 0.0
    %3226 = vmatprep.subr.mxu0 0.0
    %3227 = vmatpush1.xpose.msra.mxu0 0.0
    %3228 = vmatprep.subr.mxu0 0.0
    %3229 = vmatpush1.xpose.msra.mxu0 0.0
    %3230 = vmatprep.subr.mxu0 0.0
    %3231 = vmatpush1.xpose.msra.mxu0 0.0
    %3232 = vmatprep.subr.mxu0 0.0
    %3233 = vmatpush1.xpose.msra.mxu0 0.0
    %3234 = vmatprep.subr.mxu0 0.0
    %3235 = vmatpush1.xpose.msra.mxu0 0.0
    %3236 = vmatprep.subr.mxu0 0.0
    %3237 = vmatpush1.xpose.msra.mxu0 0.0
    %3238 = vmatprep.subr.mxu0 0.0
    %3239 = vmatpush1.xpose.msra.mxu0 0.0
    %3240 = vmatprep.subr.mxu0 0.0
    %3241 = vmatpush1.xpose.msra.mxu0 0.0
    %3242 = vmatprep.subr.mxu0 0.0
    %3243 = vmatpush1.xpose.msra.mxu0 0.0
    %3244 = vmatprep.subr.mxu0 0.0
    %3245 = vmatpush1.xpose.msra.mxu0 0.0
    %3246 = vmatprep.mubr.f32.mxu0 0.0
    %3247 = vmatmul.mubr.f32.gmra.mrb[0].mxu0 %v3176
    %v3248 = vpop.f32.mrb[0].mxu0
    %v3249 = vadd.f32 0.0, %v3248
    %v3250 = vpop.f32.mrb[0].mxu0
    %3251 = vdwg.mxu0
    %v3252 = vsel %vm1304, %v3158, 0
    %v3254 = vsel %vm1304, %v3165, 0
    %v3256 = vsel %vm1304, %v3167, 0
    %3258 = vmatprep.subr.mxu0 0.0
    %3259 = vmatpush1.xpose.msra.mxu0 %v3254
    %3260 = vmatprep.subr.mxu0 0.0
    %3261 = vmatpush1.xpose.msra.mxu0 %v3256
    %3262 = vmatprep.subr.mxu0 0.0
    %3263 = vmatpush1.xpose.msra.mxu0 0.0
    %3264 = vmatprep.subr.mxu0 0.0
    %3265 = vmatpush1.xpose.msra.mxu0 0.0
    %3266 = vmatprep.subr.mxu0 0.0
    %3267 = vmatpush1.xpose.msra.mxu0 0.0
    %3268 = vmatprep.subr.mxu0 0.0
    %3269 = vmatpush1.xpose.msra.mxu0 0.0
    %3270 = vmatprep.subr.mxu0 0.0
    %3271 = vmatpush1.xpose.msra.mxu0 0.0
    %3272 = vmatprep.subr.mxu0 0.0
    %3273 = vmatpush1.xpose.msra.mxu0 0.0
    %3274 = vmatprep.subr.mxu0 0.0
    %3275 = vmatpush1.xpose.msra.mxu0 0.0
    %3276 = vmatprep.subr.mxu0 0.0
    %3277 = vmatpush1.xpose.msra.mxu0 0.0
    %3278 = vmatprep.subr.mxu0 0.0
    %3279 = vmatpush1.xpose.msra.mxu0 0.0
    %3280 = vmatprep.subr.mxu0 0.0
    %3281 = vmatpush1.xpose.msra.mxu0 0.0
    %3282 = vmatprep.subr.mxu0 0.0
    %3283 = vmatpush1.xpose.msra.mxu0 0.0
    %3284 = vmatprep.subr.mxu0 0.0
    %3285 = vmatpush1.xpose.msra.mxu0 0.0
    %3286 = vmatprep.subr.mxu0 0.0
    %3287 = vmatpush1.xpose.msra.mxu0 0.0
    %3288 = vmatprep.subr.mxu0 0.0
    %3289 = vmatpush1.xpose.msra.mxu0 0.0
    %3290 = vmatprep.subr.mxu0 0.0
    %3291 = vmatpush1.xpose.msra.mxu0 0.0
    %3292 = vmatprep.subr.mxu0 0.0
    %3293 = vmatpush1.xpose.msra.mxu0 0.0
    %3294 = vmatprep.subr.mxu0 0.0
    %3295 = vmatpush1.xpose.msra.mxu0 0.0
    %3296 = vmatprep.subr.mxu0 0.0
    %3297 = vmatpush1.xpose.msra.mxu0 0.0
    %3298 = vmatprep.subr.mxu0 0.0
    %3299 = vmatpush1.xpose.msra.mxu0 0.0
    %3300 = vmatprep.subr.mxu0 0.0
    %3301 = vmatpush1.xpose.msra.mxu0 0.0
    %3302 = vmatprep.subr.mxu0 0.0
    %3303 = vmatpush1.xpose.msra.mxu0 0.0
    %3304 = vmatprep.subr.mxu0 0.0
    %3305 = vmatpush1.xpose.msra.mxu0 0.0
    %3306 = vmatprep.subr.mxu0 0.0
    %3307 = vmatpush1.xpose.msra.mxu0 0.0
    %3308 = vmatprep.subr.mxu0 0.0
    %3309 = vmatpush1.xpose.msra.mxu0 0.0
    %3310 = vmatprep.subr.mxu0 0.0
    %3311 = vmatpush1.xpose.msra.mxu0 0.0
    %3312 = vmatprep.subr.mxu0 0.0
    %3313 = vmatpush1.xpose.msra.mxu0 0.0
    %3314 = vmatprep.subr.mxu0 0.0
    %3315 = vmatpush1.xpose.msra.mxu0 0.0
    %3316 = vmatprep.subr.mxu0 0.0
    %3317 = vmatpush1.xpose.msra.mxu0 0.0
    %3318 = vmatprep.subr.mxu0 0.0
    %3319 = vmatpush1.xpose.msra.mxu0 0.0
    %3320 = vmatprep.subr.mxu0 0.0
    %3321 = vmatpush1.xpose.msra.mxu0 0.0
    %3322 = vmatprep.mubr.f32.mxu0 0.0
    %3323 = vmatmul.mubr.f32.gmra.mrb[0].mxu0 %v3252
    %v3324 = vpop.f32.mrb[0].mxu0
    %v3325 = vadd.f32 0.0, %v3324
    %v3326 = vpop.f32.mrb[0].mxu0
    %3327 = vdwg.mxu0
    %v3328 = vsel %vm1304, %v3160, 0
    %v3330 = vsel %vm1304, %v3169, 0
    %v3332 = vsel %vm1304, %v3171, 0
    %3334 = vmatprep.subr.mxu0 0.0
    %3335 = vmatpush1.xpose.msra.mxu0 %v3330
    %3336 = vmatprep.subr.mxu0 0.0
    %3337 = vmatpush1.xpose.msra.mxu0 %v3332
    %3338 = vmatprep.subr.mxu0 0.0
    %3339 = vmatpush1.xpose.msra.mxu0 0.0
    %3340 = vmatprep.subr.mxu0 0.0
    %3341 = vmatpush1.xpose.msra.mxu0 0.0
    %3342 = vmatprep.subr.mxu0 0.0
    %3343 = vmatpush1.xpose.msra.mxu0 0.0
    %3344 = vmatprep.subr.mxu0 0.0
    %3345 = vmatpush1.xpose.msra.mxu0 0.0
    %3346 = vmatprep.subr.mxu0 0.0
    %3347 = vmatpush1.xpose.msra.mxu0 0.0
    %3348 = vmatprep.subr.mxu0 0.0
    %3349 = vmatpush1.xpose.msra.mxu0 0.0
    %3350 = vmatprep.subr.mxu0 0.0
    %3351 = vmatpush1.xpose.msra.mxu0 0.0
    %3352 = vmatprep.subr.mxu0 0.0
    %3353 = vmatpush1.xpose.msra.mxu0 0.0
    %3354 = vmatprep.subr.mxu0 0.0
    %3355 = vmatpush1.xpose.msra.mxu0 0.0
    %3356 = vmatprep.subr.mxu0 0.0
    %3357 = vmatpush1.xpose.msra.mxu0 0.0
    %3358 = vmatprep.subr.mxu0 0.0
    %3359 = vmatpush1.xpose.msra.mxu0 0.0
    %3360 = vmatprep.subr.mxu0 0.0
    %3361 = vmatpush1.xpose.msra.mxu0 0.0
    %3362 = vmatprep.subr.mxu0 0.0
    %3363 = vmatpush1.xpose.msra.mxu0 0.0
    %3364 = vmatprep.subr.mxu0 0.0
    %3365 = vmatpush1.xpose.msra.mxu0 0.0
    %3366 = vmatprep.subr.mxu0 0.0
    %3367 = vmatpush1.xpose.msra.mxu0 0.0
    %3368 = vmatprep.subr.mxu0 0.0
    %3369 = vmatpush1.xpose.msra.mxu0 0.0
    %3370 = vmatprep.subr.mxu0 0.0
    %3371 = vmatpush1.xpose.msra.mxu0 0.0
    %3372 = vmatprep.subr.mxu0 0.0
    %3373 = vmatpush1.xpose.msra.mxu0 0.0
    %3374 = vmatprep.subr.mxu0 0.0
    %3375 = vmatpush1.xpose.msra.mxu0 0.0
    %3376 = vmatprep.subr.mxu0 0.0
    %3377 = vmatpush1.xpose.msra.mxu0 0.0
    %3378 = vmatprep.subr.mxu0 0.0
    %3379 = vmatpush1.xpose.msra.mxu0 0.0
    %3380 = vmatprep.subr.mxu0 0.0
    %3381 = vmatpush1.xpose.msra.mxu0 0.0
    %3382 = vmatprep.subr.mxu0 0.0
    %3383 = vmatpush1.xpose.msra.mxu0 0.0
    %3384 = vmatprep.subr.mxu0 0.0
    %3385 = vmatpush1.xpose.msra.mxu0 0.0
    %3386 = vmatprep.subr.mxu0 0.0
    %3387 = vmatpush1.xpose.msra.mxu0 0.0
    %3388 = vmatprep.subr.mxu0 0.0
    %3389 = vmatpush1.xpose.msra.mxu0 0.0
    %3390 = vmatprep.subr.mxu0 0.0
    %3391 = vmatpush1.xpose.msra.mxu0 0.0
    %3392 = vmatprep.subr.mxu0 0.0
    %3393 = vmatpush1.xpose.msra.mxu0 0.0
    %3394 = vmatprep.subr.mxu0 0.0
    %3395 = vmatpush1.xpose.msra.mxu0 0.0
    %3396 = vmatprep.subr.mxu0 0.0
    %3397 = vmatpush1.xpose.msra.mxu0 0.0
    %3398 = vmatprep.mubr.f32.mxu0 0.0
    %3399 = vmatmul.mubr.f32.gmra.mrb[0].mxu0 %v3328
    %v3400 = vpop.f32.mrb[0].mxu0
    %v3401 = vadd.f32 0.0, %v3400
    %v3402 = vpop.f32.mrb[0].mxu0
    %3403 = vdwg.mxu0
    %v3404 = vsel %vm1304, %v3162, 0
    %v3406 = vsel %vm1304, %v3173, 0
    %v3408 = vsel %vm1304, %v3175, 0
    %3410 = vmatprep.subr.mxu0 0.0
    %3411 = vmatpush1.xpose.msra.mxu0 %v3406
    %3412 = vmatprep.subr.mxu0 0.0
    %3413 = vmatpush1.xpose.msra.mxu0 %v3408
    %3414 = vmatprep.subr.mxu0 0.0
    %3415 = vmatpush1.xpose.msra.mxu0 0.0
    %3416 = vmatprep.subr.mxu0 0.0
    %3417 = vmatpush1.xpose.msra.mxu0 0.0
    %3418 = vmatprep.subr.mxu0 0.0
    %3419 = vmatpush1.xpose.msra.mxu0 0.0
    %3420 = vmatprep.subr.mxu0 0.0
    %3421 = vmatpush1.xpose.msra.mxu0 0.0
    %3422 = vmatprep.subr.mxu0 0.0
    %3423 = vmatpush1.xpose.msra.mxu0 0.0
    %3424 = vmatprep.subr.mxu0 0.0
    %3425 = vmatpush1.xpose.msra.mxu0 0.0
    %3426 = vmatprep.subr.mxu0 0.0
    %3427 = vmatpush1.xpose.msra.mxu0 0.0
    %3428 = vmatprep.subr.mxu0 0.0
    %3429 = vmatpush1.xpose.msra.mxu0 0.0
    %3430 = vmatprep.subr.mxu0 0.0
    %3431 = vmatpush1.xpose.msra.mxu0 0.0
    %3432 = vmatprep.subr.mxu0 0.0
    %3433 = vmatpush1.xpose.msra.mxu0 0.0
    %3434 = vmatprep.subr.mxu0 0.0
    %3435 = vmatpush1.xpose.msra.mxu0 0.0
    %3436 = vmatprep.subr.mxu0 0.0
    %3437 = vmatpush1.xpose.msra.mxu0 0.0
    %3438 = vmatprep.subr.mxu0 0.0
    %3439 = vmatpush1.xpose.msra.mxu0 0.0
    %3440 = vmatprep.subr.mxu0 0.0
    %3441 = vmatpush1.xpose.msra.mxu0 0.0
    %3442 = vmatprep.subr.mxu0 0.0
    %3443 = vmatpush1.xpose.msra.mxu0 0.0
    %3444 = vmatprep.subr.mxu0 0.0
    %3445 = vmatpush1.xpose.msra.mxu0 0.0
    %3446 = vmatprep.subr.mxu0 0.0
    %3447 = vmatpush1.xpose.msra.mxu0 0.0
    %3448 = vmatprep.subr.mxu0 0.0
    %3449 = vmatpush1.xpose.msra.mxu0 0.0
    %3450 = vmatprep.subr.mxu0 0.0
    %3451 = vmatpush1.xpose.msra.mxu0 0.0
    %3452 = vmatprep.subr.mxu0 0.0
    %3453 = vmatpush1.xpose.msra.mxu0 0.0
    %3454 = vmatprep.subr.mxu0 0.0
    %3455 = vmatpush1.xpose.msra.mxu0 0.0
    %3456 = vmatprep.subr.mxu0 0.0
    %3457 = vmatpush1.xpose.msra.mxu0 0.0
    %3458 = vmatprep.subr.mxu0 0.0
    %3459 = vmatpush1.xpose.msra.mxu0 0.0
    %3460 = vmatprep.subr.mxu0 0.0
    %3461 = vmatpush1.xpose.msra.mxu0 0.0
    %3462 = vmatprep.subr.mxu0 0.0
    %3463 = vmatpush1.xpose.msra.mxu0 0.0
    %3464 = vmatprep.subr.mxu0 0.0
    %3465 = vmatpush1.xpose.msra.mxu0 0.0
    %3466 = vmatprep.subr.mxu0 0.0
    %3467 = vmatpush1.xpose.msra.mxu0 0.0
    %3468 = vmatprep.subr.mxu0 0.0
    %3469 = vmatpush1.xpose.msra.mxu0 0.0
    %3470 = vmatprep.subr.mxu0 0.0
    %3471 = vmatpush1.xpose.msra.mxu0 0.0
    %3472 = vmatprep.subr.mxu0 0.0
    %3473 = vmatpush1.xpose.msra.mxu0 0.0
    %3474 = vmatprep.mubr.f32.mxu0 0.0
    %3475 = vmatmul.mubr.f32.gmra.mrb[0].mxu0 %v3404
    %v3476 = vpop.f32.mrb[0].mxu0
    %v3477 = vadd.f32 0.0, %v3476
    %v3478 = vpop.f32.mrb[0].mxu0
    %3479 = vdwg.mxu0
    %v3480 = vmul.f32 %v3249, 0.35355338
    %v3481 = vmul.f32 %v3325, 0.35355338
    %v3482 = vmul.f32 %v3401, 0.35355338
    %v3483 = vmul.f32 %v3477, 0.35355338
    %v3484 = vsel %vm1618, %v3480, -1e+30
    %v3485 = vsel %vm1618, %v3481, -1e+30
    %v3486 = vsel %vm1618, %v3482, -1e+30
    %v3487 = vsel %vm1618, %v3483, -1e+30
    %v3488 = vsel %vm1623, %v3484, -inf
    %3489 = vmax.xlane.f32.xlu0 %v3488
    %v3490 = vpop.xlane.xlu0 %3489
    %v3491 = vsel %vm1623, %v3485, -inf
    %3492 = vmax.xlane.f32.xlu0 %v3491
    %v3493 = vpop.xlane.xlu0 %3492
    %v3494 = vsel %vm1623, %v3486, -inf
    %3495 = vmax.xlane.f32.xlu0 %v3494
    %v3496 = vpop.xlane.xlu0 %3495
    %v3497 = vsel %vm1623, %v3487, -inf
    %3498 = vmax.xlane.f32.xlu0 %v3497
    %v3499 = vpop.xlane.xlu0 %3498
    %v3500 = vsub.f32 %v3484, %v3490
    %v3501 = vsub.f32 %v3485, %v3493
    %v3502 = vsub.f32 %v3486, %v3496
    %v3503 = vsub.f32 %v3487, %v3499
    %v3504 = vmul.f32 %v3500, 1.442695
    %v3505 = vpow.pop %v3504
    %v3506 = vmul.f32 %v3501, 1.442695
    %v3507 = vpow.pop %v3506
    %v3508 = vmul.f32 %v3502, 1.442695
    %v3509 = vpow.pop %v3508
    %v3510 = vmul.f32 %v3503, 1.442695
    %v3511 = vpow.pop %v3510
    %v3512 = vsel %vm1623, %v3505, 0.0
    %3513 = vadd.xlane.f32.xlu0 %v3512
    %v3514 = vpop.xlane.xlu0 %3513
    %v3515 = vsel %vm1623, %v3507, 0.0
    %3516 = vadd.xlane.f32.xlu0 %v3515
    %v3517 = vpop.xlane.xlu0 %3516
    %v3518 = vsel %vm1623, %v3509, 0.0
    %3519 = vadd.xlane.f32.xlu0 %v3518
    %v3520 = vpop.xlane.xlu0 %3519
    %v3521 = vsel %vm1623, %v3511, 0.0
    %3522 = vadd.xlane.f32.xlu0 %v3521
    %v3523 = vpop.xlane.xlu0 %3522
    %v3524 = vmax.f32 %v3514, 1e-30
    %v3525 = vmax.f32 %v3517, 1e-30
    %v3526 = vmax.f32 %v3520, 1e-30
    %v3527 = vmax.f32 %v3523, 1e-30
    %v3528 = vrcp.pop %v3524
    %v3529 = vrcp.pop %v3525
    %v3530 = vrcp.pop %v3526
    %v3531 = vrcp.pop %v3527
    %v3532 = vmul.f32 %v3505, %v3528
    %v3533 = vmul.f32 %v3507, %v3529
    %v3534 = vmul.f32 %v3509, %v3530
    %v3535 = vmul.f32 %v3511, %v3531
    %3536 = vrot.lane.b32.xlu0 %v3149, 96
    %v3537 = vpop.permute.xlu0 %3536
    %3538 = vrot.lane.b32.xlu0 %v3152, 96
    %v3539 = vpop.permute.xlu0 %3538
    %v3542 = vsel %vm1677, %v3532, 0
    %v3544 = vsel %vm1681, %v3539, 0
    %3546 = vmatprep.subr.mxu0 0.0
    %3547 = vmatpush1.msra.mxu0 %v3537
    %3548 = vmatprep.subr.mxu0 0.0
    %3549 = vmatpush1.msra.mxu0 %v3544
    %3550 = vmatprep.subr.mxu0 0.0
    %3551 = vmatpush1.msra.mxu0 0.0
    %3552 = vmatprep.subr.mxu0 0.0
    %3553 = vmatpush1.msra.mxu0 0.0
    %3554 = vmatprep.subr.mxu0 0.0
    %3555 = vmatpush1.msra.mxu0 0.0
    %3556 = vmatprep.subr.mxu0 0.0
    %3557 = vmatpush1.msra.mxu0 0.0
    %3558 = vmatprep.subr.mxu0 0.0
    %3559 = vmatpush1.msra.mxu0 0.0
    %3560 = vmatprep.subr.mxu0 0.0
    %3561 = vmatpush1.msra.mxu0 0.0
    %3562 = vmatprep.subr.mxu0 0.0
    %3563 = vmatpush1.msra.mxu0 0.0
    %3564 = vmatprep.subr.mxu0 0.0
    %3565 = vmatpush1.msra.mxu0 0.0
    %3566 = vmatprep.subr.mxu0 0.0
    %3567 = vmatpush1.msra.mxu0 0.0
    %3568 = vmatprep.subr.mxu0 0.0
    %3569 = vmatpush1.msra.mxu0 0.0
    %3570 = vmatprep.subr.mxu0 0.0
    %3571 = vmatpush1.msra.mxu0 0.0
    %3572 = vmatprep.subr.mxu0 0.0
    %3573 = vmatpush1.msra.mxu0 0.0
    %3574 = vmatprep.subr.mxu0 0.0
    %3575 = vmatpush1.msra.mxu0 0.0
    %3576 = vmatprep.subr.mxu0 0.0
    %3577 = vmatpush1.msra.mxu0 0.0
    %3578 = vmatprep.subr.mxu0 0.0
    %3579 = vmatpush1.msra.mxu0 0.0
    %3580 = vmatprep.subr.mxu0 0.0
    %3581 = vmatpush1.msra.mxu0 0.0
    %3582 = vmatprep.subr.mxu0 0.0
    %3583 = vmatpush1.msra.mxu0 0.0
    %3584 = vmatprep.subr.mxu0 0.0
    %3585 = vmatpush1.msra.mxu0 0.0
    %3586 = vmatprep.subr.mxu0 0.0
    %3587 = vmatpush1.msra.mxu0 0.0
    %3588 = vmatprep.subr.mxu0 0.0
    %3589 = vmatpush1.msra.mxu0 0.0
    %3590 = vmatprep.subr.mxu0 0.0
    %3591 = vmatpush1.msra.mxu0 0.0
    %3592 = vmatprep.subr.mxu0 0.0
    %3593 = vmatpush1.msra.mxu0 0.0
    %3594 = vmatprep.subr.mxu0 0.0
    %3595 = vmatpush1.msra.mxu0 0.0
    %3596 = vmatprep.subr.mxu0 0.0
    %3597 = vmatpush1.msra.mxu0 0.0
    %3598 = vmatprep.subr.mxu0 0.0
    %3599 = vmatpush1.msra.mxu0 0.0
    %3600 = vmatprep.subr.mxu0 0.0
    %3601 = vmatpush1.msra.mxu0 0.0
    %3602 = vmatprep.subr.mxu0 0.0
    %3603 = vmatpush1.msra.mxu0 0.0
    %3604 = vmatprep.subr.mxu0 0.0
    %3605 = vmatpush1.msra.mxu0 0.0
    %3606 = vmatprep.subr.mxu0 0.0
    %3607 = vmatpush1.msra.mxu0 0.0
    %3608 = vmatprep.subr.mxu0 0.0
    %3609 = vmatpush1.msra.mxu0 0.0
    %3610 = vmatprep.mubr.f32.mxu0 0.0
    %3611 = vmatmul.mubr.f32.gmra.mrb[0].mxu0 %v3542
    %v3612 = vpop.f32.mrb[0].mxu0
    %v3613 = vadd.f32 0.0, %v3612
    %v3614 = vpop.f32.mrb[0].mxu0
    %3615 = vdwg.mxu0
    %3616 = vrot.lane.b32.xlu0 %v3165, 96
    %v3617 = vpop.permute.xlu0 %3616
    %3618 = vrot.lane.b32.xlu0 %v3167, 96
    %v3619 = vpop.permute.xlu0 %3618
    %v3622 = vsel %vm1677, %v3533, 0
    %v3624 = vsel %vm1681, %v3619, 0
    %3626 = vmatprep.subr.mxu0 0.0
    %3627 = vmatpush1.msra.mxu0 %v3617
    %3628 = vmatprep.subr.mxu0 0.0
    %3629 = vmatpush1.msra.mxu0 %v3624
    %3630 = vmatprep.subr.mxu0 0.0
    %3631 = vmatpush1.msra.mxu0 0.0
    %3632 = vmatprep.subr.mxu0 0.0
    %3633 = vmatpush1.msra.mxu0 0.0
    %3634 = vmatprep.subr.mxu0 0.0
    %3635 = vmatpush1.msra.mxu0 0.0
    %3636 = vmatprep.subr.mxu0 0.0
    %3637 = vmatpush1.msra.mxu0 0.0
    %3638 = vmatprep.subr.mxu0 0.0
    %3639 = vmatpush1.msra.mxu0 0.0
    %3640 = vmatprep.subr.mxu0 0.0
    %3641 = vmatpush1.msra.mxu0 0.0
    %3642 = vmatprep.subr.mxu0 0.0
    %3643 = vmatpush1.msra.mxu0 0.0
    %3644 = vmatprep.subr.mxu0 0.0
    %3645 = vmatpush1.msra.mxu0 0.0
    %3646 = vmatprep.subr.mxu0 0.0
    %3647 = vmatpush1.msra.mxu0 0.0
    %3648 = vmatprep.subr.mxu0 0.0
    %3649 = vmatpush1.msra.mxu0 0.0
    %3650 = vmatprep.subr.mxu0 0.0
    %3651 = vmatpush1.msra.mxu0 0.0
    %3652 = vmatprep.subr.mxu0 0.0
    %3653 = vmatpush1.msra.mxu0 0.0
    %3654 = vmatprep.subr.mxu0 0.0
    %3655 = vmatpush1.msra.mxu0 0.0
    %3656 = vmatprep.subr.mxu0 0.0
    %3657 = vmatpush1.msra.mxu0 0.0
    %3658 = vmatprep.subr.mxu0 0.0
    %3659 = vmatpush1.msra.mxu0 0.0
    %3660 = vmatprep.subr.mxu0 0.0
    %3661 = vmatpush1.msra.mxu0 0.0
    %3662 = vmatprep.subr.mxu0 0.0
    %3663 = vmatpush1.msra.mxu0 0.0
    %3664 = vmatprep.subr.mxu0 0.0
    %3665 = vmatpush1.msra.mxu0 0.0
    %3666 = vmatprep.subr.mxu0 0.0
    %3667 = vmatpush1.msra.mxu0 0.0
    %3668 = vmatprep.subr.mxu0 0.0
    %3669 = vmatpush1.msra.mxu0 0.0
    %3670 = vmatprep.subr.mxu0 0.0
    %3671 = vmatpush1.msra.mxu0 0.0
    %3672 = vmatprep.subr.mxu0 0.0
    %3673 = vmatpush1.msra.mxu0 0.0
    %3674 = vmatprep.subr.mxu0 0.0
    %3675 = vmatpush1.msra.mxu0 0.0
    %3676 = vmatprep.subr.mxu0 0.0
    %3677 = vmatpush1.msra.mxu0 0.0
    %3678 = vmatprep.subr.mxu0 0.0
    %3679 = vmatpush1.msra.mxu0 0.0
    %3680 = vmatprep.subr.mxu0 0.0
    %3681 = vmatpush1.msra.mxu0 0.0
    %3682 = vmatprep.subr.mxu0 0.0
    %3683 = vmatpush1.msra.mxu0 0.0
    %3684 = vmatprep.subr.mxu0 0.0
    %3685 = vmatpush1.msra.mxu0 0.0
    %3686 = vmatprep.subr.mxu0 0.0
    %3687 = vmatpush1.msra.mxu0 0.0
    %3688 = vmatprep.subr.mxu0 0.0
    %3689 = vmatpush1.msra.mxu0 0.0
    %3690 = vmatprep.mubr.f32.mxu0 0.0
    %3691 = vmatmul.mubr.f32.gmra.mrb[0].mxu0 %v3622
    %v3692 = vpop.f32.mrb[0].mxu0
    %v3693 = vadd.f32 0.0, %v3692
    %v3694 = vpop.f32.mrb[0].mxu0
    %3695 = vdwg.mxu0
    %3696 = vrot.lane.b32.xlu0 %v3169, 96
    %v3697 = vpop.permute.xlu0 %3696
    %3698 = vrot.lane.b32.xlu0 %v3171, 96
    %v3699 = vpop.permute.xlu0 %3698
    %v3702 = vsel %vm1677, %v3534, 0
    %v3704 = vsel %vm1681, %v3699, 0
    %3706 = vmatprep.subr.mxu0 0.0
    %3707 = vmatpush1.msra.mxu0 %v3697
    %3708 = vmatprep.subr.mxu0 0.0
    %3709 = vmatpush1.msra.mxu0 %v3704
    %3710 = vmatprep.subr.mxu0 0.0
    %3711 = vmatpush1.msra.mxu0 0.0
    %3712 = vmatprep.subr.mxu0 0.0
    %3713 = vmatpush1.msra.mxu0 0.0
    %3714 = vmatprep.subr.mxu0 0.0
    %3715 = vmatpush1.msra.mxu0 0.0
    %3716 = vmatprep.subr.mxu0 0.0
    %3717 = vmatpush1.msra.mxu0 0.0
    %3718 = vmatprep.subr.mxu0 0.0
    %3719 = vmatpush1.msra.mxu0 0.0
    %3720 = vmatprep.subr.mxu0 0.0
    %3721 = vmatpush1.msra.mxu0 0.0
    %3722 = vmatprep.subr.mxu0 0.0
    %3723 = vmatpush1.msra.mxu0 0.0
    %3724 = vmatprep.subr.mxu0 0.0
    %3725 = vmatpush1.msra.mxu0 0.0
    %3726 = vmatprep.subr.mxu0 0.0
    %3727 = vmatpush1.msra.mxu0 0.0
    %3728 = vmatprep.subr.mxu0 0.0
    %3729 = vmatpush1.msra.mxu0 0.0
    %3730 = vmatprep.subr.mxu0 0.0
    %3731 = vmatpush1.msra.mxu0 0.0
    %3732 = vmatprep.subr.mxu0 0.0
    %3733 = vmatpush1.msra.mxu0 0.0
    %3734 = vmatprep.subr.mxu0 0.0
    %3735 = vmatpush1.msra.mxu0 0.0
    %3736 = vmatprep.subr.mxu0 0.0
    %3737 = vmatpush1.msra.mxu0 0.0
    %3738 = vmatprep.subr.mxu0 0.0
    %3739 = vmatpush1.msra.mxu0 0.0
    %3740 = vmatprep.subr.mxu0 0.0
    %3741 = vmatpush1.msra.mxu0 0.0
    %3742 = vmatprep.subr.mxu0 0.0
    %3743 = vmatpush1.msra.mxu0 0.0
    %3744 = vmatprep.subr.mxu0 0.0
    %3745 = vmatpush1.msra.mxu0 0.0
    %3746 = vmatprep.subr.mxu0 0.0
    %3747 = vmatpush1.msra.mxu0 0.0
    %3748 = vmatprep.subr.mxu0 0.0
    %3749 = vmatpush1.msra.mxu0 0.0
    %3750 = vmatprep.subr.mxu0 0.0
    %3751 = vmatpush1.msra.mxu0 0.0
    %3752 = vmatprep.subr.mxu0 0.0
    %3753 = vmatpush1.msra.mxu0 0.0
    %3754 = vmatprep.subr.mxu0 0.0
    %3755 = vmatpush1.msra.mxu0 0.0
    %3756 = vmatprep.subr.mxu0 0.0
    %3757 = vmatpush1.msra.mxu0 0.0
    %3758 = vmatprep.subr.mxu0 0.0
    %3759 = vmatpush1.msra.mxu0 0.0
    %3760 = vmatprep.subr.mxu0 0.0
    %3761 = vmatpush1.msra.mxu0 0.0
    %3762 = vmatprep.subr.mxu0 0.0
    %3763 = vmatpush1.msra.mxu0 0.0
    %3764 = vmatprep.subr.mxu0 0.0
    %3765 = vmatpush1.msra.mxu0 0.0
    %3766 = vmatprep.subr.mxu0 0.0
    %3767 = vmatpush1.msra.mxu0 0.0
    %3768 = vmatprep.subr.mxu0 0.0
    %3769 = vmatpush1.msra.mxu0 0.0
    %3770 = vmatprep.mubr.f32.mxu0 0.0
    %3771 = vmatmul.mubr.f32.gmra.mrb[0].mxu0 %v3702
    %v3772 = vpop.f32.mrb[0].mxu0
    %v3773 = vadd.f32 0.0, %v3772
    %v3774 = vpop.f32.mrb[0].mxu0
    %3775 = vdwg.mxu0
    %3776 = vrot.lane.b32.xlu0 %v3173, 96
    %v3777 = vpop.permute.xlu0 %3776
    %3778 = vrot.lane.b32.xlu0 %v3175, 96
    %v3779 = vpop.permute.xlu0 %3778
    %v3782 = vsel %vm1677, %v3535, 0
    %v3784 = vsel %vm1681, %v3779, 0
    %3786 = vmatprep.subr.mxu0 0.0
    %3787 = vmatpush1.msra.mxu0 %v3777
    %3788 = vmatprep.subr.mxu0 0.0
    %3789 = vmatpush1.msra.mxu0 %v3784
    %3790 = vmatprep.subr.mxu0 0.0
    %3791 = vmatpush1.msra.mxu0 0.0
    %3792 = vmatprep.subr.mxu0 0.0
    %3793 = vmatpush1.msra.mxu0 0.0
    %3794 = vmatprep.subr.mxu0 0.0
    %3795 = vmatpush1.msra.mxu0 0.0
    %3796 = vmatprep.subr.mxu0 0.0
    %3797 = vmatpush1.msra.mxu0 0.0
    %3798 = vmatprep.subr.mxu0 0.0
    %3799 = vmatpush1.msra.mxu0 0.0
    %3800 = vmatprep.subr.mxu0 0.0
    %3801 = vmatpush1.msra.mxu0 0.0
    %3802 = vmatprep.subr.mxu0 0.0
    %3803 = vmatpush1.msra.mxu0 0.0
    %3804 = vmatprep.subr.mxu0 0.0
    %3805 = vmatpush1.msra.mxu0 0.0
    %3806 = vmatprep.subr.mxu0 0.0
    %3807 = vmatpush1.msra.mxu0 0.0
    %3808 = vmatprep.subr.mxu0 0.0
    %3809 = vmatpush1.msra.mxu0 0.0
    %3810 = vmatprep.subr.mxu0 0.0
    %3811 = vmatpush1.msra.mxu0 0.0
    %3812 = vmatprep.subr.mxu0 0.0
    %3813 = vmatpush1.msra.mxu0 0.0
    %3814 = vmatprep.subr.mxu0 0.0
    %3815 = vmatpush1.msra.mxu0 0.0
    %3816 = vmatprep.subr.mxu0 0.0
    %3817 = vmatpush1.msra.mxu0 0.0
    %3818 = vmatprep.subr.mxu0 0.0
    %3819 = vmatpush1.msra.mxu0 0.0
    %3820 = vmatprep.subr.mxu0 0.0
    %3821 = vmatpush1.msra.mxu0 0.0
    %3822 = vmatprep.subr.mxu0 0.0
    %3823 = vmatpush1.msra.mxu0 0.0
    %3824 = vmatprep.subr.mxu0 0.0
    %3825 = vmatpush1.msra.mxu0 0.0
    %3826 = vmatprep.subr.mxu0 0.0
    %3827 = vmatpush1.msra.mxu0 0.0
    %3828 = vmatprep.subr.mxu0 0.0
    %3829 = vmatpush1.msra.mxu0 0.0
    %3830 = vmatprep.subr.mxu0 0.0
    %3831 = vmatpush1.msra.mxu0 0.0
    %3832 = vmatprep.subr.mxu0 0.0
    %3833 = vmatpush1.msra.mxu0 0.0
    %3834 = vmatprep.subr.mxu0 0.0
    %3835 = vmatpush1.msra.mxu0 0.0
    %3836 = vmatprep.subr.mxu0 0.0
    %3837 = vmatpush1.msra.mxu0 0.0
    %3838 = vmatprep.subr.mxu0 0.0
    %3839 = vmatpush1.msra.mxu0 0.0
    %3840 = vmatprep.subr.mxu0 0.0
    %3841 = vmatpush1.msra.mxu0 0.0
    %3842 = vmatprep.subr.mxu0 0.0
    %3843 = vmatpush1.msra.mxu0 0.0
    %3844 = vmatprep.subr.mxu0 0.0
    %3845 = vmatpush1.msra.mxu0 0.0
    %3846 = vmatprep.subr.mxu0 0.0
    %3847 = vmatpush1.msra.mxu0 0.0
    %3848 = vmatprep.subr.mxu0 0.0
    %3849 = vmatpush1.msra.mxu0 0.0
    %3850 = vmatprep.mubr.f32.mxu0 0.0
    %3851 = vmatmul.mubr.f32.gmra.mrb[0].mxu0 %v3782
    %v3852 = vpop.f32.mrb[0].mxu0
    %v3853 = vadd.f32 0.0, %v3852
    %v3854 = vpop.f32.mrb[0].mxu0
    %3855 = vdwg.mxu0
    %3857 = vrot.lane.b32.xlu0 %v3693, 8
    %v3858 = vpop.permute.xlu0 %3857
    %3861 = vrot.lane.b32.xlu0 %v3773, 16
    %v3862 = vpop.permute.xlu0 %3861
    %3865 = vrot.lane.b32.xlu0 %v3853, 24
    %v3866 = vpop.permute.xlu0 %3865
    %v3868 = vsel %vm1304, %v3613, %v3858
    %v3869 = vsel %vm2007, %v3868, %v3862
    %v3870 = vsel %vm2009, %v3869, %v3866
    %s3871 = scalar_lea.vmem %s25, 24
    %v3872 = vld [vmem:[%s3871] sm:$0xff]
    %v3873 = vrot.slane %v3145, 4
    %3874 = vrot.lane.b32.xlu0 %v3873, 96
    %v3875 = vpop.permute.xlu0 %3874
    %s3877 = scalar_lea.vmem %s61, 24
    %3878 = vst.msk [vmem:[%s3877 - $0x4] sm:$0xf0] %vm1281, %v3872
    %3879 = vst.msk [vmem:[%s3877 + $0x4] sm:$0xf] %vm1283, %v3875
    %3881 = vrot.lane.b32.xlu0 %v3872, 120
    %v3882 = vpop.permute.xlu0 %3881
    %3883 = vrot.lane.b32.xlu0 %v3875, 120
    %v3884 = vpop.permute.xlu0 %3883
    %3885 = vrot.lane.b32.xlu0 %v3872, 112
    %v3886 = vpop.permute.xlu0 %3885
    %3887 = vrot.lane.b32.xlu0 %v3875, 112
    %v3888 = vpop.permute.xlu0 %3887
    %3889 = vrot.lane.b32.xlu0 %v3872, 104
    %v3890 = vpop.permute.xlu0 %3889
    %3891 = vrot.lane.b32.xlu0 %v3875, 104
    %v3892 = vpop.permute.xlu0 %3891
    %v3893 = vsel %vm1304, %v3873, 0
    %v3895 = vsel %vm1304, %v3872, 0
    %v3897 = vsel %vm1304, %v3875, 0
    %3899 = vmatprep.subr.mxu0 0.0
    %3900 = vmatpush1.xpose.msra.mxu0 %v3895
    %3901 = vmatprep.subr.mxu0 0.0
    %3902 = vmatpush1.xpose.msra.mxu0 %v3897
    %3903 = vmatprep.subr.mxu0 0.0
    %3904 = vmatpush1.xpose.msra.mxu0 0.0
    %3905 = vmatprep.subr.mxu0 0.0
    %3906 = vmatpush1.xpose.msra.mxu0 0.0
    %3907 = vmatprep.subr.mxu0 0.0
    %3908 = vmatpush1.xpose.msra.mxu0 0.0
    %3909 = vmatprep.subr.mxu0 0.0
    %3910 = vmatpush1.xpose.msra.mxu0 0.0
    %3911 = vmatprep.subr.mxu0 0.0
    %3912 = vmatpush1.xpose.msra.mxu0 0.0
    %3913 = vmatprep.subr.mxu0 0.0
    %3914 = vmatpush1.xpose.msra.mxu0 0.0
    %3915 = vmatprep.subr.mxu0 0.0
    %3916 = vmatpush1.xpose.msra.mxu0 0.0
    %3917 = vmatprep.subr.mxu0 0.0
    %3918 = vmatpush1.xpose.msra.mxu0 0.0
    %3919 = vmatprep.subr.mxu0 0.0
    %3920 = vmatpush1.xpose.msra.mxu0 0.0
    %3921 = vmatprep.subr.mxu0 0.0
    %3922 = vmatpush1.xpose.msra.mxu0 0.0
    %3923 = vmatprep.subr.mxu0 0.0
    %3924 = vmatpush1.xpose.msra.mxu0 0.0
    %3925 = vmatprep.subr.mxu0 0.0
    %3926 = vmatpush1.xpose.msra.mxu0 0.0
    %3927 = vmatprep.subr.mxu0 0.0
    %3928 = vmatpush1.xpose.msra.mxu0 0.0
    %3929 = vmatprep.subr.mxu0 0.0
    %3930 = vmatpush1.xpose.msra.mxu0 0.0
    %3931 = vmatprep.subr.mxu0 0.0
    %3932 = vmatpush1.xpose.msra.mxu0 0.0
    %3933 = vmatprep.subr.mxu0 0.0
    %3934 = vmatpush1.xpose.msra.mxu0 0.0
    %3935 = vmatprep.subr.mxu0 0.0
    %3936 = vmatpush1.xpose.msra.mxu0 0.0
    %3937 = vmatprep.subr.mxu0 0.0
    %3938 = vmatpush1.xpose.msra.mxu0 0.0
    %3939 = vmatprep.subr.mxu0 0.0
    %3940 = vmatpush1.xpose.msra.mxu0 0.0
    %3941 = vmatprep.subr.mxu0 0.0
    %3942 = vmatpush1.xpose.msra.mxu0 0.0
    %3943 = vmatprep.subr.mxu0 0.0
    %3944 = vmatpush1.xpose.msra.mxu0 0.0
    %3945 = vmatprep.subr.mxu0 0.0
    %3946 = vmatpush1.xpose.msra.mxu0 0.0
    %3947 = vmatprep.subr.mxu0 0.0
    %3948 = vmatpush1.xpose.msra.mxu0 0.0
    %3949 = vmatprep.subr.mxu0 0.0
    %3950 = vmatpush1.xpose.msra.mxu0 0.0
    %3951 = vmatprep.subr.mxu0 0.0
    %3952 = vmatpush1.xpose.msra.mxu0 0.0
    %3953 = vmatprep.subr.mxu0 0.0
    %3954 = vmatpush1.xpose.msra.mxu0 0.0
    %3955 = vmatprep.subr.mxu0 0.0
    %3956 = vmatpush1.xpose.msra.mxu0 0.0
    %3957 = vmatprep.subr.mxu0 0.0
    %3958 = vmatpush1.xpose.msra.mxu0 0.0
    %3959 = vmatprep.subr.mxu0 0.0
    %3960 = vmatpush1.xpose.msra.mxu0 0.0
    %3961 = vmatprep.subr.mxu0 0.0
    %3962 = vmatpush1.xpose.msra.mxu0 0.0
    %3963 = vmatprep.mubr.f32.mxu0 0.0
    %3964 = vmatmul.mubr.f32.gmra.mrb[0].mxu0 %v3893
    %v3965 = vpop.f32.mrb[0].mxu0
    %v3966 = vadd.f32 0.0, %v3965
    %v3967 = vpop.f32.mrb[0].mxu0
    %3968 = vdwg.mxu0
    %v3969 = vrot.slane %v3158, 4
    %v3970 = vsel %vm1304, %v3969, 0
    %v3972 = vsel %vm1304, %v3882, 0
    %v3974 = vsel %vm1304, %v3884, 0
    %3976 = vmatprep.subr.mxu0 0.0
    %3977 = vmatpush1.xpose.msra.mxu0 %v3972
    %3978 = vmatprep.subr.mxu0 0.0
    %3979 = vmatpush1.xpose.msra.mxu0 %v3974
    %3980 = vmatprep.subr.mxu0 0.0
    %3981 = vmatpush1.xpose.msra.mxu0 0.0
    %3982 = vmatprep.subr.mxu0 0.0
    %3983 = vmatpush1.xpose.msra.mxu0 0.0
    %3984 = vmatprep.subr.mxu0 0.0
    %3985 = vmatpush1.xpose.msra.mxu0 0.0
    %3986 = vmatprep.subr.mxu0 0.0
    %3987 = vmatpush1.xpose.msra.mxu0 0.0
    %3988 = vmatprep.subr.mxu0 0.0
    %3989 = vmatpush1.xpose.msra.mxu0 0.0
    %3990 = vmatprep.subr.mxu0 0.0
    %3991 = vmatpush1.xpose.msra.mxu0 0.0
    %3992 = vmatprep.subr.mxu0 0.0
    %3993 = vmatpush1.xpose.msra.mxu0 0.0
    %3994 = vmatprep.subr.mxu0 0.0
    %3995 = vmatpush1.xpose.msra.mxu0 0.0
    %3996 = vmatprep.subr.mxu0 0.0
    %3997 = vmatpush1.xpose.msra.mxu0 0.0
    %3998 = vmatprep.subr.mxu0 0.0
    %3999 = vmatpush1.xpose.msra.mxu0 0.0
    %4000 = vmatprep.subr.mxu0 0.0
    %4001 = vmatpush1.xpose.msra.mxu0 0.0
    %4002 = vmatprep.subr.mxu0 0.0
    %4003 = vmatpush1.xpose.msra.mxu0 0.0
    %4004 = vmatprep.subr.mxu0 0.0
    %4005 = vmatpush1.xpose.msra.mxu0 0.0
    %4006 = vmatprep.subr.mxu0 0.0
    %4007 = vmatpush1.xpose.msra.mxu0 0.0
    %4008 = vmatprep.subr.mxu0 0.0
    %4009 = vmatpush1.xpose.msra.mxu0 0.0
    %4010 = vmatprep.subr.mxu0 0.0
    %4011 = vmatpush1.xpose.msra.mxu0 0.0
    %4012 = vmatprep.subr.mxu0 0.0
    %4013 = vmatpush1.xpose.msra.mxu0 0.0
    %4014 = vmatprep.subr.mxu0 0.0
    %4015 = vmatpush1.xpose.msra.mxu0 0.0
    %4016 = vmatprep.subr.mxu0 0.0
    %4017 = vmatpush1.xpose.msra.mxu0 0.0
    %4018 = vmatprep.subr.mxu0 0.0
    %4019 = vmatpush1.xpose.msra.mxu0 0.0
    %4020 = vmatprep.subr.mxu0 0.0
    %4021 = vmatpush1.xpose.msra.mxu0 0.0
    %4022 = vmatprep.subr.mxu0 0.0
    %4023 = vmatpush1.xpose.msra.mxu0 0.0
    %4024 = vmatprep.subr.mxu0 0.0
    %4025 = vmatpush1.xpose.msra.mxu0 0.0
    %4026 = vmatprep.subr.mxu0 0.0
    %4027 = vmatpush1.xpose.msra.mxu0 0.0
    %4028 = vmatprep.subr.mxu0 0.0
    %4029 = vmatpush1.xpose.msra.mxu0 0.0
    %4030 = vmatprep.subr.mxu0 0.0
    %4031 = vmatpush1.xpose.msra.mxu0 0.0
    %4032 = vmatprep.subr.mxu0 0.0
    %4033 = vmatpush1.xpose.msra.mxu0 0.0
    %4034 = vmatprep.subr.mxu0 0.0
    %4035 = vmatpush1.xpose.msra.mxu0 0.0
    %4036 = vmatprep.subr.mxu0 0.0
    %4037 = vmatpush1.xpose.msra.mxu0 0.0
    %4038 = vmatprep.subr.mxu0 0.0
    %4039 = vmatpush1.xpose.msra.mxu0 0.0
    %4040 = vmatprep.mubr.f32.mxu0 0.0
    %4041 = vmatmul.mubr.f32.gmra.mrb[0].mxu0 %v3970
    %v4042 = vpop.f32.mrb[0].mxu0
    %v4043 = vadd.f32 0.0, %v4042
    %v4044 = vpop.f32.mrb[0].mxu0
    %4045 = vdwg.mxu0
    %v4046 = vrot.slane %v3160, 4
    %v4047 = vsel %vm1304, %v4046, 0
    %v4049 = vsel %vm1304, %v3886, 0
    %v4051 = vsel %vm1304, %v3888, 0
    %4053 = vmatprep.subr.mxu0 0.0
    %4054 = vmatpush1.xpose.msra.mxu0 %v4049
    %4055 = vmatprep.subr.mxu0 0.0
    %4056 = vmatpush1.xpose.msra.mxu0 %v4051
    %4057 = vmatprep.subr.mxu0 0.0
    %4058 = vmatpush1.xpose.msra.mxu0 0.0
    %4059 = vmatprep.subr.mxu0 0.0
    %4060 = vmatpush1.xpose.msra.mxu0 0.0
    %4061 = vmatprep.subr.mxu0 0.0
    %4062 = vmatpush1.xpose.msra.mxu0 0.0
    %4063 = vmatprep.subr.mxu0 0.0
    %4064 = vmatpush1.xpose.msra.mxu0 0.0
    %4065 = vmatprep.subr.mxu0 0.0
    %4066 = vmatpush1.xpose.msra.mxu0 0.0
    %4067 = vmatprep.subr.mxu0 0.0
    %4068 = vmatpush1.xpose.msra.mxu0 0.0
    %4069 = vmatprep.subr.mxu0 0.0
    %4070 = vmatpush1.xpose.msra.mxu0 0.0
    %4071 = vmatprep.subr.mxu0 0.0
    %4072 = vmatpush1.xpose.msra.mxu0 0.0
    %4073 = vmatprep.subr.mxu0 0.0
    %4074 = vmatpush1.xpose.msra.mxu0 0.0
    %4075 = vmatprep.subr.mxu0 0.0
    %4076 = vmatpush1.xpose.msra.mxu0 0.0
    %4077 = vmatprep.subr.mxu0 0.0
    %4078 = vmatpush1.xpose.msra.mxu0 0.0
    %4079 = vmatprep.subr.mxu0 0.0
    %4080 = vmatpush1.xpose.msra.mxu0 0.0
    %4081 = vmatprep.subr.mxu0 0.0
    %4082 = vmatpush1.xpose.msra.mxu0 0.0
    %4083 = vmatprep.subr.mxu0 0.0
    %4084 = vmatpush1.xpose.msra.mxu0 0.0
    %4085 = vmatprep.subr.mxu0 0.0
    %4086 = vmatpush1.xpose.msra.mxu0 0.0
    %4087 = vmatprep.subr.mxu0 0.0
    %4088 = vmatpush1.xpose.msra.mxu0 0.0
    %4089 = vmatprep.subr.mxu0 0.0
    %4090 = vmatpush1.xpose.msra.mxu0 0.0
    %4091 = vmatprep.subr.mxu0 0.0
    %4092 = vmatpush1.xpose.msra.mxu0 0.0
    %4093 = vmatprep.subr.mxu0 0.0
    %4094 = vmatpush1.xpose.msra.mxu0 0.0
    %4095 = vmatprep.subr.mxu0 0.0
    %4096 = vmatpush1.xpose.msra.mxu0 0.0
    %4097 = vmatprep.subr.mxu0 0.0
    %4098 = vmatpush1.xpose.msra.mxu0 0.0
    %4099 = vmatprep.subr.mxu0 0.0
    %4100 = vmatpush1.xpose.msra.mxu0 0.0
    %4101 = vmatprep.subr.mxu0 0.0
    %4102 = vmatpush1.xpose.msra.mxu0 0.0
    %4103 = vmatprep.subr.mxu0 0.0
    %4104 = vmatpush1.xpose.msra.mxu0 0.0
    %4105 = vmatprep.subr.mxu0 0.0
    %4106 = vmatpush1.xpose.msra.mxu0 0.0
    %4107 = vmatprep.subr.mxu0 0.0
    %4108 = vmatpush1.xpose.msra.mxu0 0.0
    %4109 = vmatprep.subr.mxu0 0.0
    %4110 = vmatpush1.xpose.msra.mxu0 0.0
    %4111 = vmatprep.subr.mxu0 0.0
    %4112 = vmatpush1.xpose.msra.mxu0 0.0
    %4113 = vmatprep.subr.mxu0 0.0
    %4114 = vmatpush1.xpose.msra.mxu0 0.0
    %4115 = vmatprep.subr.mxu0 0.0
    %4116 = vmatpush1.xpose.msra.mxu0 0.0
    %4117 = vmatprep.mubr.f32.mxu0 0.0
    %4118 = vmatmul.mubr.f32.gmra.mrb[0].mxu0 %v4047
    %v4119 = vpop.f32.mrb[0].mxu0
    %v4120 = vadd.f32 0.0, %v4119
    %v4121 = vpop.f32.mrb[0].mxu0
    %4122 = vdwg.mxu0
    %v4123 = vrot.slane %v3162, 4
    %v4124 = vsel %vm1304, %v4123, 0
    %v4126 = vsel %vm1304, %v3890, 0
    %v4128 = vsel %vm1304, %v3892, 0
    %4130 = vmatprep.subr.mxu0 0.0
    %4131 = vmatpush1.xpose.msra.mxu0 %v4126
    %4132 = vmatprep.subr.mxu0 0.0
    %4133 = vmatpush1.xpose.msra.mxu0 %v4128
    %4134 = vmatprep.subr.mxu0 0.0
    %4135 = vmatpush1.xpose.msra.mxu0 0.0
    %4136 = vmatprep.subr.mxu0 0.0
    %4137 = vmatpush1.xpose.msra.mxu0 0.0
    %4138 = vmatprep.subr.mxu0 0.0
    %4139 = vmatpush1.xpose.msra.mxu0 0.0
    %4140 = vmatprep.subr.mxu0 0.0
    %4141 = vmatpush1.xpose.msra.mxu0 0.0
    %4142 = vmatprep.subr.mxu0 0.0
    %4143 = vmatpush1.xpose.msra.mxu0 0.0
    %4144 = vmatprep.subr.mxu0 0.0
    %4145 = vmatpush1.xpose.msra.mxu0 0.0
    %4146 = vmatprep.subr.mxu0 0.0
    %4147 = vmatpush1.xpose.msra.mxu0 0.0
    %4148 = vmatprep.subr.mxu0 0.0
    %4149 = vmatpush1.xpose.msra.mxu0 0.0
    %4150 = vmatprep.subr.mxu0 0.0
    %4151 = vmatpush1.xpose.msra.mxu0 0.0
    %4152 = vmatprep.subr.mxu0 0.0
    %4153 = vmatpush1.xpose.msra.mxu0 0.0
    %4154 = vmatprep.subr.mxu0 0.0
    %4155 = vmatpush1.xpose.msra.mxu0 0.0
    %4156 = vmatprep.subr.mxu0 0.0
    %4157 = vmatpush1.xpose.msra.mxu0 0.0
    %4158 = vmatprep.subr.mxu0 0.0
    %4159 = vmatpush1.xpose.msra.mxu0 0.0
    %4160 = vmatprep.subr.mxu0 0.0
    %4161 = vmatpush1.xpose.msra.mxu0 0.0
    %4162 = vmatprep.subr.mxu0 0.0
    %4163 = vmatpush1.xpose.msra.mxu0 0.0
    %4164 = vmatprep.subr.mxu0 0.0
    %4165 = vmatpush1.xpose.msra.mxu0 0.0
    %4166 = vmatprep.subr.mxu0 0.0
    %4167 = vmatpush1.xpose.msra.mxu0 0.0
    %4168 = vmatprep.subr.mxu0 0.0
    %4169 = vmatpush1.xpose.msra.mxu0 0.0
    %4170 = vmatprep.subr.mxu0 0.0
    %4171 = vmatpush1.xpose.msra.mxu0 0.0
    %4172 = vmatprep.subr.mxu0 0.0
    %4173 = vmatpush1.xpose.msra.mxu0 0.0
    %4174 = vmatprep.subr.mxu0 0.0
    %4175 = vmatpush1.xpose.msra.mxu0 0.0
    %4176 = vmatprep.subr.mxu0 0.0
    %4177 = vmatpush1.xpose.msra.mxu0 0.0
    %4178 = vmatprep.subr.mxu0 0.0
    %4179 = vmatpush1.xpose.msra.mxu0 0.0
    %4180 = vmatprep.subr.mxu0 0.0
    %4181 = vmatpush1.xpose.msra.mxu0 0.0
    %4182 = vmatprep.subr.mxu0 0.0
    %4183 = vmatpush1.xpose.msra.mxu0 0.0
    %4184 = vmatprep.subr.mxu0 0.0
    %4185 = vmatpush1.xpose.msra.mxu0 0.0
    %4186 = vmatprep.subr.mxu0 0.0
    %4187 = vmatpush1.xpose.msra.mxu0 0.0
    %4188 = vmatprep.subr.mxu0 0.0
    %4189 = vmatpush1.xpose.msra.mxu0 0.0
    %4190 = vmatprep.subr.mxu0 0.0
    %4191 = vmatpush1.xpose.msra.mxu0 0.0
    %4192 = vmatprep.subr.mxu0 0.0
    %4193 = vmatpush1.xpose.msra.mxu0 0.0
    %4194 = vmatprep.mubr.f32.mxu0 0.0
    %4195 = vmatmul.mubr.f32.gmra.mrb[0].mxu0 %v4124
    %v4196 = vpop.f32.mrb[0].mxu0
    %v4197 = vadd.f32 0.0, %v4196
    %v4198 = vpop.f32.mrb[0].mxu0
    %4199 = vdwg.mxu0
    %v4200 = vmul.f32 %v3966, 0.35355338
    %v4201 = vmul.f32 %v4043, 0.35355338
    %v4202 = vmul.f32 %v4120, 0.35355338
    %v4203 = vmul.f32 %v4197, 0.35355338
    %v4204 = vsel %vm2349, %v4200, -1e+30
    %v4205 = vsel %vm2349, %v4201, -1e+30
    %v4206 = vsel %vm2349, %v4202, -1e+30
    %v4207 = vsel %vm2349, %v4203, -1e+30
    %v4208 = vsel %vm1623, %v4204, -inf
    %4209 = vmax.xlane.f32.xlu0 %v4208
    %v4210 = vpop.xlane.xlu0 %4209
    %v4211 = vsel %vm1623, %v4205, -inf
    %4212 = vmax.xlane.f32.xlu0 %v4211
    %v4213 = vpop.xlane.xlu0 %4212
    %v4214 = vsel %vm1623, %v4206, -inf
    %4215 = vmax.xlane.f32.xlu0 %v4214
    %v4216 = vpop.xlane.xlu0 %4215
    %v4217 = vsel %vm1623, %v4207, -inf
    %4218 = vmax.xlane.f32.xlu0 %v4217
    %v4219 = vpop.xlane.xlu0 %4218
    %v4220 = vsub.f32 %v4204, %v4210
    %v4221 = vsub.f32 %v4205, %v4213
    %v4222 = vsub.f32 %v4206, %v4216
    %v4223 = vsub.f32 %v4207, %v4219
    %v4224 = vmul.f32 %v4220, 1.442695
    %v4225 = vpow.pop %v4224
    %v4226 = vmul.f32 %v4221, 1.442695
    %v4227 = vpow.pop %v4226
    %v4228 = vmul.f32 %v4222, 1.442695
    %v4229 = vpow.pop %v4228
    %v4230 = vmul.f32 %v4223, 1.442695
    %v4231 = vpow.pop %v4230
    %v4232 = vsel %vm1623, %v4225, 0.0
    %4233 = vadd.xlane.f32.xlu0 %v4232
    %v4234 = vpop.xlane.xlu0 %4233
    %v4235 = vsel %vm1623, %v4227, 0.0
    %4236 = vadd.xlane.f32.xlu0 %v4235
    %v4237 = vpop.xlane.xlu0 %4236
    %v4238 = vsel %vm1623, %v4229, 0.0
    %4239 = vadd.xlane.f32.xlu0 %v4238
    %v4240 = vpop.xlane.xlu0 %4239
    %v4241 = vsel %vm1623, %v4231, 0.0
    %4242 = vadd.xlane.f32.xlu0 %v4241
    %v4243 = vpop.xlane.xlu0 %4242
    %v4244 = vmax.f32 %v4234, 1e-30
    %v4245 = vmax.f32 %v4237, 1e-30
    %v4246 = vmax.f32 %v4240, 1e-30
    %v4247 = vmax.f32 %v4243, 1e-30
    %v4248 = vrcp.pop %v4244
    %v4249 = vrcp.pop %v4245
    %v4250 = vrcp.pop %v4246
    %v4251 = vrcp.pop %v4247
    %v4252 = vmul.f32 %v4225, %v4248
    %v4253 = vmul.f32 %v4227, %v4249
    %v4254 = vmul.f32 %v4229, %v4250
    %v4255 = vmul.f32 %v4231, %v4251
    %4256 = vrot.lane.b32.xlu0 %v3872, 96
    %v4257 = vpop.permute.xlu0 %4256
    %4258 = vrot.lane.b32.xlu0 %v3875, 96
    %v4259 = vpop.permute.xlu0 %4258
    %v4262 = vsel %vm1677, %v4252, 0
    %v4264 = vsel %vm1681, %v4259, 0
    %4266 = vmatprep.subr.mxu0 0.0
    %4267 = vmatpush1.msra.mxu0 %v4257
    %4268 = vmatprep.subr.mxu0 0.0
    %4269 = vmatpush1.msra.mxu0 %v4264
    %4270 = vmatprep.subr.mxu0 0.0
    %4271 = vmatpush1.msra.mxu0 0.0
    %4272 = vmatprep.subr.mxu0 0.0
    %4273 = vmatpush1.msra.mxu0 0.0
    %4274 = vmatprep.subr.mxu0 0.0
    %4275 = vmatpush1.msra.mxu0 0.0
    %4276 = vmatprep.subr.mxu0 0.0
    %4277 = vmatpush1.msra.mxu0 0.0
    %4278 = vmatprep.subr.mxu0 0.0
    %4279 = vmatpush1.msra.mxu0 0.0
    %4280 = vmatprep.subr.mxu0 0.0
    %4281 = vmatpush1.msra.mxu0 0.0
    %4282 = vmatprep.subr.mxu0 0.0
    %4283 = vmatpush1.msra.mxu0 0.0
    %4284 = vmatprep.subr.mxu0 0.0
    %4285 = vmatpush1.msra.mxu0 0.0
    %4286 = vmatprep.subr.mxu0 0.0
    %4287 = vmatpush1.msra.mxu0 0.0
    %4288 = vmatprep.subr.mxu0 0.0
    %4289 = vmatpush1.msra.mxu0 0.0
    %4290 = vmatprep.subr.mxu0 0.0
    %4291 = vmatpush1.msra.mxu0 0.0
    %4292 = vmatprep.subr.mxu0 0.0
    %4293 = vmatpush1.msra.mxu0 0.0
    %4294 = vmatprep.subr.mxu0 0.0
    %4295 = vmatpush1.msra.mxu0 0.0
    %4296 = vmatprep.subr.mxu0 0.0
    %4297 = vmatpush1.msra.mxu0 0.0
    %4298 = vmatprep.subr.mxu0 0.0
    %4299 = vmatpush1.msra.mxu0 0.0
    %4300 = vmatprep.subr.mxu0 0.0
    %4301 = vmatpush1.msra.mxu0 0.0
    %4302 = vmatprep.subr.mxu0 0.0
    %4303 = vmatpush1.msra.mxu0 0.0
    %4304 = vmatprep.subr.mxu0 0.0
    %4305 = vmatpush1.msra.mxu0 0.0
    %4306 = vmatprep.subr.mxu0 0.0
    %4307 = vmatpush1.msra.mxu0 0.0
    %4308 = vmatprep.subr.mxu0 0.0
    %4309 = vmatpush1.msra.mxu0 0.0
    %4310 = vmatprep.subr.mxu0 0.0
    %4311 = vmatpush1.msra.mxu0 0.0
    %4312 = vmatprep.subr.mxu0 0.0
    %4313 = vmatpush1.msra.mxu0 0.0
    %4314 = vmatprep.subr.mxu0 0.0
    %4315 = vmatpush1.msra.mxu0 0.0
    %4316 = vmatprep.subr.mxu0 0.0
    %4317 = vmatpush1.msra.mxu0 0.0
    %4318 = vmatprep.subr.mxu0 0.0
    %4319 = vmatpush1.msra.mxu0 0.0
    %4320 = vmatprep.subr.mxu0 0.0
    %4321 = vmatpush1.msra.mxu0 0.0
    %4322 = vmatprep.subr.mxu0 0.0
    %4323 = vmatpush1.msra.mxu0 0.0
    %4324 = vmatprep.subr.mxu0 0.0
    %4325 = vmatpush1.msra.mxu0 0.0
    %4326 = vmatprep.subr.mxu0 0.0
    %4327 = vmatpush1.msra.mxu0 0.0
    %4328 = vmatprep.subr.mxu0 0.0
    %4329 = vmatpush1.msra.mxu0 0.0
    %4330 = vmatprep.mubr.f32.mxu0 0.0
    %4331 = vmatmul.mubr.f32.gmra.mrb[0].mxu0 %v4262
    %v4332 = vpop.f32.mrb[0].mxu0
    %v4333 = vadd.f32 0.0, %v4332
    %v4334 = vpop.f32.mrb[0].mxu0
    %4335 = vdwg.mxu0
    %4336 = vrot.lane.b32.xlu0 %v3882, 96
    %v4337 = vpop.permute.xlu0 %4336
    %4338 = vrot.lane.b32.xlu0 %v3884, 96
    %v4339 = vpop.permute.xlu0 %4338
    %v4342 = vsel %vm1677, %v4253, 0
    %v4344 = vsel %vm1681, %v4339, 0
    %4346 = vmatprep.subr.mxu0 0.0
    %4347 = vmatpush1.msra.mxu0 %v4337
    %4348 = vmatprep.subr.mxu0 0.0
    %4349 = vmatpush1.msra.mxu0 %v4344
    %4350 = vmatprep.subr.mxu0 0.0
    %4351 = vmatpush1.msra.mxu0 0.0
    %4352 = vmatprep.subr.mxu0 0.0
    %4353 = vmatpush1.msra.mxu0 0.0
    %4354 = vmatprep.subr.mxu0 0.0
    %4355 = vmatpush1.msra.mxu0 0.0
    %4356 = vmatprep.subr.mxu0 0.0
    %4357 = vmatpush1.msra.mxu0 0.0
    %4358 = vmatprep.subr.mxu0 0.0
    %4359 = vmatpush1.msra.mxu0 0.0
    %4360 = vmatprep.subr.mxu0 0.0
    %4361 = vmatpush1.msra.mxu0 0.0
    %4362 = vmatprep.subr.mxu0 0.0
    %4363 = vmatpush1.msra.mxu0 0.0
    %4364 = vmatprep.subr.mxu0 0.0
    %4365 = vmatpush1.msra.mxu0 0.0
    %4366 = vmatprep.subr.mxu0 0.0
    %4367 = vmatpush1.msra.mxu0 0.0
    %4368 = vmatprep.subr.mxu0 0.0
    %4369 = vmatpush1.msra.mxu0 0.0
    %4370 = vmatprep.subr.mxu0 0.0
    %4371 = vmatpush1.msra.mxu0 0.0
    %4372 = vmatprep.subr.mxu0 0.0
    %4373 = vmatpush1.msra.mxu0 0.0
    %4374 = vmatprep.subr.mxu0 0.0
    %4375 = vmatpush1.msra.mxu0 0.0
    %4376 = vmatprep.subr.mxu0 0.0
    %4377 = vmatpush1.msra.mxu0 0.0
    %4378 = vmatprep.subr.mxu0 0.0
    %4379 = vmatpush1.msra.mxu0 0.0
    %4380 = vmatprep.subr.mxu0 0.0
    %4381 = vmatpush1.msra.mxu0 0.0
    %4382 = vmatprep.subr.mxu0 0.0
    %4383 = vmatpush1.msra.mxu0 0.0
    %4384 = vmatprep.subr.mxu0 0.0
    %4385 = vmatpush1.msra.mxu0 0.0
    %4386 = vmatprep.subr.mxu0 0.0
    %4387 = vmatpush1.msra.mxu0 0.0
    %4388 = vmatprep.subr.mxu0 0.0
    %4389 = vmatpush1.msra.mxu0 0.0
    %4390 = vmatprep.subr.mxu0 0.0
    %4391 = vmatpush1.msra.mxu0 0.0
    %4392 = vmatprep.subr.mxu0 0.0
    %4393 = vmatpush1.msra.mxu0 0.0
    %4394 = vmatprep.subr.mxu0 0.0
    %4395 = vmatpush1.msra.mxu0 0.0
    %4396 = vmatprep.subr.mxu0 0.0
    %4397 = vmatpush1.msra.mxu0 0.0
    %4398 = vmatprep.subr.mxu0 0.0
    %4399 = vmatpush1.msra.mxu0 0.0
    %4400 = vmatprep.subr.mxu0 0.0
    %4401 = vmatpush1.msra.mxu0 0.0
    %4402 = vmatprep.subr.mxu0 0.0
    %4403 = vmatpush1.msra.mxu0 0.0
    %4404 = vmatprep.subr.mxu0 0.0
    %4405 = vmatpush1.msra.mxu0 0.0
    %4406 = vmatprep.subr.mxu0 0.0
    %4407 = vmatpush1.msra.mxu0 0.0
    %4408 = vmatprep.subr.mxu0 0.0
    %4409 = vmatpush1.msra.mxu0 0.0
    %4410 = vmatprep.mubr.f32.mxu0 0.0
    %4411 = vmatmul.mubr.f32.gmra.mrb[0].mxu0 %v4342
    %v4412 = vpop.f32.mrb[0].mxu0
    %v4413 = vadd.f32 0.0, %v4412
    %v4414 = vpop.f32.mrb[0].mxu0
    %4415 = vdwg.mxu0
    %4416 = vrot.lane.b32.xlu0 %v3886, 96
    %v4417 = vpop.permute.xlu0 %4416
    %4418 = vrot.lane.b32.xlu0 %v3888, 96
    %v4419 = vpop.permute.xlu0 %4418
    %v4422 = vsel %vm1677, %v4254, 0
    %v4424 = vsel %vm1681, %v4419, 0
    %4426 = vmatprep.subr.mxu0 0.0
    %4427 = vmatpush1.msra.mxu0 %v4417
    %4428 = vmatprep.subr.mxu0 0.0
    %4429 = vmatpush1.msra.mxu0 %v4424
    %4430 = vmatprep.subr.mxu0 0.0
    %4431 = vmatpush1.msra.mxu0 0.0
    %4432 = vmatprep.subr.mxu0 0.0
    %4433 = vmatpush1.msra.mxu0 0.0
    %4434 = vmatprep.subr.mxu0 0.0
    %4435 = vmatpush1.msra.mxu0 0.0
    %4436 = vmatprep.subr.mxu0 0.0
    %4437 = vmatpush1.msra.mxu0 0.0
    %4438 = vmatprep.subr.mxu0 0.0
    %4439 = vmatpush1.msra.mxu0 0.0
    %4440 = vmatprep.subr.mxu0 0.0
    %4441 = vmatpush1.msra.mxu0 0.0
    %4442 = vmatprep.subr.mxu0 0.0
    %4443 = vmatpush1.msra.mxu0 0.0
    %4444 = vmatprep.subr.mxu0 0.0
    %4445 = vmatpush1.msra.mxu0 0.0
    %4446 = vmatprep.subr.mxu0 0.0
    %4447 = vmatpush1.msra.mxu0 0.0
    %4448 = vmatprep.subr.mxu0 0.0
    %4449 = vmatpush1.msra.mxu0 0.0
    %4450 = vmatprep.subr.mxu0 0.0
    %4451 = vmatpush1.msra.mxu0 0.0
    %4452 = vmatprep.subr.mxu0 0.0
    %4453 = vmatpush1.msra.mxu0 0.0
    %4454 = vmatprep.subr.mxu0 0.0
    %4455 = vmatpush1.msra.mxu0 0.0
    %4456 = vmatprep.subr.mxu0 0.0
    %4457 = vmatpush1.msra.mxu0 0.0
    %4458 = vmatprep.subr.mxu0 0.0
    %4459 = vmatpush1.msra.mxu0 0.0
    %4460 = vmatprep.subr.mxu0 0.0
    %4461 = vmatpush1.msra.mxu0 0.0
    %4462 = vmatprep.subr.mxu0 0.0
    %4463 = vmatpush1.msra.mxu0 0.0
    %4464 = vmatprep.subr.mxu0 0.0
    %4465 = vmatpush1.msra.mxu0 0.0
    %4466 = vmatprep.subr.mxu0 0.0
    %4467 = vmatpush1.msra.mxu0 0.0
    %4468 = vmatprep.subr.mxu0 0.0
    %4469 = vmatpush1.msra.mxu0 0.0
    %4470 = vmatprep.subr.mxu0 0.0
    %4471 = vmatpush1.msra.mxu0 0.0
    %4472 = vmatprep.subr.mxu0 0.0
    %4473 = vmatpush1.msra.mxu0 0.0
    %4474 = vmatprep.subr.mxu0 0.0
    %4475 = vmatpush1.msra.mxu0 0.0
    %4476 = vmatprep.subr.mxu0 0.0
    %4477 = vmatpush1.msra.mxu0 0.0
    %4478 = vmatprep.subr.mxu0 0.0
    %4479 = vmatpush1.msra.mxu0 0.0
    %4480 = vmatprep.subr.mxu0 0.0
    %4481 = vmatpush1.msra.mxu0 0.0
    %4482 = vmatprep.subr.mxu0 0.0
    %4483 = vmatpush1.msra.mxu0 0.0
    %4484 = vmatprep.subr.mxu0 0.0
    %4485 = vmatpush1.msra.mxu0 0.0
    %4486 = vmatprep.subr.mxu0 0.0
    %4487 = vmatpush1.msra.mxu0 0.0
    %4488 = vmatprep.subr.mxu0 0.0
    %4489 = vmatpush1.msra.mxu0 0.0
    %4490 = vmatprep.mubr.f32.mxu0 0.0
    %4491 = vmatmul.mubr.f32.gmra.mrb[0].mxu0 %v4422
    %v4492 = vpop.f32.mrb[0].mxu0
    %v4493 = vadd.f32 0.0, %v4492
    %v4494 = vpop.f32.mrb[0].mxu0
    %4495 = vdwg.mxu0
    %4496 = vrot.lane.b32.xlu0 %v3890, 96
    %v4497 = vpop.permute.xlu0 %4496
    %4498 = vrot.lane.b32.xlu0 %v3892, 96
    %v4499 = vpop.permute.xlu0 %4498
    %v4502 = vsel %vm1677, %v4255, 0
    %v4504 = vsel %vm1681, %v4499, 0
    %4506 = vmatprep.subr.mxu0 0.0
    %4507 = vmatpush1.msra.mxu0 %v4497
    %4508 = vmatprep.subr.mxu0 0.0
    %4509 = vmatpush1.msra.mxu0 %v4504
    %4510 = vmatprep.subr.mxu0 0.0
    %4511 = vmatpush1.msra.mxu0 0.0
    %4512 = vmatprep.subr.mxu0 0.0
    %4513 = vmatpush1.msra.mxu0 0.0
    %4514 = vmatprep.subr.mxu0 0.0
    %4515 = vmatpush1.msra.mxu0 0.0
    %4516 = vmatprep.subr.mxu0 0.0
    %4517 = vmatpush1.msra.mxu0 0.0
    %4518 = vmatprep.subr.mxu0 0.0
    %4519 = vmatpush1.msra.mxu0 0.0
    %4520 = vmatprep.subr.mxu0 0.0
    %4521 = vmatpush1.msra.mxu0 0.0
    %4522 = vmatprep.subr.mxu0 0.0
    %4523 = vmatpush1.msra.mxu0 0.0
    %4524 = vmatprep.subr.mxu0 0.0
    %4525 = vmatpush1.msra.mxu0 0.0
    %4526 = vmatprep.subr.mxu0 0.0
    %4527 = vmatpush1.msra.mxu0 0.0
    %4528 = vmatprep.subr.mxu0 0.0
    %4529 = vmatpush1.msra.mxu0 0.0
    %4530 = vmatprep.subr.mxu0 0.0
    %4531 = vmatpush1.msra.mxu0 0.0
    %4532 = vmatprep.subr.mxu0 0.0
    %4533 = vmatpush1.msra.mxu0 0.0
    %4534 = vmatprep.subr.mxu0 0.0
    %4535 = vmatpush1.msra.mxu0 0.0
    %4536 = vmatprep.subr.mxu0 0.0
    %4537 = vmatpush1.msra.mxu0 0.0
    %4538 = vmatprep.subr.mxu0 0.0
    %4539 = vmatpush1.msra.mxu0 0.0
    %4540 = vmatprep.subr.mxu0 0.0
    %4541 = vmatpush1.msra.mxu0 0.0
    %4542 = vmatprep.subr.mxu0 0.0
    %4543 = vmatpush1.msra.mxu0 0.0
    %4544 = vmatprep.subr.mxu0 0.0
    %4545 = vmatpush1.msra.mxu0 0.0
    %4546 = vmatprep.subr.mxu0 0.0
    %4547 = vmatpush1.msra.mxu0 0.0
    %4548 = vmatprep.subr.mxu0 0.0
    %4549 = vmatpush1.msra.mxu0 0.0
    %4550 = vmatprep.subr.mxu0 0.0
    %4551 = vmatpush1.msra.mxu0 0.0
    %4552 = vmatprep.subr.mxu0 0.0
    %4553 = vmatpush1.msra.mxu0 0.0
    %4554 = vmatprep.subr.mxu0 0.0
    %4555 = vmatpush1.msra.mxu0 0.0
    %4556 = vmatprep.subr.mxu0 0.0
    %4557 = vmatpush1.msra.mxu0 0.0
    %4558 = vmatprep.subr.mxu0 0.0
    %4559 = vmatpush1.msra.mxu0 0.0
    %4560 = vmatprep.subr.mxu0 0.0
    %4561 = vmatpush1.msra.mxu0 0.0
    %4562 = vmatprep.subr.mxu0 0.0
    %4563 = vmatpush1.msra.mxu0 0.0
    %4564 = vmatprep.subr.mxu0 0.0
    %4565 = vmatpush1.msra.mxu0 0.0
    %4566 = vmatprep.subr.mxu0 0.0
    %4567 = vmatpush1.msra.mxu0 0.0
    %4568 = vmatprep.subr.mxu0 0.0
    %4569 = vmatpush1.msra.mxu0 0.0
    %4570 = vmatprep.mubr.f32.mxu0 0.0
    %4571 = vmatmul.mubr.f32.gmra.mrb[0].mxu0 %v4502
    %v4572 = vpop.f32.mrb[0].mxu0
    %v4573 = vadd.f32 0.0, %v4572
    %v4574 = vpop.f32.mrb[0].mxu0
    %4575 = vdwg.mxu0
    %4577 = vrot.lane.b32.xlu0 %v4413, 8
    %v4578 = vpop.permute.xlu0 %4577
    %4581 = vrot.lane.b32.xlu0 %v4493, 16
    %v4582 = vpop.permute.xlu0 %4581
    %4585 = vrot.lane.b32.xlu0 %v4573, 24
    %v4586 = vpop.permute.xlu0 %4585
    %v4588 = vsel %vm1304, %v4333, %v4578
    %v4589 = vsel %vm2007, %v4588, %v4582
    %v4590 = vsel %vm2009, %v4589, %v4586
    %v4592 = vrot.slane %v4590, 4
    %v4594 = vsel %vm1681, %v3870, %v4592
    %s4595 = scalar_lea.vmem %s35, 32
    %v4596 = vld [vmem:[%s4595] sm:$0xff]
    %v4597 = vld [vmem:[%s4595 + $0x8] sm:$0xff]
    %v4598 = vld [vmem:[%s4595 + $0x10] sm:$0xff]
    %v4599 = vld [vmem:[%s4595 + $0x18] sm:$0xff]
    %v4601 = vsel %vm816, %v4594, 0
    %4603 = vmatprep.subr.mxu0 0.0
    %4604 = vmatpush1.msra.mxu0 %v4596
    %4605 = vmatprep.subr.mxu0 0.0
    %4606 = vmatpush1.msra.mxu0 %v4597
    %4607 = vmatprep.subr.mxu0 0.0
    %4608 = vmatpush1.msra.mxu0 %v4598
    %4609 = vmatprep.subr.mxu0 0.0
    %4610 = vmatpush1.msra.mxu0 %v4599
    %4611 = vmatprep.subr.mxu0 0.0
    %4612 = vmatpush1.msra.mxu0 0.0
    %4613 = vmatprep.subr.mxu0 0.0
    %4614 = vmatpush1.msra.mxu0 0.0
    %4615 = vmatprep.subr.mxu0 0.0
    %4616 = vmatpush1.msra.mxu0 0.0
    %4617 = vmatprep.subr.mxu0 0.0
    %4618 = vmatpush1.msra.mxu0 0.0
    %4619 = vmatprep.subr.mxu0 0.0
    %4620 = vmatpush1.msra.mxu0 0.0
    %4621 = vmatprep.subr.mxu0 0.0
    %4622 = vmatpush1.msra.mxu0 0.0
    %4623 = vmatprep.subr.mxu0 0.0
    %4624 = vmatpush1.msra.mxu0 0.0
    %4625 = vmatprep.subr.mxu0 0.0
    %4626 = vmatpush1.msra.mxu0 0.0
    %4627 = vmatprep.subr.mxu0 0.0
    %4628 = vmatpush1.msra.mxu0 0.0
    %4629 = vmatprep.subr.mxu0 0.0
    %4630 = vmatpush1.msra.mxu0 0.0
    %4631 = vmatprep.subr.mxu0 0.0
    %4632 = vmatpush1.msra.mxu0 0.0
    %4633 = vmatprep.subr.mxu0 0.0
    %4634 = vmatpush1.msra.mxu0 0.0
    %4635 = vmatprep.subr.mxu0 0.0
    %4636 = vmatpush1.msra.mxu0 0.0
    %4637 = vmatprep.subr.mxu0 0.0
    %4638 = vmatpush1.msra.mxu0 0.0
    %4639 = vmatprep.subr.mxu0 0.0
    %4640 = vmatpush1.msra.mxu0 0.0
    %4641 = vmatprep.subr.mxu0 0.0
    %4642 = vmatpush1.msra.mxu0 0.0
    %4643 = vmatprep.subr.mxu0 0.0
    %4644 = vmatpush1.msra.mxu0 0.0
    %4645 = vmatprep.subr.mxu0 0.0
    %4646 = vmatpush1.msra.mxu0 0.0
    %4647 = vmatprep.subr.mxu0 0.0
    %4648 = vmatpush1.msra.mxu0 0.0
    %4649 = vmatprep.subr.mxu0 0.0
    %4650 = vmatpush1.msra.mxu0 0.0
    %4651 = vmatprep.subr.mxu0 0.0
    %4652 = vmatpush1.msra.mxu0 0.0
    %4653 = vmatprep.subr.mxu0 0.0
    %4654 = vmatpush1.msra.mxu0 0.0
    %4655 = vmatprep.subr.mxu0 0.0
    %4656 = vmatpush1.msra.mxu0 0.0
    %4657 = vmatprep.subr.mxu0 0.0
    %4658 = vmatpush1.msra.mxu0 0.0
    %4659 = vmatprep.subr.mxu0 0.0
    %4660 = vmatpush1.msra.mxu0 0.0
    %4661 = vmatprep.subr.mxu0 0.0
    %4662 = vmatpush1.msra.mxu0 0.0
    %4663 = vmatprep.subr.mxu0 0.0
    %4664 = vmatpush1.msra.mxu0 0.0
    %4665 = vmatprep.subr.mxu0 0.0
    %4666 = vmatpush1.msra.mxu0 0.0
    %4667 = vmatprep.mubr.f32.mxu0 0.0
    %4668 = vmatmul.mubr.f32.gmra.mrb[0].mxu0 %v4601
    %v4669 = vpop.f32.mrb[0].mxu0
    %v4670 = vadd.f32 0.0, %v4669
    %v4671 = vpop.f32.mrb[0].mxu0
    %4672 = vdwg.mxu0
    %v4673 = vadd.f32 %v3030, %v4670
    %s4674 = scalar_lea.vmem %s37, 1
    %v4675 = vld [vmem:[%s4674] sm:$0x1]
    %v4677 = vlaneseq
    %v4678 = vshrl.u32 %v4677, 7
    %v4679 = vsub.s32 0, %v4678
    %v4680 = vrot.slane %v4675, %v4679
    %v4682 = vadd.f32 %v4673, %v4680
    %s4683 = scalar_lea.vmem %s39, 1
    %v4684 = vld [vmem:[%s4683] sm:$0x1]
    %s4685 = scalar_lea.vmem %s41, 1
    %v4686 = vld [vmem:[%s4685] sm:$0x1]
    %v4687 = vsel %vm816, %v4682, 0.0
    %4688 = vadd.xlane.f32.xlu0 %v4687
    %v4689 = vpop.xlane.xlu0 %4688
    %v4690 = vmul.f32 %v4689, %v1167
    %v4691 = vsub.f32 %v4682, %v4690
    %v4692 = vmul.f32 %v4691, %v4691
    %v4693 = vsel %vm816, %v4692, 0.0
    %4694 = vadd.xlane.f32.xlu0 %v4693
    %v4695 = vpop.xlane.xlu0 %4694
    %v4696 = vmul.f32 %v4695, %v1167
    %v4697 = vadd.f32 %v4696, 1e-05
    %v4698 = vrsqrt.pop %v4697
    %v4699 = vmul.f32 %v4691, %v4698
    %v4701 = vlaneseq
    %v4702 = vshrl.u32 %v4701, 7
    %v4703 = vsub.s32 0, %v4702
    %v4704 = vrot.slane %v4684, %v4703
    %v4706 = vmul.f32 %v4699, %v4704
    %v4708 = vlaneseq
    %v4709 = vshrl.u32 %v4708, 7
    %v4710 = vsub.s32 0, %v4709
    %v4711 = vrot.slane %v4686, %v4710
    %v4713 = vadd.f32 %v4706, %v4711
    %s4714 = scalar_lea.vmem %s43, 32
    %v4715 = vld [vmem:[%s4714] sm:$0xff]
    %v4716 = vld [vmem:[%s4714 + $0x8] sm:$0xff]
    %v4717 = vld [vmem:[%s4714 + $0x10] sm:$0xff]
    %v4718 = vld [vmem:[%s4714 + $0x18] sm:$0xff]
    %s4719 = scalar_lea.vmem %s45, 1
    %v4720 = vld [vmem:[%s4719] sm:$0x1]
    %v4722 = vlaneseq
    %v4723 = vshrl.u32 %v4722, 7
    %v4724 = vsub.s32 0, %v4723
    %v4725 = vrot.slane %v4720, %v4724
    %v4728 = vsel %vm816, %v4713, 0
    %4730 = vmatprep.subr.mxu0 0.0
    %4731 = vmatpush1.msra.mxu0 %v4715
    %4732 = vmatprep.subr.mxu0 0.0
    %4733 = vmatpush1.msra.mxu0 %v4716
    %4734 = vmatprep.subr.mxu0 0.0
    %4735 = vmatpush1.msra.mxu0 %v4717
    %4736 = vmatprep.subr.mxu0 0.0
    %4737 = vmatpush1.msra.mxu0 %v4718
    %4738 = vmatprep.subr.mxu0 0.0
    %4739 = vmatpush1.msra.mxu0 0.0
    %4740 = vmatprep.subr.mxu0 0.0
    %4741 = vmatpush1.msra.mxu0 0.0
    %4742 = vmatprep.subr.mxu0 0.0
    %4743 = vmatpush1.msra.mxu0 0.0
    %4744 = vmatprep.subr.mxu0 0.0
    %4745 = vmatpush1.msra.mxu0 0.0
    %4746 = vmatprep.subr.mxu0 0.0
    %4747 = vmatpush1.msra.mxu0 0.0
    %4748 = vmatprep.subr.mxu0 0.0
    %4749 = vmatpush1.msra.mxu0 0.0
    %4750 = vmatprep.subr.mxu0 0.0
    %4751 = vmatpush1.msra.mxu0 0.0
    %4752 = vmatprep.subr.mxu0 0.0
    %4753 = vmatpush1.msra.mxu0 0.0
    %4754 = vmatprep.subr.mxu0 0.0
    %4755 = vmatpush1.msra.mxu0 0.0
    %4756 = vmatprep.subr.mxu0 0.0
    %4757 = vmatpush1.msra.mxu0 0.0
    %4758 = vmatprep.subr.mxu0 0.0
    %4759 = vmatpush1.msra.mxu0 0.0
    %4760 = vmatprep.subr.mxu0 0.0
    %4761 = vmatpush1.msra.mxu0 0.0
    %4762 = vmatprep.subr.mxu0 0.0
    %4763 = vmatpush1.msra.mxu0 0.0
    %4764 = vmatprep.subr.mxu0 0.0
    %4765 = vmatpush1.msra.mxu0 0.0
    %4766 = vmatprep.subr.mxu0 0.0
    %4767 = vmatpush1.msra.mxu0 0.0
    %4768 = vmatprep.subr.mxu0 0.0
    %4769 = vmatpush1.msra.mxu0 0.0
    %4770 = vmatprep.subr.mxu0 0.0
    %4771 = vmatpush1.msra.mxu0 0.0
    %4772 = vmatprep.subr.mxu0 0.0
    %4773 = vmatpush1.msra.mxu0 0.0
    %4774 = vmatprep.subr.mxu0 0.0
    %4775 = vmatpush1.msra.mxu0 0.0
    %4776 = vmatprep.subr.mxu0 0.0
    %4777 = vmatpush1.msra.mxu0 0.0
    %4778 = vmatprep.subr.mxu0 0.0
    %4779 = vmatpush1.msra.mxu0 0.0
    %4780 = vmatprep.subr.mxu0 0.0
    %4781 = vmatpush1.msra.mxu0 0.0
    %4782 = vmatprep.subr.mxu0 0.0
    %4783 = vmatpush1.msra.mxu0 0.0
    %4784 = vmatprep.subr.mxu0 0.0
    %4785 = vmatpush1.msra.mxu0 0.0
    %4786 = vmatprep.subr.mxu0 0.0
    %4787 = vmatpush1.msra.mxu0 0.0
    %4788 = vmatprep.subr.mxu0 0.0
    %4789 = vmatpush1.msra.mxu0 0.0
    %4790 = vmatprep.subr.mxu0 0.0
    %4791 = vmatpush1.msra.mxu0 0.0
    %4792 = vmatprep.subr.mxu0 0.0
    %4793 = vmatpush1.msra.mxu0 0.0
    %4794 = vmatprep.mubr.f32.mxu0 0.0
    %4795 = vmatmul.mubr.f32.gmra.mrb[0].mxu0 %v4728
    %v4796 = vpop.f32.mrb[0].mxu0
    %v4797 = vadd.f32 %v4725, %v4796
    %v4798 = vpop.f32.mrb[0].mxu0
    %4799 = vdwg.mxu0
    %v4800 = vmax.f32 %v4797, 0.0
    %s4801 = scalar_lea.vmem %s47, 64
    %v4802 = vld [vmem:[%s4801] sm:$0xff]
    %v4803 = vld [vmem:[%s4801 + $0x8] sm:$0xff]
    %v4804 = vld [vmem:[%s4801 + $0x10] sm:$0xff]
    %v4805 = vld [vmem:[%s4801 + $0x18] sm:$0xff]
    %v4806 = vld [vmem:[%s4801 + $0x20] sm:$0xff]
    %v4807 = vld [vmem:[%s4801 + $0x28] sm:$0xff]
    %v4808 = vld [vmem:[%s4801 + $0x30] sm:$0xff]
    %v4809 = vld [vmem:[%s4801 + $0x38] sm:$0xff]
    %v4811 = vsel %vm820, %v4800, 0
    %4813 = vmatprep.subr.mxu0 0.0
    %4814 = vmatpush1.msra.mxu0 %v4802
    %4815 = vmatprep.subr.mxu0 0.0
    %4816 = vmatpush1.msra.mxu0 %v4803
    %4817 = vmatprep.subr.mxu0 0.0
    %4818 = vmatpush1.msra.mxu0 %v4804
    %4819 = vmatprep.subr.mxu0 0.0
    %4820 = vmatpush1.msra.mxu0 %v4805
    %4821 = vmatprep.subr.mxu0 0.0
    %4822 = vmatpush1.msra.mxu0 %v4806
    %4823 = vmatprep.subr.mxu0 0.0
    %4824 = vmatpush1.msra.mxu0 %v4807
    %4825 = vmatprep.subr.mxu0 0.0
    %4826 = vmatpush1.msra.mxu0 %v4808
    %4827 = vmatprep.subr.mxu0 0.0
    %4828 = vmatpush1.msra.mxu0 %v4809
    %4829 = vmatprep.subr.mxu0 0.0
    %4830 = vmatpush1.msra.mxu0 0.0
    %4831 = vmatprep.subr.mxu0 0.0
    %4832 = vmatpush1.msra.mxu0 0.0
    %4833 = vmatprep.subr.mxu0 0.0
    %4834 = vmatpush1.msra.mxu0 0.0
    %4835 = vmatprep.subr.mxu0 0.0
    %4836 = vmatpush1.msra.mxu0 0.0
    %4837 = vmatprep.subr.mxu0 0.0
    %4838 = vmatpush1.msra.mxu0 0.0
    %4839 = vmatprep.subr.mxu0 0.0
    %4840 = vmatpush1.msra.mxu0 0.0
    %4841 = vmatprep.subr.mxu0 0.0
    %4842 = vmatpush1.msra.mxu0 0.0
    %4843 = vmatprep.subr.mxu0 0.0
    %4844 = vmatpush1.msra.mxu0 0.0
    %4845 = vmatprep.subr.mxu0 0.0
    %4846 = vmatpush1.msra.mxu0 0.0
    %4847 = vmatprep.subr.mxu0 0.0
    %4848 = vmatpush1.msra.mxu0 0.0
    %4849 = vmatprep.subr.mxu0 0.0
    %4850 = vmatpush1.msra.mxu0 0.0
    %4851 = vmatprep.subr.mxu0 0.0
    %4852 = vmatpush1.msra.mxu0 0.0
    %4853 = vmatprep.subr.mxu0 0.0
    %4854 = vmatpush1.msra.mxu0 0.0
    %4855 = vmatprep.subr.mxu0 0.0
    %4856 = vmatpush1.msra.mxu0 0.0
    %4857 = vmatprep.subr.mxu0 0.0
    %4858 = vmatpush1.msra.mxu0 0.0
    %4859 = vmatprep.subr.mxu0 0.0
    %4860 = vmatpush1.msra.mxu0 0.0
    %4861 = vmatprep.subr.mxu0 0.0
    %4862 = vmatpush1.msra.mxu0 0.0
    %4863 = vmatprep.subr.mxu0 0.0
    %4864 = vmatpush1.msra.mxu0 0.0
    %4865 = vmatprep.subr.mxu0 0.0
    %4866 = vmatpush1.msra.mxu0 0.0
    %4867 = vmatprep.subr.mxu0 0.0
    %4868 = vmatpush1.msra.mxu0 0.0
    %4869 = vmatprep.subr.mxu0 0.0
    %4870 = vmatpush1.msra.mxu0 0.0
    %4871 = vmatprep.subr.mxu0 0.0
    %4872 = vmatpush1.msra.mxu0 0.0
    %4873 = vmatprep.subr.mxu0 0.0
    %4874 = vmatpush1.msra.mxu0 0.0
    %4875 = vmatprep.subr.mxu0 0.0
    %4876 = vmatpush1.msra.mxu0 0.0
    %4877 = vmatprep.mubr.f32.mxu0 0.0
    %4878 = vmatmul.mubr.f32.gmra.mrb[0].mxu0 %v4811
    %v4879 = vpop.f32.mrb[0].mxu0
    %v4880 = vadd.f32 0.0, %v4879
    %v4881 = vpop.f32.mrb[0].mxu0
    %4882 = vdwg.mxu0
    %v4883 = vadd.f32 %v4682, %v4880
    %s4884 = scalar_lea.vmem %s49, 1
    %v4885 = vld [vmem:[%s4884] sm:$0x1]
    %v4887 = vlaneseq
    %v4888 = vshrl.u32 %v4887, 7
    %v4889 = vsub.s32 0, %v4888
    %v4890 = vrot.slane %v4885, %v4889
    %v4892 = vadd.f32 %v4883, %v4890
    %v4893 = vld [vmem:[%s51] sm:$0x1]
    %v4894 = vld [vmem:[%s53] sm:$0x1]
    %v4895 = vsel %vm816, %v4892, 0.0
    %4896 = vadd.xlane.f32.xlu0 %v4895
    %v4897 = vpop.xlane.xlu0 %4896
    %v4898 = vmul.f32 %v4897, %v1167
    %v4899 = vsub.f32 %v4892, %v4898
    %v4900 = vmul.f32 %v4899, %v4899
    %v4901 = vsel %vm816, %v4900, 0.0
    %4902 = vadd.xlane.f32.xlu0 %v4901
    %v4903 = vpop.xlane.xlu0 %4902
    %v4904 = vmul.f32 %v4903, %v1167
    %v4905 = vadd.f32 %v4904, 1e-05
    %v4906 = vrsqrt.pop %v4905
    %v4907 = vmul.f32 %v4899, %v4906
    %v4909 = vlaneseq
    %v4910 = vshrl.u32 %v4909, 7
    %v4911 = vsub.s32 0, %v4910
    %v4912 = vrot.slane %v4893, %v4911
    %v4914 = vmul.f32 %v4907, %v4912
    %v4916 = vlaneseq
    %v4917 = vshrl.u32 %v4916, 7
    %v4918 = vsub.s32 0, %v4917
    %v4919 = vrot.slane %v4894, %v4918
    %v4921 = vadd.f32 %v4914, %v4919
    %4922 = vst.msk [vmem:[#allocation2] sm:$0xff] %vm816, %v4921
    %v4923 = vld [vmem:[%s55] sm:$0xff]
    %v4924 = vld [vmem:[%s55 + $0x8] sm:$0xff]
    %v4925 = vld [vmem:[%s55 + $0x10] sm:$0xff]
    %v4926 = vld [vmem:[%s55 + $0x18] sm:$0xff]
    %v4927 = vld [vmem:[%s57] sm:$0x1]
    %v4929 = vlaneseq
    %v4930 = vshrl.u32 %v4929, 7
    %v4931 = vsub.s32 0, %v4930
    %v4932 = vrot.slane %v4927, %v4931
    %v4935 = vsel %vm816, %v4921, 0
    %4937 = vmatprep.subr.mxu0 0.0
    %4938 = vmatpush1.msra.mxu0 %v4923
    %4939 = vmatprep.subr.mxu0 0.0
    %4940 = vmatpush1.msra.mxu0 %v4924
    %4941 = vmatprep.subr.mxu0 0.0
    %4942 = vmatpush1.msra.mxu0 %v4925
    %4943 = vmatprep.subr.mxu0 0.0
    %4944 = vmatpush1.msra.mxu0 %v4926
    %4945 = vmatprep.subr.mxu0 0.0
    %4946 = vmatpush1.msra.mxu0 0.0
    %4947 = vmatprep.subr.mxu0 0.0
    %4948 = vmatpush1.msra.mxu0 0.0
    %4949 = vmatprep.subr.mxu0 0.0
    %4950 = vmatpush1.msra.mxu0 0.0
    %4951 = vmatprep.subr.mxu0 0.0
    %4952 = vmatpush1.msra.mxu0 0.0
    %4953 = vmatprep.subr.mxu0 0.0
    %4954 = vmatpush1.msra.mxu0 0.0
    %4955 = vmatprep.subr.mxu0 0.0
    %4956 = vmatpush1.msra.mxu0 0.0
    %4957 = vmatprep.subr.mxu0 0.0
    %4958 = vmatpush1.msra.mxu0 0.0
    %4959 = vmatprep.subr.mxu0 0.0
    %4960 = vmatpush1.msra.mxu0 0.0
    %4961 = vmatprep.subr.mxu0 0.0
    %4962 = vmatpush1.msra.mxu0 0.0
    %4963 = vmatprep.subr.mxu0 0.0
    %4964 = vmatpush1.msra.mxu0 0.0
    %4965 = vmatprep.subr.mxu0 0.0
    %4966 = vmatpush1.msra.mxu0 0.0
    %4967 = vmatprep.subr.mxu0 0.0
    %4968 = vmatpush1.msra.mxu0 0.0
    %4969 = vmatprep.subr.mxu0 0.0
    %4970 = vmatpush1.msra.mxu0 0.0
    %4971 = vmatprep.subr.mxu0 0.0
    %4972 = vmatpush1.msra.mxu0 0.0
    %4973 = vmatprep.subr.mxu0 0.0
    %4974 = vmatpush1.msra.mxu0 0.0
    %4975 = vmatprep.subr.mxu0 0.0
    %4976 = vmatpush1.msra.mxu0 0.0
    %4977 = vmatprep.subr.mxu0 0.0
    %4978 = vmatpush1.msra.mxu0 0.0
    %4979 = vmatprep.subr.mxu0 0.0
    %4980 = vmatpush1.msra.mxu0 0.0
    %4981 = vmatprep.subr.mxu0 0.0
    %4982 = vmatpush1.msra.mxu0 0.0
    %4983 = vmatprep.subr.mxu0 0.0
    %4984 = vmatpush1.msra.mxu0 0.0
    %4985 = vmatprep.subr.mxu0 0.0
    %4986 = vmatpush1.msra.mxu0 0.0
    %4987 = vmatprep.subr.mxu0 0.0
    %4988 = vmatpush1.msra.mxu0 0.0
    %4989 = vmatprep.subr.mxu0 0.0
    %4990 = vmatpush1.msra.mxu0 0.0
    %4991 = vmatprep.subr.mxu0 0.0
    %4992 = vmatpush1.msra.mxu0 0.0
    %4993 = vmatprep.subr.mxu0 0.0
    %4994 = vmatpush1.msra.mxu0 0.0
    %4995 = vmatprep.subr.mxu0 0.0
    %4996 = vmatpush1.msra.mxu0 0.0
    %4997 = vmatprep.subr.mxu0 0.0
    %4998 = vmatpush1.msra.mxu0 0.0
    %4999 = vmatprep.subr.mxu0 0.0
    %5000 = vmatpush1.msra.mxu0 0.0
    %5001 = vmatprep.mubr.f32.mxu0 0.0
    %5002 = vmatmul.mubr.f32.gmra.mrb[0].mxu0 %v4935
    %v5003 = vpop.f32.mrb[0].mxu0
    %v5004 = vadd.f32 %v4932, %v5003
    %v5005 = vpop.f32.mrb[0].mxu0
    %5006 = vdwg.mxu0
    %5007 = vmax.xlane.f32.xlu0 %v5004
    %v5008 = vpop.xlane.xlu0 %5007
    %v5009 = vsub.f32 %v5004, %v5008
    %v5010 = vmul.f32 %v5009, 1.442695
    %v5011 = vpow.pop %v5010
    %5012 = vadd.xlane.f32.xlu0 %v5011
    %v5013 = vpop.xlane.xlu0 %5012
    %v5014 = vlog2.pop %v5013
    %v5015 = vmul.f32 %v5014, 0.6931472
    %v5016 = vsub.f32 %v5009, %v5015
    %5017 = vst [vmem:[%s63] sm:$0xff] %v5016
    // Predicated region
    $region118: #{streaming_encoder_forward.1} parent=1 // pred_check
      _
    $region119: #{streaming_encoder_forward.1} parent=1 // pred_check_branch
      %5019 = sbr.rel (0) target = $region121
    $region120: #{streaming_encoder_forward.1} parent=1 // pred_region
      %s5021 = ssub.s32 128, 128
      %5022 = vsyncadd [#allocation3], %s5021
      %s5024 = sshll.u32 [#allocation2], 4
      %s5025 = int_to_ptr.vmem [resolvable:$true] %s5024
      %5027 = dma.vmem_to_hbm [thread:$0]  %s5025, 128, %s59, [#allocation3]
    $region121: #{streaming_encoder_forward.1} parent=1 // pred_fallthru
      _
    // Predicated region
    $region122: #{streaming_encoder_forward.1} parent=1 // pred_check
      _
    $region123: #{streaming_encoder_forward.1} parent=1 // pred_check_branch
      %5029 = sbr.rel (0) target = $region125
    $region124: #{streaming_encoder_forward.1} parent=1 // pred_region
      _
    $region125: #{streaming_encoder_forward.1} parent=1 // pred_fallthru
      _
    // Predicated region
    $region126: #{streaming_encoder_forward.1} parent=1 // pred_check
      _
    $region127: #{streaming_encoder_forward.1} parent=1 // pred_check_branch
      %5031 = sbr.rel (0) target = $region129
    $region128: #{streaming_encoder_forward.1} parent=1 // pred_region
      _
    $region129: #{streaming_encoder_forward.1} parent=1 // pred_fallthru
      _
    // Predicated region
    $region130: #{streaming_encoder_forward.1} parent=1 // pred_check
      _
    $region131: #{streaming_encoder_forward.1} parent=1 // pred_check_branch
      %5033 = sbr.rel (0) target = $region133
    $region132: #{streaming_encoder_forward.1} parent=1 // pred_region
      %5034 = dma.done [#allocation3], 128
    $region133: #{streaming_encoder_forward.1} parent=1 // pred_fallthru
      _
    // Predicated region
    $region134: #{streaming_encoder_forward.1} parent=1 // pred_check
      _
    $region135: #{streaming_encoder_forward.1} parent=1 // pred_check_branch
      %5036 = sbr.rel (0) target = $region137
    $region136: #{streaming_encoder_forward.1} parent=1 // pred_region
      _
    $region137: #{streaming_encoder_forward.1} parent=1 // pred_fallthru
      _
    // Predicated region
    $region138: #{streaming_encoder_forward.1} parent=1 // pred_check
      _
    $region139: #{streaming_encoder_forward.1} parent=1 // pred_check_branch
      %5038 = sbr.rel (0) target = $region141
    $region140: #{streaming_encoder_forward.1} parent=1 // pred_region
      _
    $region141: #{streaming_encoder_forward.1} parent=1 // pred_fallthru
      _
    %5039 = vsyncpa [#allocation3], 1

</llo_original>
